<compile_context>
chip_gen: v5e
topology: v5e:2x2
jax: 0.10.0
libtpu: 0.0.40
codegen_flags: <defaults>
</compile_context>

<pallas_src>
import functools
import numpy as np

import jax
import jax.numpy as jnp
from jax.experimental import pallas as pl
from jax.experimental.pallas import tpu as pltpu

# ----------------------------- model sizes (small, synthetic, lane-dense) -------
TEXT_VOCAB = 64
TEXT_HIDDEN = 256         # text_config.hidden_size == projection_dim
TEXT_HEADS = 2            # head dim = 128 (aligned lane slices)
TEXT_FFN = 512
TEXT_MAXPOS = 16
TEXT_BLOCK = 16           # sentences per grid step (TB) -> TB*S = 128 rows at demo shapes

VIS_PATCH_DIM = 256       # flattened patch input dim
VIS_EMBED = 256           # internal vision embed dim
VIS_HEADS = 2
VIS_FFN = 512
MERGE = 2                 # spatial_merge_size
VIS_HIDDEN = 256          # vision_config.hidden_size (merger output dim)

DTYPE = jnp.bfloat16      # model torch_dtype default is bfloat16
NEG_INF = -1e9
VMEM_LIMIT = 48 * 1024 * 1024   # above v5e/v6e scoped defaults, below v7x physical 64 MiB


# ----------------------------- in-kernel helpers (traced inside pallas bodies) --
def _layernorm_f32(x_f32, g_ref, b_ref, eps=1e-5):
    """f32 layernorm over the last dim; stays in f32 (residual stream kept f32)."""
    mu = jnp.mean(x_f32, axis=-1, keepdims=True)
    var = jnp.mean(jnp.square(x_f32 - mu), axis=-1, keepdims=True)
    y = (x_f32 - mu) * jax.lax.rsqrt(var + eps)
    return y * g_ref[...].astype(jnp.float32) + b_ref[...].astype(jnp.float32)


def _softmax_rows(s_f32):
    s = s_f32 - jnp.max(s_f32, axis=-1, keepdims=True)
    p = jnp.exp(s)
    return p / jnp.sum(p, axis=-1, keepdims=True)


def _mha(x_bf, key_bias_f32, wqkv_ref, bqkv_ref, wo_ref, bo_ref, num_heads):
    """Fused-QKV multi-head self-attention; single K=H output projection. Returns f32."""
    rows, H = x_bf.shape
    Dh = H // num_heads
    scale = 1.0 / float(np.sqrt(Dh))
    qkv = jnp.dot(x_bf, wqkv_ref[...], preferred_element_type=jnp.float32)
    qkv = qkv + bqkv_ref[...].astype(jnp.float32)                  # [rows, 3H] f32
    heads = []
    for h in range(num_heads):                                     # unrolled, 128-aligned slices
        q = qkv[:, h * Dh:(h + 1) * Dh].astype(DTYPE)
        k = qkv[:, H + h * Dh:H + (h + 1) * Dh].astype(DTYPE)
        v = qkv[:, 2 * H + h * Dh:2 * H + (h + 1) * Dh].astype(DTYPE)
        s = jax.lax.dot_general(q, k, (((1,), (1,)), ((), ())),
                                preferred_element_type=jnp.float32)
        s = s * scale + key_bias_f32
        p = _softmax_rows(s).astype(DTYPE)
        heads.append(jnp.dot(p, v, preferred_element_type=jnp.float32).astype(DTYPE))
    o_cat = heads[0] if num_heads == 1 else jnp.concatenate(heads, axis=-1)   # [rows, H] bf16
    out = jnp.dot(o_cat, wo_ref[...], preferred_element_type=jnp.float32)     # one K=H matmul
    return out + bo_ref[...].astype(jnp.float32)


def _ffn(x_bf, w1_ref, b1_ref, w2_ref, b2_ref):
    h = jnp.dot(x_bf, w1_ref[...], preferred_element_type=jnp.float32)
    h = h + b1_ref[...].astype(jnp.float32)
    # TODO(synk): reference uses exact erf-GELU; tanh approximation used here (EUP-friendly).
    h = jax.nn.gelu(h, approximate=True).astype(DTYPE)
    o = jnp.dot(h, w2_ref[...], preferred_element_type=jnp.float32)
    return o + b2_ref[...].astype(jnp.float32)


# ----------------------------- fused text encoder kernel ------------------------
def _text_encoder_kernel(x_ref, mask_ref, segr_ref, segc_ref, bid_ref,
                         embg_ref, embb_ref,
                         wqkv_ref, bqkv_ref, wo_ref, bo_ref,
                         ln1g_ref, ln1b_ref,
                         w1_ref, b1_ref, w2_ref, b2_ref,
                         ln2g_ref, ln2b_ref,
                         o_ref, *, num_heads):
    # TB sentences flattened into one [TB*S, H] row slab per grid step.
    mrow = mask_ref[0]                                             # [1, rows] f32 key mask
    same = segc_ref[...] == segr_ref[...]                          # [rows, rows] block-diag
    key_bias = jnp.where(same & (mrow > 0.5), 0.0, NEG_INF)        # built in-kernel, O(rows^2) f32

    x_f32 = _layernorm_f32(x_ref[...].astype(jnp.float32), embg_ref, embb_ref)
    attn = _mha(x_f32.astype(DTYPE), key_bias, wqkv_ref, bqkv_ref, wo_ref, bo_ref, num_heads)
    x1_f32 = _layernorm_f32(x_f32 + attn, ln1g_ref, ln1b_ref)
    ffn = _ffn(x1_f32.astype(DTYPE), w1_ref, b1_ref, w2_ref, b2_ref)
    x2_f32 = _layernorm_f32(x1_f32 + ffn, ln2g_ref, ln2b_ref)      # last_hidden [rows, H]
    x2 = x2_f32.astype(DTYPE)

    # masked-mean pooling for all TB sentences in ONE matmul (== get_text_features)
    pool = jnp.where(bid_ref[...] == segr_ref[...], mrow, 0.0)     # [TB, rows] f32
    summed = jnp.dot(pool.astype(DTYPE), x2, preferred_element_type=jnp.float32)  # [TB, H]
    denom = jnp.maximum(jnp.sum(pool, axis=1, keepdims=True), 1e-9)
    o_ref[...] = (summed / denom).astype(o_ref.dtype)


# ----------------------------- fused vision encoder kernel (per-image grid) -----
def _vision_encoder_kernel(px_ref, kmask_ref, rmask_ref, cnt_ref,
                           pw_ref,
                           wqkv_ref, bqkv_ref, wo_ref, bo_ref,
                           ln1g_ref, ln1b_ref,
                           w1_ref, b1_ref, w2_ref, b2_ref,
                           ln2g_ref, ln2b_ref,
                           mlng_ref, mlnb_ref, mw_ref, mb_ref, proj_ref,
                           o_ref, *, num_heads, merge_sq):
    S = px_ref.shape[1]
    E = pw_ref.shape[1]
    nm = S // merge_sq

    # patch embed (linear on pre-flattened patches, no bias as in Qwen2-VL PatchEmbed)
    x = jnp.dot(px_ref[0], pw_ref[...], preferred_element_type=jnp.float32)     # [S, E] f32
    # TODO(synk): Qwen2-VL vision rotary position embedding omitted (synthetic encoder).

    # per-image block: only padded keys need masking (O(S) mask, no N^2 bias)
    key_bias = jnp.where(kmask_ref[0] > 0.5, 0.0, NEG_INF)                      # [1, S] f32

    attn = _mha(x.astype(DTYPE), key_bias, wqkv_ref, bqkv_ref, wo_ref, bo_ref, num_heads)
    x1_f32 = _layernorm_f32(x + attn, ln1g_ref, ln1b_ref)
    ffn = _ffn(x1_f32.astype(DTYPE), w1_ref, b1_ref, w2_ref, b2_ref)
    x2_f32 = _layernorm_f32(x1_f32 + ffn, ln2g_ref, ln2b_ref)

    # PatchMerger: LN -> 2x2 windows.  Patches were pre-ordered host-side so window-offset k
    # occupies the contiguous row range [k*nm, (k+1)*nm); concat along features and do a
    # single K = merge_sq*E matmul (no selection matrix, no strided gather).
    xm = _layernorm_f32(x2_f32, mlng_ref, mlnb_ref).astype(DTYPE)               # [S, E] bf16
    grouped = jnp.concatenate([xm[k * nm:(k + 1) * nm, :] for k in range(merge_sq)],
                              axis=-1)                                          # [nm, merge_sq*E]
    merged = jnp.dot(grouped, mw_ref[...], preferred_element_type=jnp.float32)
    merged = merged + mb_ref[...].astype(jnp.float32)                           # [nm, Hv] f32

    # per-image mean over valid merged rows + vision_projection (== get_image_features)
    sums = jnp.dot(rmask_ref[0], merged, preferred_element_type=jnp.float32)    # [1, Hv]
    feats = (sums / cnt_ref[0]).astype(DTYPE)
    o_ref[0] = jnp.dot(feats, proj_ref[...],
                       preferred_element_type=jnp.float32).astype(o_ref.dtype)


# ----------------------------- parameter init ------------------------------------
def _normal(key, shape, scale=0.02, dtype=DTYPE):
    return (jax.random.normal(key, shape, jnp.float32) * scale).astype(dtype)


def init_params(key):
    ks = iter(jax.random.split(key, 32))
    H, F = TEXT_HIDDEN, TEXT_FFN
    E, VF, MM = VIS_EMBED, VIS_FFN, MERGE * MERGE
    ones = lambda n: jnp.ones((1, n), DTYPE)
    zeros = lambda n: jnp.zeros((1, n), DTYPE)
    return {
        # ---- text (BERT-like, 1 layer), fused QKV ----
        "t_word_emb": _normal(next(ks), (TEXT_VOCAB, H)),
        "t_pos_emb": _normal(next(ks), (TEXT_MAXPOS, H)),
        "t_emb_ln_g": ones(H), "t_emb_ln_b": zeros(H),
        "t_wqkv": _normal(next(ks), (H, 3 * H)), "t_bqkv": zeros(3 * H),
        "t_wo": _normal(next(ks), (H, H)), "t_bo": zeros(H),
        "t_ln1_g": ones(H), "t_ln1_b": zeros(H),
        "t_w1": _normal(next(ks), (H, F)), "t_b1": zeros(F),
        "t_w2": _normal(next(ks), (F, H)), "t_b2": zeros(H),
        "t_ln2_g": ones(H), "t_ln2_b": zeros(H),
        # ---- vision (Qwen2-VL-like, 1 block + merger), fused QKV ----
        "v_patch_w": _normal(next(ks), (VIS_PATCH_DIM, E)),
        "v_wqkv": _normal(next(ks), (E, 3 * E)), "v_bqkv": zeros(3 * E),
        "v_wo": _normal(next(ks), (E, E)), "v_bo": zeros(E),
        "v_ln1_g": ones(E), "v_ln1_b": zeros(E),
        "v_w1": _normal(next(ks), (E, VF)), "v_b1": zeros(VF),
        "v_w2": _normal(next(ks), (VF, E)), "v_b2": zeros(E),
        "v_ln2_g": ones(E), "v_ln2_b": zeros(E),
        "v_merge_ln_g": ones(E), "v_merge_ln_b": zeros(E),
        "v_merge_w": _normal(next(ks), (MM * E, VIS_HIDDEN)), "v_merge_b": zeros(VIS_HIDDEN),
        # ---- CLIP head ----
        "vision_projection": _normal(next(ks), (VIS_HIDDEN, TEXT_HIDDEN)),   # Linear, no bias
    }


def _shared_spec(shape):
    nd = len(shape)
    return pl.BlockSpec(shape, lambda *_: (0,) * nd)


# ----------------------------- text forward (batched sentences per grid step) ----
def text_forward(p, input_ids, attention_mask):
    B, S = input_ids.shape
    H = TEXT_HIDDEN
    tb = TEXT_BLOCK
    nb = -(-B // tb)
    B_pad = nb * tb
    rows = tb * S

    # TODO(synk): embedding lookup kept as an XLA gather in the wrapper; the [64,256] bf16
    # table fits VMEM and could be gathered in-kernel for a further (modest) win.
    x = jnp.take(p["t_word_emb"], input_ids, axis=0) + p["t_pos_emb"][:S][None]
    x = x.astype(DTYPE)                                            # [B, S, H]
    mask = attention_mask.astype(jnp.float32)                      # [B, S]
    if B_pad != B:                                                 # pad with zero-mask sentences
        x = jnp.pad(x, ((0, B_pad - B), (0, 0), (0, 0)))
        mask = jnp.pad(mask, ((0, B_pad - B), (0, 0)))
    x2d = x.reshape(B_pad * S, H)                                  # [nb*rows, H]
    mflat = mask.reshape(nb, 1, rows)                              # flattened key mask per block

    # static per-block structure vectors (sentence ids), O(rows) each
    seg = np.repeat(np.arange(tb, dtype=np.float32), S)
    seg_row = jnp.asarray(seg.reshape(1, rows))
    seg_col = jnp.asarray(seg.reshape(rows, 1))
    bid_col = jnp.asarray(np.arange(tb, dtype=np.float32).reshape(tb, 1))

    weight_keys = ["t_emb_ln_g", "t_emb_ln_b", "t_wqkv", "t_bqkv", "t_wo", "t_bo",
                   "t_ln1_g", "t_ln1_b", "t_w1", "t_b1", "t_w2", "t_b2",
                   "t_ln2_g", "t_ln2_b"]
    weights = [p[k] for k in weight_keys]

    out = pl.pallas_call(
        functools.partial(_text_encoder_kernel, num_heads=TEXT_HEADS),
        out_shape=jax.ShapeDtypeStruct((B_pad, H), DTYPE),
        grid=(nb,),
        in_specs=[pl.BlockSpec((rows, H), lambda i: (i, 0)),
                  pl.BlockSpec((1, 1, rows), lambda i: (i, 0, 0)),
                  _shared_spec((1, rows)),
                  _shared_spec((rows, 1)),
                  _shared_spec((tb, 1))]
                 + [_shared_spec(w.shape) for w in weights],
        out_specs=pl.BlockSpec((tb, H), lambda i: (i, 0)),
        compiler_params=pltpu.CompilerParams(dimension_semantics=("parallel",),
                                             vmem_limit_bytes=VMEM_LIMIT),
    )(x2d, mflat, seg_row, seg_col, bid_col, *weights)
    return out[:B]                                                 # [B, H] bf16


# ----------------------------- vision forward (per-image grid) -------------------
def vision_forward(p, pixel_values, image_grid_thw_np):
    # pixel_values: [N_patches, VIS_PATCH_DIM]; image_grid_thw_np: host numpy [B_img, 3]
    N, PD = pixel_values.shape
    B_img = image_grid_thw_np.shape[0]
    MM = MERGE * MERGE

    # host-side O(N) index/mask prep (mirrors cu_seqlens / merged_cu_seqlens)
    seqlens = (image_grid_thw_np[:, 0] * image_grid_thw_np[:, 1]
               * image_grid_thw_np[:, 2]).astype(np.int64)
    offs = np.concatenate([[0], np.cumsum(seqlens)]).astype(np.int64)
    align = int(np.lcm(8, MM))
    S_pad = int(align * -(-int(seqlens.max()) // align))           # per-image padded seq len
    nm_max = S_pad // MM

    # Pre-order each image's patches so that 2x2 merge-window offset k occupies rows
    # [k*nm_max, k*nm_max + n_i/4) — merge windows become contiguous static slices in-kernel.
    gather_idx = np.zeros((B_img, S_pad), np.int32)                # pad rows -> dummy patch 0
    key_mask = np.zeros((B_img, 1, S_pad), np.float32)
    row_mask = np.zeros((B_img, 1, nm_max), np.float32)
    counts = np.ones((B_img, 1, 1), np.float32)
    for i in range(B_img):
        n_i = int(seqlens[i])
        nm_i = n_i // MM
        for k in range(MM):
            gather_idx[i, k * nm_max:k * nm_max + nm_i] = offs[i] + MM * np.arange(nm_i) + k
            key_mask[i, 0, k * nm_max:k * nm_max + nm_i] = 1.0
        row_mask[i, 0, :nm_i] = 1.0
        counts[i, 0, 0] = max(nm_i, 1)

    px = jnp.take(pixel_values.astype(DTYPE), jnp.asarray(gather_idx.reshape(-1)), axis=0)
    px = px.reshape(B_img, S_pad, PD)

    weight_keys = ["v_patch_w", "v_wqkv", "v_bqkv", "v_wo", "v_bo",
                   "v_ln1_g", "v_ln1_b", "v_w1", "v_b1", "v_w2", "v_b2",
                   "v_ln2_g", "v_ln2_b", "v_merge_ln_g", "v_merge_ln_b",
                   "v_merge_w", "v_merge_b", "vision_projection"]
    weights = [p[k] for k in weight_keys]

    out = pl.pallas_call(
        functools.partial(_vision_encoder_kernel, num_heads=VIS_HEADS, merge_sq=MM),
        out_shape=jax.ShapeDtypeStruct((B_img, 1, TEXT_HIDDEN), DTYPE),
        grid=(B_img,),
        in_specs=[pl.BlockSpec((1, S_pad, PD), lambda i: (i, 0, 0)),
                  pl.BlockSpec((1, 1, S_pad), lambda i: (i, 0, 0)),
                  pl.BlockSpec((1, 1, nm_max), lambda i: (i, 0, 0)),
                  pl.BlockSpec((1, 1, 1), lambda i: (i, 0, 0))]
                 + [_shared_spec(w.shape) for w in weights],
        out_specs=pl.BlockSpec((1, 1, TEXT_HIDDEN), lambda i: (i, 0, 0)),
        compiler_params=pltpu.CompilerParams(dimension_semantics=("parallel",),
                                             vmem_limit_bytes=VMEM_LIMIT),
    )(px, jnp.asarray(key_mask), jnp.asarray(row_mask), jnp.asarray(counts), *weights)
    return out.reshape(B_img, TEXT_HIDDEN)                         # [B_img, H] bf16


# ----------------------------- wrapper forward ------------------------------------
def clip_qwen2vl_forward(params, features):
    """features: dict with optional 'pixel_values'/'image_grid_thw', optional
    'input_ids'/'attention_mask', and required 'image_text_info' (python list)."""
    image_embeds = None
    text_embeds = None
    if "pixel_values" in features:
        image_embeds = vision_forward(params, features["pixel_values"],
                                      np.asarray(features["image_grid_thw"]))
    if "input_ids" in features:
        text_embeds = text_forward(params, features["input_ids"], features["attention_mask"])

    # interleave according to image_text_info with a single gather (no per-item slicing)
    info = np.asarray(features["image_text_info"])
    parts = []
    n_img = 0
    if image_embeds is not None:
        parts.append(image_embeds)
        n_img = image_embeds.shape[0]
    if text_embeds is not None:
        parts.append(text_embeds)
    combined = parts[0] if len(parts) == 1 else jnp.concatenate(parts, axis=0)
    img_pos = np.cumsum(info == 0) - 1
    txt_pos = np.cumsum(info == 1) - 1
    gather_idx = jnp.asarray(np.where(info == 0, img_pos, n_img + txt_pos).astype(np.int32))

    out = dict(features)
    out["sentence_embedding"] = jnp.take(combined, gather_idx, axis=0).astype(jnp.float32)
    return out


# ----------------------------- main ----------------------------------------------
if __name__ == "__main__":
    key = jax.random.PRNGKey(0)
    kp, k1, k2 = jax.random.split(key, 3)
    params = init_params(kp)

    # text inputs: 2 sentences, seq len 8
    B_text, S = 2, 8
    input_ids = jax.random.randint(k1, (B_text, S), 0, TEXT_VOCAB, dtype=jnp.int32)
    attention_mask = jnp.array([[1, 1, 1, 1, 1, 1, 1, 1],
                                [1, 1, 1, 1, 1, 0, 0, 0]], dtype=jnp.int32)

    # vision inputs: 2 images, grid (t=1, h=4, w=4) each -> 16 patches/image, 32 total
    image_grid_thw = np.array([[1, 4, 4], [1, 4, 4]], dtype=np.int64)
    n_patches = int((image_grid_thw[:, 0] * image_grid_thw[:, 1] * image_grid_thw[:, 2]).sum())
    pixel_values = jax.random.normal(k2, (n_patches, VIS_PATCH_DIM), jnp.float32).astype(DTYPE)

    features = {
        "pixel_values": pixel_values,
        "image_grid_thw": image_grid_thw,
        "input_ids": input_ids,
        "attention_mask": attention_mask,
        "image_text_info": [0, 1, 0, 1],   # image, text, image, text
    }

    out = clip_qwen2vl_forward(params, features)
    emb = jax.block_until_ready(out["sentence_embedding"])
    assert emb.shape == (4, TEXT_HIDDEN) and emb.dtype == jnp.float32
    assert bool(jnp.all(jnp.isfinite(emb)))
    print("KERNEL_OK")
</pallas_src>

<mosaic_0001>
module attributes {stable_mosaic.version = 11 : i64} {
  func.func @_vision_encoder_kernel(%arg0: i32, %arg1: memref<1x16x256xbf16, #tpu.memory_space<vmem>>, %arg2: memref<1x1x16xf32, #tpu.memory_space<vmem>>, %arg3: memref<1x1x4xf32, #tpu.memory_space<vmem>>, %arg4: memref<1x1x1xf32, #tpu.memory_space<vmem>>, %arg5: memref<256x256xbf16, #tpu.memory_space<vmem>>, %arg6: memref<256x768xbf16, #tpu.memory_space<vmem>>, %arg7: memref<1x768xbf16, #tpu.memory_space<vmem>>, %arg8: memref<256x256xbf16, #tpu.memory_space<vmem>>, %arg9: memref<1x256xbf16, #tpu.memory_space<vmem>>, %arg10: memref<1x256xbf16, #tpu.memory_space<vmem>>, %arg11: memref<1x256xbf16, #tpu.memory_space<vmem>>, %arg12: memref<256x512xbf16, #tpu.memory_space<vmem>>, %arg13: memref<1x512xbf16, #tpu.memory_space<vmem>>, %arg14: memref<512x256xbf16, #tpu.memory_space<vmem>>, %arg15: memref<1x256xbf16, #tpu.memory_space<vmem>>, %arg16: memref<1x256xbf16, #tpu.memory_space<vmem>>, %arg17: memref<1x256xbf16, #tpu.memory_space<vmem>>, %arg18: memref<1x256xbf16, #tpu.memory_space<vmem>>, %arg19: memref<1x256xbf16, #tpu.memory_space<vmem>>, %arg20: memref<1024x256xbf16, #tpu.memory_space<vmem>>, %arg21: memref<1x256xbf16, #tpu.memory_space<vmem>>, %arg22: memref<256x256xbf16, #tpu.memory_space<vmem>>, %arg23: memref<1x1x256xbf16, #tpu.memory_space<vmem>>) attributes {dimension_semantics = [#tpu.dimension_semantics<parallel>], iteration_bounds = array<i64: 2>, scalar_prefetch = 0 : i64, scratch_operands = 0 : i64, tpu.core_type = #tpu.core_type<tc>, window_params = [{transform_indices = @transform_0, window_bounds = array<i64: 1, 16, 256>}, {transform_indices = @transform_1, window_bounds = array<i64: 1, 1, 16>}, {transform_indices = @transform_2, window_bounds = array<i64: 1, 1, 4>}, {transform_indices = @transform_3, window_bounds = array<i64: 1, 1, 1>}, {pipeline_mode = #tpu.pipeline_mode<synchronous>, transform_indices = @transform_4, window_bounds = array<i64: 256, 256>}, {pipeline_mode = #tpu.pipeline_mode<synchronous>, transform_indices = @transform_5, window_bounds = array<i64: 256, 768>}, {pipeline_mode = #tpu.pipeline_mode<synchronous>, transform_indices = @transform_6, window_bounds = array<i64: 1, 768>}, {pipeline_mode = #tpu.pipeline_mode<synchronous>, transform_indices = @transform_7, window_bounds = array<i64: 256, 256>}, {pipeline_mode = #tpu.pipeline_mode<synchronous>, transform_indices = @transform_8, window_bounds = array<i64: 1, 256>}, {pipeline_mode = #tpu.pipeline_mode<synchronous>, transform_indices = @transform_9, window_bounds = array<i64: 1, 256>}, {pipeline_mode = #tpu.pipeline_mode<synchronous>, transform_indices = @transform_10, window_bounds = array<i64: 1, 256>}, {pipeline_mode = #tpu.pipeline_mode<synchronous>, transform_indices = @transform_11, window_bounds = array<i64: 256, 512>}, {pipeline_mode = #tpu.pipeline_mode<synchronous>, transform_indices = @transform_12, window_bounds = array<i64: 1, 512>}, {pipeline_mode = #tpu.pipeline_mode<synchronous>, transform_indices = @transform_13, window_bounds = array<i64: 512, 256>}, {pipeline_mode = #tpu.pipeline_mode<synchronous>, transform_indices = @transform_14, window_bounds = array<i64: 1, 256>}, {pipeline_mode = #tpu.pipeline_mode<synchronous>, transform_indices = @transform_15, window_bounds = array<i64: 1, 256>}, {pipeline_mode = #tpu.pipeline_mode<synchronous>, transform_indices = @transform_16, window_bounds = array<i64: 1, 256>}, {pipeline_mode = #tpu.pipeline_mode<synchronous>, transform_indices = @transform_17, window_bounds = array<i64: 1, 256>}, {pipeline_mode = #tpu.pipeline_mode<synchronous>, transform_indices = @transform_18, window_bounds = array<i64: 1, 256>}, {pipeline_mode = #tpu.pipeline_mode<synchronous>, transform_indices = @transform_19, window_bounds = array<i64: 1024, 256>}, {pipeline_mode = #tpu.pipeline_mode<synchronous>, transform_indices = @transform_20, window_bounds = array<i64: 1, 256>}, {pipeline_mode = #tpu.pipeline_mode<synchronous>, transform_indices = @transform_21, window_bounds = array<i64: 256, 256>}, {transform_indices = @transform_22, window_bounds = array<i64: 1, 1, 256>}]} {
    %c0 = arith.constant 0 : index
    %c0_0 = arith.constant 0 : index
    %c0_1 = arith.constant 0 : index
    %0 = vector.load %arg1[%c0, %c0_0, %c0_1] : memref<1x16x256xbf16, #tpu.memory_space<vmem>>, vector<1x16x256xbf16>
    %1 = vector.shape_cast %0 : vector<1x16x256xbf16> to vector<16x256xbf16>
    %c0_2 = arith.constant 0 : index
    %c0_3 = arith.constant 0 : index
    %2 = vector.load %arg5[%c0_2, %c0_3] : memref<256x256xbf16, #tpu.memory_space<vmem>>, vector<256x256xbf16>
    %cst = arith.constant dense<0.000000e+00> : vector<16x256xf32>
    %3 = tpu.matmul %1, %2, %cst {dimension_numbers = #tpu.dot_dimension_numbers<[1], [0], [0], [1], [0, 0, 1, 1], [], []>} : vector<16x256xbf16>, vector<256x256xbf16>, vector<16x256xf32> -> vector<16x256xf32>
    %c0_4 = arith.constant 0 : index
    %c0_5 = arith.constant 0 : index
    %c0_6 = arith.constant 0 : index
    %4 = vector.load %arg2[%c0_4, %c0_5, %c0_6] : memref<1x1x16xf32, #tpu.memory_space<vmem>>, vector<1x1x16xf32>
    %5 = vector.shape_cast %4 : vector<1x1x16xf32> to vector<1x16xf32>
    %cst_7 = arith.constant 5.000000e-01 : f32
    %6 = vector.broadcast %cst_7 : f32 to vector<1x16xf32>
    %7 = arith.cmpf ogt, %5, %6 : vector<1x16xf32>
    %cst_8 = arith.constant 0.000000e+00 : f32
    %cst_9 = arith.constant -1.000000e+09 : f32
    %8 = vector.broadcast %cst_8 : f32 to vector<1x16xf32>
    %9 = vector.broadcast %cst_9 : f32 to vector<1x16xf32>
    %10 = arith.select %7, %8, %9 : vector<1x16xi1>, vector<1x16xf32>
    %11 = arith.truncf %3 : vector<16x256xf32> to vector<16x256xbf16>
    %c0_10 = arith.constant 0 : index
    %c0_11 = arith.constant 0 : index
    %12 = vector.load %arg6[%c0_10, %c0_11] : memref<256x768xbf16, #tpu.memory_space<vmem>>, vector<256x768xbf16>
    %cst_12 = arith.constant dense<0.000000e+00> : vector<16x768xf32>
    %13 = tpu.matmul %11, %12, %cst_12 {dimension_numbers = #tpu.dot_dimension_numbers<[1], [0], [0], [1], [0, 0, 1, 1], [], []>} : vector<16x256xbf16>, vector<256x768xbf16>, vector<16x768xf32> -> vector<16x768xf32>
    %c0_13 = arith.constant 0 : index
    %c0_14 = arith.constant 0 : index
    %14 = vector.load %arg7[%c0_13, %c0_14] : memref<1x768xbf16, #tpu.memory_space<vmem>>, vector<1x768xbf16>
    %15 = arith.extf %14 : vector<1x768xbf16> to vector<1x768xf32>
    %16 = vector.broadcast %15 : vector<1x768xf32> to vector<16x768xf32>
    %17 = arith.addf %13, %16 : vector<16x768xf32>
    %18 = vector.extract_strided_slice %17 {offsets = [0, 0], sizes = [16, 128], strides = [1, 1]} : vector<16x768xf32> to vector<16x128xf32>
    %19 = arith.truncf %18 : vector<16x128xf32> to vector<16x128xbf16>
    %20 = vector.extract_strided_slice %17 {offsets = [0, 256], sizes = [16, 128], strides = [1, 1]} : vector<16x768xf32> to vector<16x128xf32>
    %21 = arith.truncf %20 : vector<16x128xf32> to vector<16x128xbf16>
    %22 = vector.extract_strided_slice %17 {offsets = [0, 512], sizes = [16, 128], strides = [1, 1]} : vector<16x768xf32> to vector<16x128xf32>
    %23 = arith.truncf %22 : vector<16x128xf32> to vector<16x128xbf16>
    %cst_15 = arith.constant dense<0.000000e+00> : vector<16x16xf32>
    %24 = tpu.matmul %19, %21, %cst_15 {dimension_numbers = #tpu.dot_dimension_numbers<[1], [1], [0], [0], [0, 0, 1, 0], [], []>} : vector<16x128xbf16>, vector<16x128xbf16>, vector<16x16xf32> -> vector<16x16xf32>
    %cst_16 = arith.constant 0.0883883461 : f32
    %25 = vector.broadcast %cst_16 : f32 to vector<16x16xf32>
    %26 = arith.mulf %24, %25 : vector<16x16xf32>
    %27 = vector.broadcast %10 : vector<1x16xf32> to vector<16x16xf32>
    %28 = arith.addf %26, %27 : vector<16x16xf32>
    %cst_17 = arith.constant dense<0xFF800000> : vector<16xf32>
    %29 = vector.multi_reduction <maximumf>, %28, %cst_17 [1] : vector<16x16xf32> to vector<16xf32>
    %30 = vector.shape_cast %29 : vector<16xf32> to vector<16x1xf32>
    %31 = vector.broadcast %30 : vector<16x1xf32> to vector<16x16xf32>
    %32 = arith.subf %28, %31 : vector<16x16xf32>
    %33 = math.exp %32 : vector<16x16xf32>
    %cst_18 = arith.constant dense<0.000000e+00> : vector<16xf32>
    %34 = vector.multi_reduction <add>, %33, %cst_18 [1] : vector<16x16xf32> to vector<16xf32>
    %35 = vector.shape_cast %34 : vector<16xf32> to vector<16x1xf32>
    %36 = vector.broadcast %35 : vector<16x1xf32> to vector<16x16xf32>
    %37 = arith.divf %33, %36 : vector<16x16xf32>
    %38 = arith.truncf %37 : vector<16x16xf32> to vector<16x16xbf16>
    %cst_19 = arith.constant dense<0.000000e+00> : vector<16x128xf32>
    %39 = tpu.matmul %38, %23, %cst_19 {dimension_numbers = #tpu.dot_dimension_numbers<[1], [0], [0], [1], [0, 0, 1, 1], [], []>} : vector<16x16xbf16>, vector<16x128xbf16>, vector<16x128xf32> -> vector<16x128xf32>
    %40 = arith.truncf %39 : vector<16x128xf32> to vector<16x128xbf16>
    %41 = vector.extract_strided_slice %17 {offsets = [0, 128], sizes = [16, 128], strides = [1, 1]} : vector<16x768xf32> to vector<16x128xf32>
    %42 = arith.truncf %41 : vector<16x128xf32> to vector<16x128xbf16>
    %43 = vector.extract_strided_slice %17 {offsets = [0, 384], sizes = [16, 128], strides = [1, 1]} : vector<16x768xf32> to vector<16x128xf32>
    %44 = arith.truncf %43 : vector<16x128xf32> to vector<16x128xbf16>
    %45 = vector.extract_strided_slice %17 {offsets = [0, 640], sizes = [16, 128], strides = [1, 1]} : vector<16x768xf32> to vector<16x128xf32>
    %46 = arith.truncf %45 : vector<16x128xf32> to vector<16x128xbf16>
    %cst_20 = arith.constant dense<0.000000e+00> : vector<16x16xf32>
    %47 = tpu.matmul %42, %44, %cst_20 {dimension_numbers = #tpu.dot_dimension_numbers<[1], [1], [0], [0], [0, 0, 1, 0], [], []>} : vector<16x128xbf16>, vector<16x128xbf16>, vector<16x16xf32> -> vector<16x16xf32>
    %cst_21 = arith.constant 0.0883883461 : f32
    %48 = vector.broadcast %cst_21 : f32 to vector<16x16xf32>
    %49 = arith.mulf %47, %48 : vector<16x16xf32>
    %50 = vector.broadcast %10 : vector<1x16xf32> to vector<16x16xf32>
    %51 = arith.addf %49, %50 : vector<16x16xf32>
    %cst_22 = arith.constant dense<0xFF800000> : vector<16xf32>
    %52 = vector.multi_reduction <maximumf>, %51, %cst_22 [1] : vector<16x16xf32> to vector<16xf32>
    %53 = vector.shape_cast %52 : vector<16xf32> to vector<16x1xf32>
    %54 = vector.broadcast %53 : vector<16x1xf32> to vector<16x16xf32>
    %55 = arith.subf %51, %54 : vector<16x16xf32>
    %56 = math.exp %55 : vector<16x16xf32>
    %cst_23 = arith.constant dense<0.000000e+00> : vector<16xf32>
    %57 = vector.multi_reduction <add>, %56, %cst_23 [1] : vector<16x16xf32> to vector<16xf32>
    %58 = vector.shape_cast %57 : vector<16xf32> to vector<16x1xf32>
    %59 = vector.broadcast %58 : vector<16x1xf32> to vector<16x16xf32>
    %60 = arith.divf %56, %59 : vector<16x16xf32>
    %61 = arith.truncf %60 : vector<16x16xf32> to vector<16x16xbf16>
    %cst_24 = arith.constant dense<0.000000e+00> : vector<16x128xf32>
    %62 = tpu.matmul %61, %46, %cst_24 {dimension_numbers = #tpu.dot_dimension_numbers<[1], [0], [0], [1], [0, 0, 1, 1], [], []>} : vector<16x16xbf16>, vector<16x128xbf16>, vector<16x128xf32> -> vector<16x128xf32>
    %63 = arith.truncf %62 : vector<16x128xf32> to vector<16x128xbf16>
    %64 = tpu.concatenate %40, %63 in 1 : vector<16x128xbf16>, vector<16x128xbf16> -> vector<16x256xbf16>
    %c0_25 = arith.constant 0 : index
    %c0_26 = arith.constant 0 : index
    %65 = vector.load %arg8[%c0_25, %c0_26] : memref<256x256xbf16, #tpu.memory_space<vmem>>, vector<256x256xbf16>
    %cst_27 = arith.constant dense<0.000000e+00> : vector<16x256xf32>
    %66 = tpu.matmul %64, %65, %cst_27 {dimension_numbers = #tpu.dot_dimension_numbers<[1], [0], [0], [1], [0, 0, 1, 1], [], []>} : vector<16x256xbf16>, vector<256x256xbf16>, vector<16x256xf32> -> vector<16x256xf32>
    %c0_28 = arith.constant 0 : index
    %c0_29 = arith.constant 0 : index
    %67 = vector.load %arg9[%c0_28, %c0_29] : memref<1x256xbf16, #tpu.memory_space<vmem>>, vector<1x256xbf16>
    %68 = arith.extf %67 : vector<1x256xbf16> to vector<1x256xf32>
    %69 = vector.broadcast %68 : vector<1x256xf32> to vector<16x256xf32>
    %70 = arith.addf %66, %69 : vector<16x256xf32>
    %71 = arith.addf %3, %70 : vector<16x256xf32>
    %cst_30 = arith.constant dense<0.000000e+00> : vector<16xf32>
    %72 = vector.multi_reduction <add>, %71, %cst_30 [1] : vector<16x256xf32> to vector<16xf32>
    %73 = vector.shape_cast %72 : vector<16xf32> to vector<16x1xf32>
    %cst_31 = arith.constant 2.560000e+02 : f32
    %74 = vector.broadcast %cst_31 : f32 to vector<16x1xf32>
    %75 = arith.divf %73, %74 : vector<16x1xf32>
    %76 = vector.broadcast %75 : vector<16x1xf32> to vector<16x256xf32>
    %77 = arith.subf %71, %76 : vector<16x256xf32>
    %78 = arith.mulf %77, %77 : vector<16x256xf32>
    %cst_32 = arith.constant dense<0.000000e+00> : vector<16xf32>
    %79 = vector.multi_reduction <add>, %78, %cst_32 [1] : vector<16x256xf32> to vector<16xf32>
    %80 = vector.shape_cast %79 : vector<16xf32> to vector<16x1xf32>
    %cst_33 = arith.constant 2.560000e+02 : f32
    %81 = vector.broadcast %cst_33 : f32 to vector<16x1xf32>
    %82 = arith.divf %80, %81 : vector<16x1xf32>
    %83 = vector.broadcast %75 : vector<16x1xf32> to vector<16x256xf32>
    %84 = arith.subf %71, %83 : vector<16x256xf32>
    %cst_34 = arith.constant 9.99999974E-6 : f32
    %85 = vector.broadcast %cst_34 : f32 to vector<16x1xf32>
    %86 = arith.addf %82, %85 : vector<16x1xf32>
    %87 = math.rsqrt %86 : vector<16x1xf32>
    %88 = vector.broadcast %87 : vector<16x1xf32> to vector<16x256xf32>
    %89 = arith.mulf %84, %88 : vector<16x256xf32>
    %c0_35 = arith.constant 0 : index
    %c0_36 = arith.constant 0 : index
    %90 = vector.load %arg10[%c0_35, %c0_36] : memref<1x256xbf16, #tpu.memory_space<vmem>>, vector<1x256xbf16>
    %91 = arith.extf %90 : vector<1x256xbf16> to vector<1x256xf32>
    %92 = vector.broadcast %91 : vector<1x256xf32> to vector<16x256xf32>
    %93 = arith.mulf %89, %92 : vector<16x256xf32>
    %c0_37 = arith.constant 0 : index
    %c0_38 = arith.constant 0 : index
    %94 = vector.load %arg11[%c0_37, %c0_38] : memref<1x256xbf16, #tpu.memory_space<vmem>>, vector<1x256xbf16>
    %95 = arith.extf %94 : vector<1x256xbf16> to vector<1x256xf32>
    %96 = vector.broadcast %95 : vector<1x256xf32> to vector<16x256xf32>
    %97 = arith.addf %93, %96 : vector<16x256xf32>
    %98 = arith.truncf %97 : vector<16x256xf32> to vector<16x256xbf16>
    %c0_39 = arith.constant 0 : index
    %c0_40 = arith.constant 0 : index
    %99 = vector.load %arg12[%c0_39, %c0_40] : memref<256x512xbf16, #tpu.memory_space<vmem>>, vector<256x512xbf16>
    %cst_41 = arith.constant dense<0.000000e+00> : vector<16x512xf32>
    %100 = tpu.matmul %98, %99, %cst_41 {dimension_numbers = #tpu.dot_dimension_numbers<[1], [0], [0], [1], [0, 0, 1, 1], [], []>} : vector<16x256xbf16>, vector<256x512xbf16>, vector<16x512xf32> -> vector<16x512xf32>
    %c0_42 = arith.constant 0 : index
    %c0_43 = arith.constant 0 : index
    %101 = vector.load %arg13[%c0_42, %c0_43] : memref<1x512xbf16, #tpu.memory_space<vmem>>, vector<1x512xbf16>
    %102 = arith.extf %101 : vector<1x512xbf16> to vector<1x512xf32>
    %103 = vector.broadcast %102 : vector<1x512xf32> to vector<16x512xf32>
    %104 = arith.addf %100, %103 : vector<16x512xf32>
    %105 = arith.mulf %104, %104 : vector<16x512xf32>
    %106 = arith.mulf %104, %105 : vector<16x512xf32>
    %cst_44 = arith.constant 4.471500e-02 : f32
    %107 = vector.broadcast %cst_44 : f32 to vector<16x512xf32>
    %108 = arith.mulf %107, %106 : vector<16x512xf32>
    %109 = arith.addf %104, %108 : vector<16x512xf32>
    %cst_45 = arith.constant 0.797884583 : f32
    %110 = vector.broadcast %cst_45 : f32 to vector<16x512xf32>
    %111 = arith.mulf %110, %109 : vector<16x512xf32>
    %112 = math.tanh %111 : vector<16x512xf32>
    %cst_46 = arith.constant 1.000000e+00 : f32
    %113 = vector.broadcast %cst_46 : f32 to vector<16x512xf32>
    %114 = arith.addf %113, %112 : vector<16x512xf32>
    %cst_47 = arith.constant 5.000000e-01 : f32
    %115 = vector.broadcast %cst_47 : f32 to vector<16x512xf32>
    %116 = arith.mulf %115, %114 : vector<16x512xf32>
    %117 = arith.mulf %104, %116 : vector<16x512xf32>
    %118 = arith.truncf %117 : vector<16x512xf32> to vector<16x512xbf16>
    %c0_48 = arith.constant 0 : index
    %c0_49 = arith.constant 0 : index
    %119 = vector.load %arg14[%c0_48, %c0_49] : memref<512x256xbf16, #tpu.memory_space<vmem>>, vector<512x256xbf16>
    %cst_50 = arith.constant dense<0.000000e+00> : vector<16x256xf32>
    %120 = tpu.matmul %118, %119, %cst_50 {dimension_numbers = #tpu.dot_dimension_numbers<[1], [0], [0], [1], [0, 0, 1, 1], [], []>} : vector<16x512xbf16>, vector<512x256xbf16>, vector<16x256xf32> -> vector<16x256xf32>
    %c0_51 = arith.constant 0 : index
    %c0_52 = arith.constant 0 : index
    %121 = vector.load %arg15[%c0_51, %c0_52] : memref<1x256xbf16, #tpu.memory_space<vmem>>, vector<1x256xbf16>
    %122 = arith.extf %121 : vector<1x256xbf16> to vector<1x256xf32>
    %123 = vector.broadcast %122 : vector<1x256xf32> to vector<16x256xf32>
    %124 = arith.addf %120, %123 : vector<16x256xf32>
    %125 = arith.addf %97, %124 : vector<16x256xf32>
    %cst_53 = arith.constant dense<0.000000e+00> : vector<16xf32>
    %126 = vector.multi_reduction <add>, %125, %cst_53 [1] : vector<16x256xf32> to vector<16xf32>
    %127 = vector.shape_cast %126 : vector<16xf32> to vector<16x1xf32>
    %cst_54 = arith.constant 2.560000e+02 : f32
    %128 = vector.broadcast %cst_54 : f32 to vector<16x1xf32>
    %129 = arith.divf %127, %128 : vector<16x1xf32>
    %130 = vector.broadcast %129 : vector<16x1xf32> to vector<16x256xf32>
    %131 = arith.subf %125, %130 : vector<16x256xf32>
    %132 = arith.mulf %131, %131 : vector<16x256xf32>
    %cst_55 = arith.constant dense<0.000000e+00> : vector<16xf32>
    %133 = vector.multi_reduction <add>, %132, %cst_55 [1] : vector<16x256xf32> to vector<16xf32>
    %134 = vector.shape_cast %133 : vector<16xf32> to vector<16x1xf32>
    %cst_56 = arith.constant 2.560000e+02 : f32
    %135 = vector.broadcast %cst_56 : f32 to vector<16x1xf32>
    %136 = arith.divf %134, %135 : vector<16x1xf32>
    %137 = vector.broadcast %129 : vector<16x1xf32> to vector<16x256xf32>
    %138 = arith.subf %125, %137 : vector<16x256xf32>
    %cst_57 = arith.constant 9.99999974E-6 : f32
    %139 = vector.broadcast %cst_57 : f32 to vector<16x1xf32>
    %140 = arith.addf %136, %139 : vector<16x1xf32>
    %141 = math.rsqrt %140 : vector<16x1xf32>
    %142 = vector.broadcast %141 : vector<16x1xf32> to vector<16x256xf32>
    %143 = arith.mulf %138, %142 : vector<16x256xf32>
    %c0_58 = arith.constant 0 : index
    %c0_59 = arith.constant 0 : index
    %144 = vector.load %arg16[%c0_58, %c0_59] : memref<1x256xbf16, #tpu.memory_space<vmem>>, vector<1x256xbf16>
    %145 = arith.extf %144 : vector<1x256xbf16> to vector<1x256xf32>
    %146 = vector.broadcast %145 : vector<1x256xf32> to vector<16x256xf32>
    %147 = arith.mulf %143, %146 : vector<16x256xf32>
    %c0_60 = arith.constant 0 : index
    %c0_61 = arith.constant 0 : index
    %148 = vector.load %arg17[%c0_60, %c0_61] : memref<1x256xbf16, #tpu.memory_space<vmem>>, vector<1x256xbf16>
    %149 = arith.extf %148 : vector<1x256xbf16> to vector<1x256xf32>
    %150 = vector.broadcast %149 : vector<1x256xf32> to vector<16x256xf32>
    %151 = arith.addf %147, %150 : vector<16x256xf32>
    %cst_62 = arith.constant dense<0.000000e+00> : vector<16xf32>
    %152 = vector.multi_reduction <add>, %151, %cst_62 [1] : vector<16x256xf32> to vector<16xf32>
    %153 = vector.shape_cast %152 : vector<16xf32> to vector<16x1xf32>
    %cst_63 = arith.constant 2.560000e+02 : f32
    %154 = vector.broadcast %cst_63 : f32 to vector<16x1xf32>
    %155 = arith.divf %153, %154 : vector<16x1xf32>
    %156 = vector.broadcast %155 : vector<16x1xf32> to vector<16x256xf32>
    %157 = arith.subf %151, %156 : vector<16x256xf32>
    %158 = arith.mulf %157, %157 : vector<16x256xf32>
    %cst_64 = arith.constant dense<0.000000e+00> : vector<16xf32>
    %159 = vector.multi_reduction <add>, %158, %cst_64 [1] : vector<16x256xf32> to vector<16xf32>
    %160 = vector.shape_cast %159 : vector<16xf32> to vector<16x1xf32>
    %cst_65 = arith.constant 2.560000e+02 : f32
    %161 = vector.broadcast %cst_65 : f32 to vector<16x1xf32>
    %162 = arith.divf %160, %161 : vector<16x1xf32>
    %163 = vector.broadcast %155 : vector<16x1xf32> to vector<16x256xf32>
    %164 = arith.subf %151, %163 : vector<16x256xf32>
    %cst_66 = arith.constant 9.99999974E-6 : f32
    %165 = vector.broadcast %cst_66 : f32 to vector<16x1xf32>
    %166 = arith.addf %162, %165 : vector<16x1xf32>
    %167 = math.rsqrt %166 : vector<16x1xf32>
    %168 = vector.broadcast %167 : vector<16x1xf32> to vector<16x256xf32>
    %169 = arith.mulf %164, %168 : vector<16x256xf32>
    %c0_67 = arith.constant 0 : index
    %c0_68 = arith.constant 0 : index
    %170 = vector.load %arg18[%c0_67, %c0_68] : memref<1x256xbf16, #tpu.memory_space<vmem>>, vector<1x256xbf16>
    %171 = arith.extf %170 : vector<1x256xbf16> to vector<1x256xf32>
    %172 = vector.broadcast %171 : vector<1x256xf32> to vector<16x256xf32>
    %173 = arith.mulf %169, %172 : vector<16x256xf32>
    %c0_69 = arith.constant 0 : index
    %c0_70 = arith.constant 0 : index
    %174 = vector.load %arg19[%c0_69, %c0_70] : memref<1x256xbf16, #tpu.memory_space<vmem>>, vector<1x256xbf16>
    %175 = arith.extf %174 : vector<1x256xbf16> to vector<1x256xf32>
    %176 = vector.broadcast %175 : vector<1x256xf32> to vector<16x256xf32>
    %177 = arith.addf %173, %176 : vector<16x256xf32>
    %178 = arith.truncf %177 : vector<16x256xf32> to vector<16x256xbf16>
    %179 = vector.extract_strided_slice %178 {offsets = [0, 0], sizes = [4, 256], strides = [1, 1]} : vector<16x256xbf16> to vector<4x256xbf16>
    %180 = vector.extract_strided_slice %178 {offsets = [4, 0], sizes = [4, 256], strides = [1, 1]} : vector<16x256xbf16> to vector<4x256xbf16>
    %181 = vector.extract_strided_slice %178 {offsets = [8, 0], sizes = [4, 256], strides = [1, 1]} : vector<16x256xbf16> to vector<4x256xbf16>
    %182 = vector.extract_strided_slice %178 {offsets = [12, 0], sizes = [4, 256], strides = [1, 1]} : vector<16x256xbf16> to vector<4x256xbf16>
    %183 = tpu.concatenate %179, %180, %181, %182 in 1 : vector<4x256xbf16>, vector<4x256xbf16>, vector<4x256xbf16>, vector<4x256xbf16> -> vector<4x1024xbf16>
    %c0_71 = arith.constant 0 : index
    %c0_72 = arith.constant 0 : index
    %184 = vector.load %arg20[%c0_71, %c0_72] : memref<1024x256xbf16, #tpu.memory_space<vmem>>, vector<1024x256xbf16>
    %cst_73 = arith.constant dense<0.000000e+00> : vector<4x256xf32>
    %185 = tpu.matmul %183, %184, %cst_73 {dimension_numbers = #tpu.dot_dimension_numbers<[1], [0], [0], [1], [0, 0, 1, 1], [], []>} : vector<4x1024xbf16>, vector<1024x256xbf16>, vector<4x256xf32> -> vector<4x256xf32>
    %c0_74 = arith.constant 0 : index
    %c0_75 = arith.constant 0 : index
    %186 = vector.load %arg21[%c0_74, %c0_75] : memref<1x256xbf16, #tpu.memory_space<vmem>>, vector<1x256xbf16>
    %187 = arith.extf %186 : vector<1x256xbf16> to vector<1x256xf32>
    %188 = vector.broadcast %187 : vector<1x256xf32> to vector<4x256xf32>
    %189 = arith.addf %185, %188 : vector<4x256xf32>
    %c0_76 = arith.constant 0 : index
    %c0_77 = arith.constant 0 : index
    %c0_78 = arith.constant 0 : index
    %190 = vector.load %arg3[%c0_76, %c0_77, %c0_78] : memref<1x1x4xf32, #tpu.memory_space<vmem>>, vector<1x1x4xf32>
    %191 = vector.shape_cast %190 : vector<1x1x4xf32> to vector<1x4xf32>
    %cst_79 = arith.constant dense<0.000000e+00> : vector<1x256xf32>
    %192 = tpu.matmul %191, %189, %cst_79 {dimension_numbers = #tpu.dot_dimension_numbers<[1], [0], [0], [1], [0, 0, 1, 1], [], []>} : vector<1x4xf32>, vector<4x256xf32>, vector<1x256xf32> -> vector<1x256xf32>
    %c0_80 = arith.constant 0 : index
    %c0_81 = arith.constant 0 : index
    %c0_82 = arith.constant 0 : index
    %193 = vector.load %arg4[%c0_80, %c0_81, %c0_82] : memref<1x1x1xf32, #tpu.memory_space<vmem>>, vector<1x1x1xf32>
    %194 = vector.shape_cast %193 : vector<1x1x1xf32> to vector<1x1xf32>
    %195 = vector.broadcast %194 : vector<1x1xf32> to vector<1x256xf32>
    %196 = arith.divf %192, %195 : vector<1x256xf32>
    %197 = arith.truncf %196 : vector<1x256xf32> to vector<1x256xbf16>
    %c0_83 = arith.constant 0 : index
    %c0_84 = arith.constant 0 : index
    %198 = vector.load %arg22[%c0_83, %c0_84] : memref<256x256xbf16, #tpu.memory_space<vmem>>, vector<256x256xbf16>
    %cst_85 = arith.constant dense<0.000000e+00> : vector<1x256xf32>
    %199 = tpu.matmul %197, %198, %cst_85 {dimension_numbers = #tpu.dot_dimension_numbers<[1], [0], [0], [1], [0, 0, 1, 1], [], []>} : vector<1x256xbf16>, vector<256x256xbf16>, vector<1x256xf32> -> vector<1x256xf32>
    %200 = arith.truncf %199 : vector<1x256xf32> to vector<1x256xbf16>
    %c0_86 = arith.constant 0 : index
    %c0_87 = arith.constant 0 : index
    %c0_88 = arith.constant 0 : index
    %201 = vector.load %arg23[%c0_86, %c0_87, %c0_88] : memref<1x1x256xbf16, #tpu.memory_space<vmem>>, vector<1x1x256xbf16>
    %202 = vector.shape_cast %201 : vector<1x1x256xbf16> to vector<1x256xbf16>
    %203 = vector.shape_cast %200 : vector<1x256xbf16> to vector<1x1x256xbf16>
    tpu.vector_store %arg23[%c0_86, %c0_87, %c0_88], %203 {strides = array<i32>} : memref<1x1x256xbf16, #tpu.memory_space<vmem>>, vector<1x1x256xbf16>,
    return
  }
  func.func @transform_0(%arg0: i32) -> (i32, i32, i32) {
    %c0_i32 = arith.constant 0 : i32
    %c0_i32_0 = arith.constant 0 : i32
    %c0_i32_1 = arith.constant 0 : i32
    return %arg0, %c0_i32, %c0_i32_0 : i32, i32, i32
  }
  func.func @transform_1(%arg0: i32) -> (i32, i32, i32) {
    %c0_i32 = arith.constant 0 : i32
    %c0_i32_0 = arith.constant 0 : i32
    %c0_i32_1 = arith.constant 0 : i32
    return %arg0, %c0_i32, %c0_i32_0 : i32, i32, i32
  }
  func.func @transform_2(%arg0: i32) -> (i32, i32, i32) {
    %c0_i32 = arith.constant 0 : i32
    %c0_i32_0 = arith.constant 0 : i32
    %c0_i32_1 = arith.constant 0 : i32
    return %arg0, %c0_i32, %c0_i32_0 : i32, i32, i32
  }
  func.func @transform_3(%arg0: i32) -> (i32, i32, i32) {
    %c0_i32 = arith.constant 0 : i32
    %c0_i32_0 = arith.constant 0 : i32
    %c0_i32_1 = arith.constant 0 : i32
    return %arg0, %c0_i32, %c0_i32_0 : i32, i32, i32
  }
  func.func @transform_4(%arg0: i32) -> (i32, i32) {
    %c0_i32 = arith.constant 0 : i32
    %c0_i32_0 = arith.constant 0 : i32
    %c0_i32_1 = arith.constant 0 : i32
    return %c0_i32, %c0_i32_0 : i32, i32
  }
  func.func @transform_5(%arg0: i32) -> (i32, i32) {
    %c0_i32 = arith.constant 0 : i32
    %c0_i32_0 = arith.constant 0 : i32
    %c0_i32_1 = arith.constant 0 : i32
    return %c0_i32, %c0_i32_0 : i32, i32
  }
  func.func @transform_6(%arg0: i32) -> (i32, i32) {
    %c0_i32 = arith.constant 0 : i32
    %c0_i32_0 = arith.constant 0 : i32
    %c0_i32_1 = arith.constant 0 : i32
    return %c0_i32, %c0_i32_0 : i32, i32
  }
  func.func @transform_7(%arg0: i32) -> (i32, i32) {
    %c0_i32 = arith.constant 0 : i32
    %c0_i32_0 = arith.constant 0 : i32
    %c0_i32_1 = arith.constant 0 : i32
    return %c0_i32, %c0_i32_0 : i32, i32
  }
  func.func @transform_8(%arg0: i32) -> (i32, i32) {
    %c0_i32 = arith.constant 0 : i32
    %c0_i32_0 = arith.constant 0 : i32
    %c0_i32_1 = arith.constant 0 : i32
    return %c0_i32, %c0_i32_0 : i32, i32
  }
  func.func @transform_9(%arg0: i32) -> (i32, i32) {
    %c0_i32 = arith.constant 0 : i32
    %c0_i32_0 = arith.constant 0 : i32
    %c0_i32_1 = arith.constant 0 : i32
    return %c0_i32, %c0_i32_0 : i32, i32
  }
  func.func @transform_10(%arg0: i32) -> (i32, i32) {
    %c0_i32 = arith.constant 0 : i32
    %c0_i32_0 = arith.constant 0 : i32
    %c0_i32_1 = arith.constant 0 : i32
    return %c0_i32, %c0_i32_0 : i32, i32
  }
  func.func @transform_11(%arg0: i32) -> (i32, i32) {
    %c0_i32 = arith.constant 0 : i32
    %c0_i32_0 = arith.constant 0 : i32
    %c0_i32_1 = arith.constant 0 : i32
    return %c0_i32, %c0_i32_0 : i32, i32
  }
  func.func @transform_12(%arg0: i32) -> (i32, i32) {
    %c0_i32 = arith.constant 0 : i32
    %c0_i32_0 = arith.constant 0 : i32
    %c0_i32_1 = arith.constant 0 : i32
    return %c0_i32, %c0_i32_0 : i32, i32
  }
  func.func @transform_13(%arg0: i32) -> (i32, i32) {
    %c0_i32 = arith.constant 0 : i32
    %c0_i32_0 = arith.constant 0 : i32
    %c0_i32_1 = arith.constant 0 : i32
    return %c0_i32, %c0_i32_0 : i32, i32
  }
  func.func @transform_14(%arg0: i32) -> (i32, i32) {
    %c0_i32 = arith.constant 0 : i32
    %c0_i32_0 = arith.constant 0 : i32
    %c0_i32_1 = arith.constant 0 : i32
    return %c0_i32, %c0_i32_0 : i32, i32
  }
  func.func @transform_15(%arg0: i32) -> (i32, i32) {
    %c0_i32 = arith.constant 0 : i32
    %c0_i32_0 = arith.constant 0 : i32
    %c0_i32_1 = arith.constant 0 : i32
    return %c0_i32, %c0_i32_0 : i32, i32
  }
  func.func @transform_16(%arg0: i32) -> (i32, i32) {
    %c0_i32 = arith.constant 0 : i32
    %c0_i32_0 = arith.constant 0 : i32
    %c0_i32_1 = arith.constant 0 : i32
    return %c0_i32, %c0_i32_0 : i32, i32
  }
  func.func @transform_17(%arg0: i32) -> (i32, i32) {
    %c0_i32 = arith.constant 0 : i32
    %c0_i32_0 = arith.constant 0 : i32
    %c0_i32_1 = arith.constant 0 : i32
    return %c0_i32, %c0_i32_0 : i32, i32
  }
  func.func @transform_18(%arg0: i32) -> (i32, i32) {
    %c0_i32 = arith.constant 0 : i32
    %c0_i32_0 = arith.constant 0 : i32
    %c0_i32_1 = arith.constant 0 : i32
    return %c0_i32, %c0_i32_0 : i32, i32
  }
  func.func @transform_19(%arg0: i32) -> (i32, i32) {
    %c0_i32 = arith.constant 0 : i32
    %c0_i32_0 = arith.constant 0 : i32
    %c0_i32_1 = arith.constant 0 : i32
    return %c0_i32, %c0_i32_0 : i32, i32
  }
  func.func @transform_20(%arg0: i32) -> (i32, i32) {
    %c0_i32 = arith.constant 0 : i32
    %c0_i32_0 = arith.constant 0 : i32
    %c0_i32_1 = arith.constant 0 : i32
    return %c0_i32, %c0_i32_0 : i32, i32
  }
  func.func @transform_21(%arg0: i32) -> (i32, i32) {
    %c0_i32 = arith.constant 0 : i32
    %c0_i32_0 = arith.constant 0 : i32
    %c0_i32_1 = arith.constant 0 : i32
    return %c0_i32, %c0_i32_0 : i32, i32
  }
  func.func @transform_22(%arg0: i32) -> (i32, i32, i32) {
    %c0_i32 = arith.constant 0 : i32
    %c0_i32_0 = arith.constant 0 : i32
    %c0_i32_1 = arith.constant 0 : i32
    return %arg0, %c0_i32, %c0_i32_0 : i32, i32, i32
  }
}

</mosaic_0001>

<llo_original>
// kernel: tpu_custom_call.1
$region0: #{tpu_custom_call.1}
  #allocation0 [shape = 'u32[]', space=smem, size = 0x4, offset = 0x4, fixed_abs, tag = 'smem constant byte address 0x4 - core index']
  #allocation1 [shape = 'u32[72,128]{1,0:T(1,128)}', space=vmem, size = 0x9000, scoped, tag = 'internal scratch']
  %s0 = inlined_call_operand.hbm [shape: bf16[2,16,256], index: 0, kind: input, shape index: {}]
  %s1 = inlined_call_operand.vmem [shape: f32[2,1,16], index: 1, kind: input, shape index: {}]
  %s2 = inlined_call_operand.hbm [shape: f32[2,1,4], index: 2, kind: input, shape index: {}]
  %s3 = inlined_call_operand.vmem [shape: f32[2,1,1], index: 3, kind: input, shape index: {}]
  %s4 = inlined_call_operand.hbm [shape: bf16[256,256], index: 4, kind: input, shape index: {}]
  %s5 = inlined_call_operand.hbm [shape: bf16[256,768], index: 5, kind: input, shape index: {}]
  %s6 = inlined_call_operand.hbm [shape: bf16[1,768], index: 6, kind: input, shape index: {}]
  %s7 = inlined_call_operand.hbm [shape: bf16[256,256], index: 7, kind: input, shape index: {}]
  %s8 = inlined_call_operand.vmem [shape: bf16[1,256], index: 8, kind: input, shape index: {}]
  %s9 = inlined_call_operand.hbm [shape: bf16[1,256], index: 9, kind: input, shape index: {}]
  %s10 = inlined_call_operand.vmem [shape: bf16[1,256], index: 10, kind: input, shape index: {}]
  %s11 = inlined_call_operand.hbm [shape: bf16[256,512], index: 11, kind: input, shape index: {}]
  %s12 = inlined_call_operand.vmem [shape: bf16[1,512], index: 12, kind: input, shape index: {}]
  %s13 = inlined_call_operand.hbm [shape: bf16[512,256], index: 13, kind: input, shape index: {}]
  %s14 = inlined_call_operand.vmem [shape: bf16[1,256], index: 14, kind: input, shape index: {}]
  %s15 = inlined_call_operand.vmem [shape: bf16[1,256], index: 15, kind: input, shape index: {}]
  %s16 = inlined_call_operand.vmem [shape: bf16[1,256], index: 16, kind: input, shape index: {}]
  %s17 = inlined_call_operand.hbm [shape: bf16[1,256], index: 17, kind: input, shape index: {}]
  %s18 = inlined_call_operand.vmem [shape: bf16[1,256], index: 18, kind: input, shape index: {}]
  %s19 = inlined_call_operand.hbm [shape: bf16[1024,256], index: 19, kind: input, shape index: {}]
  %s20 = inlined_call_operand.vmem [shape: bf16[1,256], index: 20, kind: input, shape index: {}]
  %s21 = inlined_call_operand.hbm [shape: bf16[256,256], index: 21, kind: input, shape index: {}]
  %s22 = inlined_call_operand.vmem [shape: bf16[2,1,256], index: 22, kind: output, shape index: {}]
  %s23 = sld [smem:[#allocation0]]
  $region169: #{tpu_custom_call.1} parent=0
    _
  %s25 = ssub.s32 1, %s23
  %s26 = scalar_select 0, %s25, %s23
  $region1: #{tpu_custom_call.1} parent=0
    #allocation2 [shape = 'u8[16384]{0}', space=vmem, size = 0x4000, scoped, tag = 'input window, operand 0']
    #allocation3 [shape = 's32[2]{0}', space=sflag, size = 0x8, scoped, tag = 'scoped memory for tpu_custom_call.1']
    #allocation4 [shape = 'u8[1024]{0}', space=vmem, size = 0x400, scoped, tag = 'input window, operand 2']
    #allocation5 [shape = 's32[2]{0}', space=sflag, size = 0x8, scoped, tag = 'scoped memory for tpu_custom_call.1']
    #allocation6 [shape = 'u8[131072]{0}', space=vmem, size = 0x20000, scoped, tag = 'input window, operand 4, single buffered']
    #allocation7 [shape = 'u8[393216]{0}', space=vmem, size = 0x60000, scoped, tag = 'input window, operand 5, single buffered']
    #allocation8 [shape = 's32[1]{0}', space=sflag, size = 0x4, scoped, tag = 'scoped memory for tpu_custom_call.1']
    #allocation9 [shape = 'u8[3072]{0}', space=vmem, size = 0xc00, scoped, tag = 'input window, operand 6, single buffered']
    #allocation10 [shape = 'u8[131072]{0}', space=vmem, size = 0x20000, scoped, tag = 'input window, operand 7, single buffered']
    #allocation11 [shape = 's32[1]{0}', space=sflag, size = 0x4, scoped, tag = 'scoped memory for tpu_custom_call.1']
    #allocation12 [shape = 'u8[1024]{0}', space=vmem, size = 0x400, scoped, tag = 'input window, operand 9, single buffered']
    #allocation13 [shape = 'u8[262144]{0}', space=vmem, size = 0x40000, scoped, tag = 'input window, operand 11, single buffered']
    #allocation14 [shape = 's32[1]{0}', space=sflag, size = 0x4, scoped, tag = 'scoped memory for tpu_custom_call.1']
    #allocation15 [shape = 'u8[262144]{0}', space=vmem, size = 0x40000, scoped, tag = 'input window, operand 13, single buffered']
    #allocation16 [shape = 'u8[1024]{0}', space=vmem, size = 0x400, scoped, tag = 'input window, operand 17, single buffered']
    #allocation17 [shape = 's32[1]{0}', space=sflag, size = 0x4, scoped, tag = 'scoped memory for tpu_custom_call.1']
    #allocation18 [shape = 'u8[524288]{0}', space=vmem, size = 0x80000, scoped, tag = 'input window, operand 19, single buffered']
    #allocation19 [shape = 'u8[131072]{0}', space=vmem, size = 0x20000, scoped, tag = 'input window, operand 21, single buffered']
    #allocation20 [shape = 's32[1]{0}', space=sflag, size = 0x4, scoped, tag = 'scoped memory for tpu_custom_call.1']
    %27 = vsyncpa [#allocation3], 0
    %s28 = scalar_lea.sflag [#allocation3], 1
    %29 = vsyncpa %s28, 0
    %30 = vsyncpa [#allocation5], 0
    %s31 = scalar_lea.sflag [#allocation5], 1
    %32 = vsyncpa %s31, 0
    %33 = vsyncpa [#allocation8], 0
    %34 = vsyncpa [#allocation11], 0
    %35 = vsyncpa [#allocation14], 0
    %36 = vsyncpa [#allocation17], 0
    %37 = vsyncpa [#allocation20], 0
    loop: start=0, step=1, limit=4
    $region2: #{tpu_custom_call.1} parent=1 // loop_pre_header
      _
    $region3: #{tpu_custom_call.1} parent=1 // loop_header
      %s39 = sphi 0, %s43
      %p40 = scmp.ge.s32.totalorder %s39, 4
      %s49 = sphi 0, %s51
      %s52 = sphi 0, %s49
      %s53 = sphi 0, %s52
      %s69 = sphi 0, %s53
      %s75 = sphi 0, %s77
      %s78 = sphi 0, %s75
      %s79 = sphi 0, %s78
      %s95 = sphi 0, %s79
      %s101 = sphi 0, %s103
      %s104 = sphi 0, %s101
      %s105 = sphi 0, %s104
      %s121 = sphi 0, %s105
      %s127 = sphi 0, %s129
      %s130 = sphi 0, %s127
      %s131 = sphi 0, %s130
      %s147 = sphi 0, %s131
      %s151 = sphi 0, %s151
      %s153 = sphi 0, %s151
      %s154 = sphi 0, %s153
      %s168 = sphi 0, %s154
      %s172 = sphi 0, %s172
      %s174 = sphi 0, %s172
      %s175 = sphi 0, %s174
      %s189 = sphi 0, %s175
      %s193 = sphi 0, %s193
      %s195 = sphi 0, %s193
      %s196 = sphi 0, %s195
      %s210 = sphi 0, %s196
      %s214 = sphi 0, %s214
      %s216 = sphi 0, %s214
      %s217 = sphi 0, %s216
      %s231 = sphi 0, %s217
      %s235 = sphi 0, %s235
      %s237 = sphi 0, %s235
      %s238 = sphi 0, %s237
      %s252 = sphi 0, %s238
      %s256 = sphi 0, %s256
      %s258 = sphi 0, %s256
      %s259 = sphi 0, %s258
      %s273 = sphi 0, %s259
      %s277 = sphi 0, %s277
      %s279 = sphi 0, %s277
      %s280 = sphi 0, %s279
      %s294 = sphi 0, %s280
      %s298 = sphi 0, %s298
      %s300 = sphi 0, %s298
      %s301 = sphi 0, %s300
      %s315 = sphi 0, %s301
      %s319 = sphi 0, %s319
      %s321 = sphi 0, %s319
      %s322 = sphi 0, %s321
      %s336 = sphi 0, %s322
      %s340 = sphi 0, %s340
      %s342 = sphi 0, %s340
      %s343 = sphi 0, %s342
      %s357 = sphi 0, %s343
      %s361 = sphi 0, %s361
      %s363 = sphi 0, %s361
      %s364 = sphi 0, %s363
      %s378 = sphi 0, %s364
      %s382 = sphi 0, %s382
      %s384 = sphi 0, %s382
      %s385 = sphi 0, %s384
      %s399 = sphi 0, %s385
      %s403 = sphi 0, %s403
      %s405 = sphi 0, %s403
      %s406 = sphi 0, %s405
      %s420 = sphi 0, %s406
      %s424 = sphi 0, %s424
      %s426 = sphi 0, %s424
      %s427 = sphi 0, %s426
      %s441 = sphi 0, %s427
      %s445 = sphi 0, %s445
      %s447 = sphi 0, %s445
      %s448 = sphi 0, %s447
      %s462 = sphi 0, %s448
      %s466 = sphi 0, %s466
      %s468 = sphi 0, %s466
      %s469 = sphi 0, %s468
      %s483 = sphi 0, %s469
      %s487 = sphi 0, %s487
      %s489 = sphi 0, %s487
      %s490 = sphi 0, %s489
      %s504 = sphi 0, %s490
      %s508 = sphi 0, %s508
      %s510 = sphi 0, %s508
      %s511 = sphi 0, %s510
      %s525 = sphi 0, %s511
      %s531 = sphi 0, %s533
      %s534 = sphi 0, %s531
      %s535 = sphi 0, %s534
      %s551 = sphi 0, %s535
    $region4: #{tpu_custom_call.1} parent=1 // loop_header_branch
      %42 = sbr.rel (%p40) target = $region8
    $region5: #{tpu_custom_call.1} parent=1 // loop_body
      %s44 = ssub.s32 %s39, 1
      %s45 = ssub.s32 %s39, 2
      %s46 = sadd.s32 %s39, 1
      %s47 = ssub.s32 %s39, %s46
      %p48 = scmp.eq.s32.totalorder %s47, 0
      %s50 = sadd.s32 %s49, 1
      %s51 = scalar_select %p48, %s49, %s50
      %p54 = pneg %p48
      %p55 = scmp.eq.s32.totalorder %s39, 1
      %p56 = por %p54, %p55
      %p57 = scmp.ne.s32.totalorder %s49, %s52
      %p58 = scmp.eq.s32.totalorder %s39, 0
      %p59 = por %p57, %p58
      %p60 = scmp.ne.s32.totalorder %s49, %s52
      %p61 = scmp.eq.s32.totalorder %s44, 1
      %p62 = por %p60, %p61
      %p63 = scmp.ne.s32.totalorder %s52, %s53
      %p64 = scmp.eq.s32.totalorder %s44, 0
      %p65 = por %p63, %p64
      %p66 = scmp.ne.s32.totalorder %s52, %s53
      %p67 = scmp.eq.s32.totalorder %s45, 1
      %p68 = por %p66, %p67
      %p70 = scmp.ne.s32.totalorder %s53, %s69
      %p71 = scmp.eq.s32.totalorder %s45, 0
      %p72 = por %p70, %p71
      %s73 = ssub.s32 %s39, %s46
      %p74 = scmp.eq.s32.totalorder %s73, 0
      %s76 = sadd.s32 %s75, 1
      %s77 = scalar_select %p74, %s75, %s76
      %p80 = pneg %p74
      %p81 = scmp.eq.s32.totalorder %s39, 1
      %p82 = por %p80, %p81
      %p83 = scmp.ne.s32.totalorder %s75, %s78
      %p84 = scmp.eq.s32.totalorder %s39, 0
      %p85 = por %p83, %p84
      %p86 = scmp.ne.s32.totalorder %s75, %s78
      %p87 = scmp.eq.s32.totalorder %s44, 1
      %p88 = por %p86, %p87
      %p89 = scmp.ne.s32.totalorder %s78, %s79
      %p90 = scmp.eq.s32.totalorder %s44, 0
      %p91 = por %p89, %p90
      %p92 = scmp.ne.s32.totalorder %s78, %s79
      %p93 = scmp.eq.s32.totalorder %s45, 1
      %p94 = por %p92, %p93
      %p96 = scmp.ne.s32.totalorder %s79, %s95
      %p97 = scmp.eq.s32.totalorder %s45, 0
      %p98 = por %p96, %p97
      %s99 = ssub.s32 %s39, %s46
      %p100 = scmp.eq.s32.totalorder %s99, 0
      %s102 = sadd.s32 %s101, 1
      %s103 = scalar_select %p100, %s101, %s102
      %p106 = pneg %p100
      %p107 = scmp.eq.s32.totalorder %s39, 1
      %p108 = por %p106, %p107
      %p109 = scmp.ne.s32.totalorder %s101, %s104
      %p110 = scmp.eq.s32.totalorder %s39, 0
      %p111 = por %p109, %p110
      %p112 = scmp.ne.s32.totalorder %s101, %s104
      %p113 = scmp.eq.s32.totalorder %s44, 1
      %p114 = por %p112, %p113
      %p115 = scmp.ne.s32.totalorder %s104, %s105
      %p116 = scmp.eq.s32.totalorder %s44, 0
      %p117 = por %p115, %p116
      %p118 = scmp.ne.s32.totalorder %s104, %s105
      %p119 = scmp.eq.s32.totalorder %s45, 1
      %p120 = por %p118, %p119
      %p122 = scmp.ne.s32.totalorder %s105, %s121
      %p123 = scmp.eq.s32.totalorder %s45, 0
      %p124 = por %p122, %p123
      %s125 = ssub.s32 %s39, %s46
      %p126 = scmp.eq.s32.totalorder %s125, 0
      %s128 = sadd.s32 %s127, 1
      %s129 = scalar_select %p126, %s127, %s128
      %p132 = pneg %p126
      %p133 = scmp.eq.s32.totalorder %s39, 1
      %p134 = por %p132, %p133
      %p135 = scmp.ne.s32.totalorder %s127, %s130
      %p136 = scmp.eq.s32.totalorder %s39, 0
      %p137 = por %p135, %p136
      %p138 = scmp.ne.s32.totalorder %s127, %s130
      %p139 = scmp.eq.s32.totalorder %s44, 1
      %p140 = por %p138, %p139
      %p141 = scmp.ne.s32.totalorder %s130, %s131
      %p142 = scmp.eq.s32.totalorder %s44, 0
      %p143 = por %p141, %p142
      %p144 = scmp.ne.s32.totalorder %s130, %s131
      %p145 = scmp.eq.s32.totalorder %s45, 1
      %p146 = por %p144, %p145
      %p148 = scmp.ne.s32.totalorder %s131, %s147
      %p149 = scmp.eq.s32.totalorder %s45, 0
      %p150 = por %p148, %p149
      %s152 = sadd.s32 %s151, 1
      %p155 = scmp.eq.s32.totalorder %s39, 1
      %p156 = scmp.ne.s32.totalorder %s151, %s153
      %p157 = scmp.eq.s32.totalorder %s39, 0
      %p158 = por %p156, %p157
      %p159 = scmp.ne.s32.totalorder %s151, %s153
      %p160 = scmp.eq.s32.totalorder %s44, 1
      %p161 = por %p159, %p160
      %p162 = scmp.ne.s32.totalorder %s153, %s154
      %p163 = scmp.eq.s32.totalorder %s44, 0
      %p164 = por %p162, %p163
      %p165 = scmp.ne.s32.totalorder %s153, %s154
      %p166 = scmp.eq.s32.totalorder %s45, 1
      %p167 = por %p165, %p166
      %p169 = scmp.ne.s32.totalorder %s154, %s168
      %p170 = scmp.eq.s32.totalorder %s45, 0
      %p171 = por %p169, %p170
      %s173 = sadd.s32 %s172, 1
      %p176 = scmp.eq.s32.totalorder %s39, 1
      %p177 = scmp.ne.s32.totalorder %s172, %s174
      %p178 = scmp.eq.s32.totalorder %s39, 0
      %p179 = por %p177, %p178
      %p180 = scmp.ne.s32.totalorder %s172, %s174
      %p181 = scmp.eq.s32.totalorder %s44, 1
      %p182 = por %p180, %p181
      %p183 = scmp.ne.s32.totalorder %s174, %s175
      %p184 = scmp.eq.s32.totalorder %s44, 0
      %p185 = por %p183, %p184
      %p186 = scmp.ne.s32.totalorder %s174, %s175
      %p187 = scmp.eq.s32.totalorder %s45, 1
      %p188 = por %p186, %p187
      %p190 = scmp.ne.s32.totalorder %s175, %s189
      %p191 = scmp.eq.s32.totalorder %s45, 0
      %p192 = por %p190, %p191
      %s194 = sadd.s32 %s193, 1
      %p197 = scmp.eq.s32.totalorder %s39, 1
      %p198 = scmp.ne.s32.totalorder %s193, %s195
      %p199 = scmp.eq.s32.totalorder %s39, 0
      %p200 = por %p198, %p199
      %p201 = scmp.ne.s32.totalorder %s193, %s195
      %p202 = scmp.eq.s32.totalorder %s44, 1
      %p203 = por %p201, %p202
      %p204 = scmp.ne.s32.totalorder %s195, %s196
      %p205 = scmp.eq.s32.totalorder %s44, 0
      %p206 = por %p204, %p205
      %p207 = scmp.ne.s32.totalorder %s195, %s196
      %p208 = scmp.eq.s32.totalorder %s45, 1
      %p209 = por %p207, %p208
      %p211 = scmp.ne.s32.totalorder %s196, %s210
      %p212 = scmp.eq.s32.totalorder %s45, 0
      %p213 = por %p211, %p212
      %s215 = sadd.s32 %s214, 1
      %p218 = scmp.eq.s32.totalorder %s39, 1
      %p219 = scmp.ne.s32.totalorder %s214, %s216
      %p220 = scmp.eq.s32.totalorder %s39, 0
      %p221 = por %p219, %p220
      %p222 = scmp.ne.s32.totalorder %s214, %s216
      %p223 = scmp.eq.s32.totalorder %s44, 1
      %p224 = por %p222, %p223
      %p225 = scmp.ne.s32.totalorder %s216, %s217
      %p226 = scmp.eq.s32.totalorder %s44, 0
      %p227 = por %p225, %p226
      %p228 = scmp.ne.s32.totalorder %s216, %s217
      %p229 = scmp.eq.s32.totalorder %s45, 1
      %p230 = por %p228, %p229
      %p232 = scmp.ne.s32.totalorder %s217, %s231
      %p233 = scmp.eq.s32.totalorder %s45, 0
      %p234 = por %p232, %p233
      %s236 = sadd.s32 %s235, 1
      %p239 = scmp.eq.s32.totalorder %s39, 1
      %p240 = scmp.ne.s32.totalorder %s235, %s237
      %p241 = scmp.eq.s32.totalorder %s39, 0
      %p242 = por %p240, %p241
      %p243 = scmp.ne.s32.totalorder %s235, %s237
      %p244 = scmp.eq.s32.totalorder %s44, 1
      %p245 = por %p243, %p244
      %p246 = scmp.ne.s32.totalorder %s237, %s238
      %p247 = scmp.eq.s32.totalorder %s44, 0
      %p248 = por %p246, %p247
      %p249 = scmp.ne.s32.totalorder %s237, %s238
      %p250 = scmp.eq.s32.totalorder %s45, 1
      %p251 = por %p249, %p250
      %p253 = scmp.ne.s32.totalorder %s238, %s252
      %p254 = scmp.eq.s32.totalorder %s45, 0
      %p255 = por %p253, %p254
      %s257 = sadd.s32 %s256, 1
      %p260 = scmp.eq.s32.totalorder %s39, 1
      %p261 = scmp.ne.s32.totalorder %s256, %s258
      %p262 = scmp.eq.s32.totalorder %s39, 0
      %p263 = por %p261, %p262
      %p264 = scmp.ne.s32.totalorder %s256, %s258
      %p265 = scmp.eq.s32.totalorder %s44, 1
      %p266 = por %p264, %p265
      %p267 = scmp.ne.s32.totalorder %s258, %s259
      %p268 = scmp.eq.s32.totalorder %s44, 0
      %p269 = por %p267, %p268
      %p270 = scmp.ne.s32.totalorder %s258, %s259
      %p271 = scmp.eq.s32.totalorder %s45, 1
      %p272 = por %p270, %p271
      %p274 = scmp.ne.s32.totalorder %s259, %s273
      %p275 = scmp.eq.s32.totalorder %s45, 0
      %p276 = por %p274, %p275
      %s278 = sadd.s32 %s277, 1
      %p281 = scmp.eq.s32.totalorder %s39, 1
      %p282 = scmp.ne.s32.totalorder %s277, %s279
      %p283 = scmp.eq.s32.totalorder %s39, 0
      %p284 = por %p282, %p283
      %p285 = scmp.ne.s32.totalorder %s277, %s279
      %p286 = scmp.eq.s32.totalorder %s44, 1
      %p287 = por %p285, %p286
      %p288 = scmp.ne.s32.totalorder %s279, %s280
      %p289 = scmp.eq.s32.totalorder %s44, 0
      %p290 = por %p288, %p289
      %p291 = scmp.ne.s32.totalorder %s279, %s280
      %p292 = scmp.eq.s32.totalorder %s45, 1
      %p293 = por %p291, %p292
      %p295 = scmp.ne.s32.totalorder %s280, %s294
      %p296 = scmp.eq.s32.totalorder %s45, 0
      %p297 = por %p295, %p296
      %s299 = sadd.s32 %s298, 1
      %p302 = scmp.eq.s32.totalorder %s39, 1
      %p303 = scmp.ne.s32.totalorder %s298, %s300
      %p304 = scmp.eq.s32.totalorder %s39, 0
      %p305 = por %p303, %p304
      %p306 = scmp.ne.s32.totalorder %s298, %s300
      %p307 = scmp.eq.s32.totalorder %s44, 1
      %p308 = por %p306, %p307
      %p309 = scmp.ne.s32.totalorder %s300, %s301
      %p310 = scmp.eq.s32.totalorder %s44, 0
      %p311 = por %p309, %p310
      %p312 = scmp.ne.s32.totalorder %s300, %s301
      %p313 = scmp.eq.s32.totalorder %s45, 1
      %p314 = por %p312, %p313
      %p316 = scmp.ne.s32.totalorder %s301, %s315
      %p317 = scmp.eq.s32.totalorder %s45, 0
      %p318 = por %p316, %p317
      %s320 = sadd.s32 %s319, 1
      %p323 = scmp.eq.s32.totalorder %s39, 1
      %p324 = scmp.ne.s32.totalorder %s319, %s321
      %p325 = scmp.eq.s32.totalorder %s39, 0
      %p326 = por %p324, %p325
      %p327 = scmp.ne.s32.totalorder %s319, %s321
      %p328 = scmp.eq.s32.totalorder %s44, 1
      %p329 = por %p327, %p328
      %p330 = scmp.ne.s32.totalorder %s321, %s322
      %p331 = scmp.eq.s32.totalorder %s44, 0
      %p332 = por %p330, %p331
      %p333 = scmp.ne.s32.totalorder %s321, %s322
      %p334 = scmp.eq.s32.totalorder %s45, 1
      %p335 = por %p333, %p334
      %p337 = scmp.ne.s32.totalorder %s322, %s336
      %p338 = scmp.eq.s32.totalorder %s45, 0
      %p339 = por %p337, %p338
      %s341 = sadd.s32 %s340, 1
      %p344 = scmp.eq.s32.totalorder %s39, 1
      %p345 = scmp.ne.s32.totalorder %s340, %s342
      %p346 = scmp.eq.s32.totalorder %s39, 0
      %p347 = por %p345, %p346
      %p348 = scmp.ne.s32.totalorder %s340, %s342
      %p349 = scmp.eq.s32.totalorder %s44, 1
      %p350 = por %p348, %p349
      %p351 = scmp.ne.s32.totalorder %s342, %s343
      %p352 = scmp.eq.s32.totalorder %s44, 0
      %p353 = por %p351, %p352
      %p354 = scmp.ne.s32.totalorder %s342, %s343
      %p355 = scmp.eq.s32.totalorder %s45, 1
      %p356 = por %p354, %p355
      %p358 = scmp.ne.s32.totalorder %s343, %s357
      %p359 = scmp.eq.s32.totalorder %s45, 0
      %p360 = por %p358, %p359
      %s362 = sadd.s32 %s361, 1
      %p365 = scmp.eq.s32.totalorder %s39, 1
      %p366 = scmp.ne.s32.totalorder %s361, %s363
      %p367 = scmp.eq.s32.totalorder %s39, 0
      %p368 = por %p366, %p367
      %p369 = scmp.ne.s32.totalorder %s361, %s363
      %p370 = scmp.eq.s32.totalorder %s44, 1
      %p371 = por %p369, %p370
      %p372 = scmp.ne.s32.totalorder %s363, %s364
      %p373 = scmp.eq.s32.totalorder %s44, 0
      %p374 = por %p372, %p373
      %p375 = scmp.ne.s32.totalorder %s363, %s364
      %p376 = scmp.eq.s32.totalorder %s45, 1
      %p377 = por %p375, %p376
      %p379 = scmp.ne.s32.totalorder %s364, %s378
      %p380 = scmp.eq.s32.totalorder %s45, 0
      %p381 = por %p379, %p380
      %s383 = sadd.s32 %s382, 1
      %p386 = scmp.eq.s32.totalorder %s39, 1
      %p387 = scmp.ne.s32.totalorder %s382, %s384
      %p388 = scmp.eq.s32.totalorder %s39, 0
      %p389 = por %p387, %p388
      %p390 = scmp.ne.s32.totalorder %s382, %s384
      %p391 = scmp.eq.s32.totalorder %s44, 1
      %p392 = por %p390, %p391
      %p393 = scmp.ne.s32.totalorder %s384, %s385
      %p394 = scmp.eq.s32.totalorder %s44, 0
      %p395 = por %p393, %p394
      %p396 = scmp.ne.s32.totalorder %s384, %s385
      %p397 = scmp.eq.s32.totalorder %s45, 1
      %p398 = por %p396, %p397
      %p400 = scmp.ne.s32.totalorder %s385, %s399
      %p401 = scmp.eq.s32.totalorder %s45, 0
      %p402 = por %p400, %p401
      %s404 = sadd.s32 %s403, 1
      %p407 = scmp.eq.s32.totalorder %s39, 1
      %p408 = scmp.ne.s32.totalorder %s403, %s405
      %p409 = scmp.eq.s32.totalorder %s39, 0
      %p410 = por %p408, %p409
      %p411 = scmp.ne.s32.totalorder %s403, %s405
      %p412 = scmp.eq.s32.totalorder %s44, 1
      %p413 = por %p411, %p412
      %p414 = scmp.ne.s32.totalorder %s405, %s406
      %p415 = scmp.eq.s32.totalorder %s44, 0
      %p416 = por %p414, %p415
      %p417 = scmp.ne.s32.totalorder %s405, %s406
      %p418 = scmp.eq.s32.totalorder %s45, 1
      %p419 = por %p417, %p418
      %p421 = scmp.ne.s32.totalorder %s406, %s420
      %p422 = scmp.eq.s32.totalorder %s45, 0
      %p423 = por %p421, %p422
      %s425 = sadd.s32 %s424, 1
      %p428 = scmp.eq.s32.totalorder %s39, 1
      %p429 = scmp.ne.s32.totalorder %s424, %s426
      %p430 = scmp.eq.s32.totalorder %s39, 0
      %p431 = por %p429, %p430
      %p432 = scmp.ne.s32.totalorder %s424, %s426
      %p433 = scmp.eq.s32.totalorder %s44, 1
      %p434 = por %p432, %p433
      %p435 = scmp.ne.s32.totalorder %s426, %s427
      %p436 = scmp.eq.s32.totalorder %s44, 0
      %p437 = por %p435, %p436
      %p438 = scmp.ne.s32.totalorder %s426, %s427
      %p439 = scmp.eq.s32.totalorder %s45, 1
      %p440 = por %p438, %p439
      %p442 = scmp.ne.s32.totalorder %s427, %s441
      %p443 = scmp.eq.s32.totalorder %s45, 0
      %p444 = por %p442, %p443
      %s446 = sadd.s32 %s445, 1
      %p449 = scmp.eq.s32.totalorder %s39, 1
      %p450 = scmp.ne.s32.totalorder %s445, %s447
      %p451 = scmp.eq.s32.totalorder %s39, 0
      %p452 = por %p450, %p451
      %p453 = scmp.ne.s32.totalorder %s445, %s447
      %p454 = scmp.eq.s32.totalorder %s44, 1
      %p455 = por %p453, %p454
      %p456 = scmp.ne.s32.totalorder %s447, %s448
      %p457 = scmp.eq.s32.totalorder %s44, 0
      %p458 = por %p456, %p457
      %p459 = scmp.ne.s32.totalorder %s447, %s448
      %p460 = scmp.eq.s32.totalorder %s45, 1
      %p461 = por %p459, %p460
      %p463 = scmp.ne.s32.totalorder %s448, %s462
      %p464 = scmp.eq.s32.totalorder %s45, 0
      %p465 = por %p463, %p464
      %s467 = sadd.s32 %s466, 1
      %p470 = scmp.eq.s32.totalorder %s39, 1
      %p471 = scmp.ne.s32.totalorder %s466, %s468
      %p472 = scmp.eq.s32.totalorder %s39, 0
      %p473 = por %p471, %p472
      %p474 = scmp.ne.s32.totalorder %s466, %s468
      %p475 = scmp.eq.s32.totalorder %s44, 1
      %p476 = por %p474, %p475
      %p477 = scmp.ne.s32.totalorder %s468, %s469
      %p478 = scmp.eq.s32.totalorder %s44, 0
      %p479 = por %p477, %p478
      %p480 = scmp.ne.s32.totalorder %s468, %s469
      %p481 = scmp.eq.s32.totalorder %s45, 1
      %p482 = por %p480, %p481
      %p484 = scmp.ne.s32.totalorder %s469, %s483
      %p485 = scmp.eq.s32.totalorder %s45, 0
      %p486 = por %p484, %p485
      %s488 = sadd.s32 %s487, 1
      %p491 = scmp.eq.s32.totalorder %s39, 1
      %p492 = scmp.ne.s32.totalorder %s487, %s489
      %p493 = scmp.eq.s32.totalorder %s39, 0
      %p494 = por %p492, %p493
      %p495 = scmp.ne.s32.totalorder %s487, %s489
      %p496 = scmp.eq.s32.totalorder %s44, 1
      %p497 = por %p495, %p496
      %p498 = scmp.ne.s32.totalorder %s489, %s490
      %p499 = scmp.eq.s32.totalorder %s44, 0
      %p500 = por %p498, %p499
      %p501 = scmp.ne.s32.totalorder %s489, %s490
      %p502 = scmp.eq.s32.totalorder %s45, 1
      %p503 = por %p501, %p502
      %p505 = scmp.ne.s32.totalorder %s490, %s504
      %p506 = scmp.eq.s32.totalorder %s45, 0
      %p507 = por %p505, %p506
      %s509 = sadd.s32 %s508, 1
      %p512 = scmp.eq.s32.totalorder %s39, 1
      %p513 = scmp.ne.s32.totalorder %s508, %s510
      %p514 = scmp.eq.s32.totalorder %s39, 0
      %p515 = por %p513, %p514
      %p516 = scmp.ne.s32.totalorder %s508, %s510
      %p517 = scmp.eq.s32.totalorder %s44, 1
      %p518 = por %p516, %p517
      %p519 = scmp.ne.s32.totalorder %s510, %s511
      %p520 = scmp.eq.s32.totalorder %s44, 0
      %p521 = por %p519, %p520
      %p522 = scmp.ne.s32.totalorder %s510, %s511
      %p523 = scmp.eq.s32.totalorder %s45, 1
      %p524 = por %p522, %p523
      %p526 = scmp.ne.s32.totalorder %s511, %s525
      %p527 = scmp.eq.s32.totalorder %s45, 0
      %p528 = por %p526, %p527
      %s529 = ssub.s32 %s39, %s46
      %p530 = scmp.eq.s32.totalorder %s529, 0
      %s532 = sadd.s32 %s531, 1
      %s533 = scalar_select %p530, %s531, %s532
      %p536 = pneg %p530
      %p537 = scmp.eq.s32.totalorder %s39, 1
      %p538 = por %p536, %p537
      %p539 = scmp.ne.s32.totalorder %s531, %s534
      %p540 = scmp.eq.s32.totalorder %s39, 0
      %p541 = por %p539, %p540
      %p542 = scmp.ne.s32.totalorder %s531, %s534
      %p543 = scmp.eq.s32.totalorder %s44, 1
      %p544 = por %p542, %p543
      %p545 = scmp.ne.s32.totalorder %s534, %s535
      %p546 = scmp.eq.s32.totalorder %s44, 0
      %p547 = por %p545, %p546
      %p548 = scmp.ne.s32.totalorder %s534, %s535
      %p549 = scmp.eq.s32.totalorder %s45, 1
      %p550 = por %p548, %p549
      %p552 = scmp.ne.s32.totalorder %s535, %s551
      %p553 = scmp.eq.s32.totalorder %s45, 0
      %p554 = por %p552, %p553
      %p555 = scmp.le.s32.totalorder 1, %s39
      %p556 = scmp.lt.s32.totalorder %s39, 3
      %p557 = pnand %p555, %p556
      %p558 = pneg %p557
      // Predicated region
      $region9: #{tpu_custom_call.1} parent=5 // pred_check
        _
      $region10: #{tpu_custom_call.1} parent=5 // pred_check_branch
        %560 = sbr.rel (%p557) target = $region12
      $region11: #{tpu_custom_call.1} parent=5 // pred_region
        %s561 = ssub.s32 %s39, 1
        // Predicated region
        $region13: #{tpu_custom_call.1} parent=11 // pred_check
          %p562 = pneg %p164
        $region14: #{tpu_custom_call.1} parent=11 // pred_check_branch
          %564 = sbr.rel (%p562) target = $region16
        $region15: #{tpu_custom_call.1} parent=11 // pred_region
          %566 = vsyncadd [#allocation5], 0
          %s567 = sshll.u32 %s4, 4
          %s568 = int_to_ptr.hbm [resolvable:$true] %s567
          %s569 = sshll.u32 [#allocation6], 4
          %s570 = int_to_ptr.vmem [resolvable:$true] %s569
          %575 = dma.hbm_to_vmem [thread:$0]  %s568, 4096, %s570, [#allocation5], 128, 128, 8
        $region16: #{tpu_custom_call.1} parent=11 // pred_fallthru
          _
        // Predicated region
        $region17: #{tpu_custom_call.1} parent=11 // pred_check
          %p576 = pneg %p185
        $region18: #{tpu_custom_call.1} parent=11 // pred_check_branch
          %578 = sbr.rel (%p576) target = $region20
        $region19: #{tpu_custom_call.1} parent=11 // pred_region
          %580 = vsyncadd [#allocation8], 0
          %s581 = sshll.u32 %s5, 4
          %s582 = int_to_ptr.hbm [resolvable:$true] %s581
          %s583 = sshll.u32 [#allocation7], 4
          %s584 = int_to_ptr.vmem [resolvable:$true] %s583
          %589 = dma.hbm_to_vmem [thread:$0]  %s582, 12288, %s584, [#allocation8], 384, 384, 24
        $region20: #{tpu_custom_call.1} parent=11 // pred_fallthru
          _
        // Predicated region
        $region21: #{tpu_custom_call.1} parent=11 // pred_check
          %p590 = pneg %p206
        $region22: #{tpu_custom_call.1} parent=11 // pred_check_branch
          %592 = sbr.rel (%p590) target = $region24
        $region23: #{tpu_custom_call.1} parent=11 // pred_region
          %594 = vsyncadd [#allocation8], 0
          %s596 = sshll.u32 %s6, 4
          %s597 = int_to_ptr.hbm [resolvable:$true] %s596
          %s598 = sshll.u32 [#allocation9], 4
          %s599 = int_to_ptr.vmem [resolvable:$true] %s598
          %601 = dma.hbm_to_vmem [thread:$0]  %s597, 96, %s599, [#allocation8]
        $region24: #{tpu_custom_call.1} parent=11 // pred_fallthru
          _
        // Predicated region
        $region25: #{tpu_custom_call.1} parent=11 // pred_check
          %p602 = pneg %p227
        $region26: #{tpu_custom_call.1} parent=11 // pred_check_branch
          %604 = sbr.rel (%p602) target = $region28
        $region27: #{tpu_custom_call.1} parent=11 // pred_region
          %606 = vsyncadd [#allocation11], 0
          %s607 = sshll.u32 %s7, 4
          %s608 = int_to_ptr.hbm [resolvable:$true] %s607
          %s609 = sshll.u32 [#allocation10], 4
          %s610 = int_to_ptr.vmem [resolvable:$true] %s609
          %615 = dma.hbm_to_vmem [thread:$0]  %s608, 4096, %s610, [#allocation11], 128, 128, 8
        $region28: #{tpu_custom_call.1} parent=11 // pred_fallthru
          _
        // Predicated region
        $region29: #{tpu_custom_call.1} parent=11 // pred_check
          %p616 = pneg %p248
        $region30: #{tpu_custom_call.1} parent=11 // pred_check_branch
          %618 = sbr.rel (%p616) target = $region32
        $region31: #{tpu_custom_call.1} parent=11 // pred_region
          _
        $region32: #{tpu_custom_call.1} parent=11 // pred_fallthru
          _
        // Predicated region
        $region33: #{tpu_custom_call.1} parent=11 // pred_check
          %p619 = pneg %p269
        $region34: #{tpu_custom_call.1} parent=11 // pred_check_branch
          %621 = sbr.rel (%p619) target = $region36
        $region35: #{tpu_custom_call.1} parent=11 // pred_region
          %623 = vsyncadd [#allocation11], 0
          %s625 = sshll.u32 %s9, 4
          %s626 = int_to_ptr.hbm [resolvable:$true] %s625
          %s627 = sshll.u32 [#allocation12], 4
          %s628 = int_to_ptr.vmem [resolvable:$true] %s627
          %630 = dma.hbm_to_vmem [thread:$0]  %s626, 32, %s628, [#allocation11]
        $region36: #{tpu_custom_call.1} parent=11 // pred_fallthru
          _
        // Predicated region
        $region37: #{tpu_custom_call.1} parent=11 // pred_check
          %p631 = pneg %p290
        $region38: #{tpu_custom_call.1} parent=11 // pred_check_branch
          %633 = sbr.rel (%p631) target = $region40
        $region39: #{tpu_custom_call.1} parent=11 // pred_region
          _
        $region40: #{tpu_custom_call.1} parent=11 // pred_fallthru
          _
        // Predicated region
        $region41: #{tpu_custom_call.1} parent=11 // pred_check
          %p634 = pneg %p311
        $region42: #{tpu_custom_call.1} parent=11 // pred_check_branch
          %636 = sbr.rel (%p634) target = $region44
        $region43: #{tpu_custom_call.1} parent=11 // pred_region
          %638 = vsyncadd [#allocation14], 0
          %s639 = sshll.u32 %s11, 4
          %s640 = int_to_ptr.hbm [resolvable:$true] %s639
          %s641 = sshll.u32 [#allocation13], 4
          %s642 = int_to_ptr.vmem [resolvable:$true] %s641
          %647 = dma.hbm_to_vmem [thread:$0]  %s640, 8192, %s642, [#allocation14], 256, 256, 16
        $region44: #{tpu_custom_call.1} parent=11 // pred_fallthru
          _
        // Predicated region
        $region45: #{tpu_custom_call.1} parent=11 // pred_check
          %p648 = pneg %p332
        $region46: #{tpu_custom_call.1} parent=11 // pred_check_branch
          %650 = sbr.rel (%p648) target = $region48
        $region47: #{tpu_custom_call.1} parent=11 // pred_region
          _
        $region48: #{tpu_custom_call.1} parent=11 // pred_fallthru
          _
        // Predicated region
        $region49: #{tpu_custom_call.1} parent=11 // pred_check
          %p651 = pneg %p353
        $region50: #{tpu_custom_call.1} parent=11 // pred_check_branch
          %653 = sbr.rel (%p651) target = $region52
        $region51: #{tpu_custom_call.1} parent=11 // pred_region
          %655 = vsyncadd [#allocation14], 0
          %s656 = sshll.u32 %s13, 4
          %s657 = int_to_ptr.hbm [resolvable:$true] %s656
          %s658 = sshll.u32 [#allocation15], 4
          %s659 = int_to_ptr.vmem [resolvable:$true] %s658
          %664 = dma.hbm_to_vmem [thread:$0]  %s657, 8192, %s659, [#allocation14], 128, 128, 8
        $region52: #{tpu_custom_call.1} parent=11 // pred_fallthru
          _
        // Predicated region
        $region53: #{tpu_custom_call.1} parent=11 // pred_check
          %p665 = pneg %p374
        $region54: #{tpu_custom_call.1} parent=11 // pred_check_branch
          %667 = sbr.rel (%p665) target = $region56
        $region55: #{tpu_custom_call.1} parent=11 // pred_region
          _
        $region56: #{tpu_custom_call.1} parent=11 // pred_fallthru
          _
        // Predicated region
        $region57: #{tpu_custom_call.1} parent=11 // pred_check
          %p668 = pneg %p395
        $region58: #{tpu_custom_call.1} parent=11 // pred_check_branch
          %670 = sbr.rel (%p668) target = $region60
        $region59: #{tpu_custom_call.1} parent=11 // pred_region
          _
        $region60: #{tpu_custom_call.1} parent=11 // pred_fallthru
          _
        // Predicated region
        $region61: #{tpu_custom_call.1} parent=11 // pred_check
          %p671 = pneg %p416
        $region62: #{tpu_custom_call.1} parent=11 // pred_check_branch
          %673 = sbr.rel (%p671) target = $region64
        $region63: #{tpu_custom_call.1} parent=11 // pred_region
          _
        $region64: #{tpu_custom_call.1} parent=11 // pred_fallthru
          _
        // Predicated region
        $region65: #{tpu_custom_call.1} parent=11 // pred_check
          %p674 = pneg %p437
        $region66: #{tpu_custom_call.1} parent=11 // pred_check_branch
          %676 = sbr.rel (%p674) target = $region68
        $region67: #{tpu_custom_call.1} parent=11 // pred_region
          %678 = vsyncadd [#allocation17], 0
          %s680 = sshll.u32 %s17, 4
          %s681 = int_to_ptr.hbm [resolvable:$true] %s680
          %s682 = sshll.u32 [#allocation16], 4
          %s683 = int_to_ptr.vmem [resolvable:$true] %s682
          %685 = dma.hbm_to_vmem [thread:$0]  %s681, 32, %s683, [#allocation17]
        $region68: #{tpu_custom_call.1} parent=11 // pred_fallthru
          _
        // Predicated region
        $region69: #{tpu_custom_call.1} parent=11 // pred_check
          %p686 = pneg %p458
        $region70: #{tpu_custom_call.1} parent=11 // pred_check_branch
          %688 = sbr.rel (%p686) target = $region72
        $region71: #{tpu_custom_call.1} parent=11 // pred_region
          _
        $region72: #{tpu_custom_call.1} parent=11 // pred_fallthru
          _
        // Predicated region
        $region73: #{tpu_custom_call.1} parent=11 // pred_check
          %p689 = pneg %p479
        $region74: #{tpu_custom_call.1} parent=11 // pred_check_branch
          %691 = sbr.rel (%p689) target = $region76
        $region75: #{tpu_custom_call.1} parent=11 // pred_region
          %693 = vsyncadd [#allocation17], 0
          %s694 = sshll.u32 %s19, 4
          %s695 = int_to_ptr.hbm [resolvable:$true] %s694
          %s696 = sshll.u32 [#allocation18], 4
          %s697 = int_to_ptr.vmem [resolvable:$true] %s696
          %702 = dma.hbm_to_vmem [thread:$0]  %s695, 16384, %s697, [#allocation17], 128, 128, 8
        $region76: #{tpu_custom_call.1} parent=11 // pred_fallthru
          _
        // Predicated region
        $region77: #{tpu_custom_call.1} parent=11 // pred_check
          %p703 = pneg %p500
        $region78: #{tpu_custom_call.1} parent=11 // pred_check_branch
          %705 = sbr.rel (%p703) target = $region80
        $region79: #{tpu_custom_call.1} parent=11 // pred_region
          _
        $region80: #{tpu_custom_call.1} parent=11 // pred_fallthru
          _
        // Predicated region
        $region81: #{tpu_custom_call.1} parent=11 // pred_check
          %p706 = pneg %p521
        $region82: #{tpu_custom_call.1} parent=11 // pred_check_branch
          %708 = sbr.rel (%p706) target = $region84
        $region83: #{tpu_custom_call.1} parent=11 // pred_region
          %710 = vsyncadd [#allocation20], 0
          %s711 = sshll.u32 %s21, 4
          %s712 = int_to_ptr.hbm [resolvable:$true] %s711
          %s713 = sshll.u32 [#allocation19], 4
          %s714 = int_to_ptr.vmem [resolvable:$true] %s713
          %719 = dma.hbm_to_vmem [thread:$0]  %s712, 4096, %s714, [#allocation20], 128, 128, 8
        $region84: #{tpu_custom_call.1} parent=11 // pred_fallthru
          _
      $region12: #{tpu_custom_call.1} parent=5 // pred_fallthru
        _
      %p720 = scmp.lt.s32.totalorder %s39, 2
      // Predicated region
      $region85: #{tpu_custom_call.1} parent=5 // pred_check
        %p721 = pneg %p720
      $region86: #{tpu_custom_call.1} parent=5 // pred_check_branch
        %723 = sbr.rel (%p721) target = $region88
      $region87: #{tpu_custom_call.1} parent=5 // pred_region
        // Predicated region
        $region89: #{tpu_custom_call.1} parent=87 // pred_check
          %p724 = pneg %p59
        $region90: #{tpu_custom_call.1} parent=87 // pred_check_branch
          %726 = sbr.rel (%p724) target = $region92
        $region91: #{tpu_custom_call.1} parent=87 // pred_region
          %s727 = sand.u32 %s49, 1
          %s728 = scalar_lea.sflag [#allocation3], %s727
          %s729 = sand.u32 %s49, 1
          %s730 = smul.addr %s729, 16
          %s731 = scalar_lea.vmem [#allocation2], %s730
          %733 = vsyncadd %s728, 0
          %s734 = smul.addr %s39, 4
          %s735 = smul.addr %s734, 4
          %s736 = scalar_lea.hbm %s0, %s735
          %s737 = sshll.u32 %s736, 4
          %s738 = int_to_ptr.hbm [resolvable:$true] %s737
          %s739 = sshll.u32 %s731, 4
          %s740 = int_to_ptr.vmem [resolvable:$true] %s739
          %745 = dma.hbm_to_vmem [thread:$0]  %s738, 256, %s740, %s728, 128, 128, 8
        $region92: #{tpu_custom_call.1} parent=87 // pred_fallthru
          _
        // Predicated region
        $region93: #{tpu_custom_call.1} parent=87 // pred_check
          %p746 = pneg %p85
        $region94: #{tpu_custom_call.1} parent=87 // pred_check_branch
          %748 = sbr.rel (%p746) target = $region96
        $region95: #{tpu_custom_call.1} parent=87 // pred_region
          %p749 = scmp.lt.s32.totalorder %s39, 1
          %s750 = scalar_select %p749, %s39, 1
          %s751 = scalar_lea.vmem %s1, %s750
        $region96: #{tpu_custom_call.1} parent=87 // pred_fallthru
          _
        // Predicated region
        $region97: #{tpu_custom_call.1} parent=87 // pred_check
          %p752 = pneg %p111
        $region98: #{tpu_custom_call.1} parent=87 // pred_check_branch
          %754 = sbr.rel (%p752) target = $region100
        $region99: #{tpu_custom_call.1} parent=87 // pred_region
          %s755 = sand.u32 %s39, 1
          %s756 = scalar_lea.sflag [#allocation5], %s755
          %s757 = sand.u32 %s101, 1
          %s758 = scalar_lea.vmem [#allocation4], %s757
          %760 = vsyncadd %s756, 0
          %s761 = scalar_lea.hbm %s2, %s39
          %s763 = sshll.u32 %s761, 4
          %s764 = int_to_ptr.hbm [resolvable:$true] %s763
          %s765 = sshll.u32 %s758, 4
          %s766 = int_to_ptr.vmem [resolvable:$true] %s765
          %768 = dma.hbm_to_vmem [thread:$0]  %s764, 16, %s766, %s756
        $region100: #{tpu_custom_call.1} parent=87 // pred_fallthru
          _
        // Predicated region
        $region101: #{tpu_custom_call.1} parent=87 // pred_check
          %p769 = pneg %p137
        $region102: #{tpu_custom_call.1} parent=87 // pred_check_branch
          %771 = sbr.rel (%p769) target = $region104
        $region103: #{tpu_custom_call.1} parent=87 // pred_region
          %p772 = scmp.lt.s32.totalorder %s39, 1
          %s773 = scalar_select %p772, %s39, 1
          %s774 = scalar_lea.vmem %s3, %s773
        $region104: #{tpu_custom_call.1} parent=87 // pred_fallthru
          _
      $region88: #{tpu_custom_call.1} parent=5 // pred_fallthru
        _
      %p775 = scmp.le.s32.totalorder 1, %s39
      %p776 = scmp.lt.s32.totalorder %s39, 3
      %p777 = pnand %p775, %p776
      %p778 = pneg %p777
      // Predicated region
      $region105: #{tpu_custom_call.1} parent=5 // pred_check
        _
      $region106: #{tpu_custom_call.1} parent=5 // pred_check_branch
        %780 = sbr.rel (%p777) target = $region108
      $region107: #{tpu_custom_call.1} parent=5 // pred_region
        %s781 = ssub.s32 %s39, 1
        %s782 = sand.u32 %s52, 1
        %s783 = scalar_lea.sflag [#allocation3], %s782
        %s784 = sand.u32 %s52, 1
        %s785 = smul.addr %s784, 16
        %s786 = scalar_lea.vmem [#allocation2], %s785
        // Predicated region
        $region109: #{tpu_custom_call.1} parent=107 // pred_check
          %p787 = pneg %p65
        $region110: #{tpu_custom_call.1} parent=107 // pred_check_branch
          %789 = sbr.rel (%p787) target = $region112
        $region111: #{tpu_custom_call.1} parent=107 // pred_region
          %791 = dma.done %s783, 256
        $region112: #{tpu_custom_call.1} parent=107 // pred_fallthru
          _
        %s792 = sand.u32 %s44, 1
        %s793 = scalar_lea.sflag [#allocation5], %s792
        %s794 = sand.u32 %s104, 1
        %s795 = scalar_lea.vmem [#allocation4], %s794
        // Predicated region
        $region113: #{tpu_custom_call.1} parent=107 // pred_check
          %p796 = pneg %p117
        $region114: #{tpu_custom_call.1} parent=107 // pred_check_branch
          %798 = sbr.rel (%p796) target = $region116
        $region115: #{tpu_custom_call.1} parent=107 // pred_region
          %800 = dma.done %s793, 16
        $region116: #{tpu_custom_call.1} parent=107 // pred_fallthru
          _
        // Predicated region
        $region117: #{tpu_custom_call.1} parent=107 // pred_check
          %p801 = pneg %p164
        $region118: #{tpu_custom_call.1} parent=107 // pred_check_branch
          %803 = sbr.rel (%p801) target = $region120
        $region119: #{tpu_custom_call.1} parent=107 // pred_region
          %805 = dma.done [#allocation5], 4096
        $region120: #{tpu_custom_call.1} parent=107 // pred_fallthru
          _
        // Predicated region
        $region121: #{tpu_custom_call.1} parent=107 // pred_check
          %p806 = pneg %p185
        $region122: #{tpu_custom_call.1} parent=107 // pred_check_branch
          %808 = sbr.rel (%p806) target = $region124
        $region123: #{tpu_custom_call.1} parent=107 // pred_region
          %810 = dma.done [#allocation8], 12288
        $region124: #{tpu_custom_call.1} parent=107 // pred_fallthru
          _
        // Predicated region
        $region125: #{tpu_custom_call.1} parent=107 // pred_check
          %p811 = pneg %p206
        $region126: #{tpu_custom_call.1} parent=107 // pred_check_branch
          %813 = sbr.rel (%p811) target = $region128
        $region127: #{tpu_custom_call.1} parent=107 // pred_region
          %815 = dma.done [#allocation8], 96
        $region128: #{tpu_custom_call.1} parent=107 // pred_fallthru
          _
        // Predicated region
        $region129: #{tpu_custom_call.1} parent=107 // pred_check
          %p816 = pneg %p227
        $region130: #{tpu_custom_call.1} parent=107 // pred_check_branch
          %818 = sbr.rel (%p816) target = $region132
        $region131: #{tpu_custom_call.1} parent=107 // pred_region
          %820 = dma.done [#allocation11], 4096
        $region132: #{tpu_custom_call.1} parent=107 // pred_fallthru
          _
        // Predicated region
        $region133: #{tpu_custom_call.1} parent=107 // pred_check
          %p821 = pneg %p269
        $region134: #{tpu_custom_call.1} parent=107 // pred_check_branch
          %823 = sbr.rel (%p821) target = $region136
        $region135: #{tpu_custom_call.1} parent=107 // pred_region
          %825 = dma.done [#allocation11], 32
        $region136: #{tpu_custom_call.1} parent=107 // pred_fallthru
          _
        // Predicated region
        $region137: #{tpu_custom_call.1} parent=107 // pred_check
          %p826 = pneg %p311
        $region138: #{tpu_custom_call.1} parent=107 // pred_check_branch
          %828 = sbr.rel (%p826) target = $region140
        $region139: #{tpu_custom_call.1} parent=107 // pred_region
          %830 = dma.done [#allocation14], 8192
        $region140: #{tpu_custom_call.1} parent=107 // pred_fallthru
          _
        // Predicated region
        $region141: #{tpu_custom_call.1} parent=107 // pred_check
          %p831 = pneg %p353
        $region142: #{tpu_custom_call.1} parent=107 // pred_check_branch
          %833 = sbr.rel (%p831) target = $region144
        $region143: #{tpu_custom_call.1} parent=107 // pred_region
          %835 = dma.done [#allocation14], 8192
        $region144: #{tpu_custom_call.1} parent=107 // pred_fallthru
          _
        // Predicated region
        $region145: #{tpu_custom_call.1} parent=107 // pred_check
          %p836 = pneg %p437
        $region146: #{tpu_custom_call.1} parent=107 // pred_check_branch
          %838 = sbr.rel (%p836) target = $region148
        $region147: #{tpu_custom_call.1} parent=107 // pred_region
          %840 = dma.done [#allocation17], 32
        $region148: #{tpu_custom_call.1} parent=107 // pred_fallthru
          _
        // Predicated region
        $region149: #{tpu_custom_call.1} parent=107 // pred_check
          %p841 = pneg %p479
        $region150: #{tpu_custom_call.1} parent=107 // pred_check_branch
          %843 = sbr.rel (%p841) target = $region152
        $region151: #{tpu_custom_call.1} parent=107 // pred_region
          %845 = dma.done [#allocation17], 16384
        $region152: #{tpu_custom_call.1} parent=107 // pred_fallthru
          _
        // Predicated region
        $region153: #{tpu_custom_call.1} parent=107 // pred_check
          %p846 = pneg %p521
        $region154: #{tpu_custom_call.1} parent=107 // pred_check_branch
          %848 = sbr.rel (%p846) target = $region156
        $region155: #{tpu_custom_call.1} parent=107 // pred_region
          %850 = dma.done [#allocation20], 4096
        $region156: #{tpu_custom_call.1} parent=107 // pred_fallthru
          _
        %s851 = sand.u32 %s52, 1
        %s852 = scalar_lea.sflag [#allocation3], %s851
        %s853 = sand.u32 %s52, 1
        %s854 = smul.addr %s853, 16
        %s855 = scalar_lea.vmem [#allocation2], %s854
        %p856 = pneg %p65
        %p857 = pneg %p62
        %p858 = scmp.lt.s32.totalorder %s44, 1
        %s859 = scalar_select %p858, %s44, 1
        %s860 = scalar_lea.vmem %s1, %s859
        %p861 = pneg %p91
        %p862 = pneg %p88
        %s863 = sand.u32 %s44, 1
        %s864 = scalar_lea.sflag [#allocation5], %s863
        %s865 = sand.u32 %s104, 1
        %s866 = scalar_lea.vmem [#allocation4], %s865
        %p867 = pneg %p117
        %p868 = pneg %p114
        %p869 = scmp.lt.s32.totalorder %s44, 1
        %s870 = scalar_select %p869, %s44, 1
        %s871 = scalar_lea.vmem %s3, %s870
        %p872 = pneg %p143
        %p873 = pneg %p140
        %p874 = pneg %p164
        %p875 = pneg %p161
        %p876 = pneg %p185
        %p877 = pneg %p182
        %p878 = pneg %p206
        %p879 = pneg %p203
        %p880 = pneg %p227
        %p881 = pneg %p224
        %p882 = pneg %p248
        %p883 = pneg %p245
        %p884 = pneg %p269
        %p885 = pneg %p266
        %p886 = pneg %p290
        %p887 = pneg %p287
        %p888 = pneg %p311
        %p889 = pneg %p308
        %p890 = pneg %p332
        %p891 = pneg %p329
        %p892 = pneg %p353
        %p893 = pneg %p350
        %p894 = pneg %p374
        %p895 = pneg %p371
        %p896 = pneg %p395
        %p897 = pneg %p392
        %p898 = pneg %p416
        %p899 = pneg %p413
        %p900 = pneg %p437
        %p901 = pneg %p434
        %p902 = pneg %p458
        %p903 = pneg %p455
        %p904 = pneg %p479
        %p905 = pneg %p476
        %p906 = pneg %p500
        %p907 = pneg %p497
        %p908 = pneg %p521
        %p909 = pneg %p518
        %p910 = pneg %p547
        %p911 = pneg %p544
        %p912 = scmp.lt.s32.totalorder %s44, 1
        %s913 = scalar_select %p912, %s44, 1
        %s914 = smul.addr %s913, 2
        %s915 = scalar_lea.vmem %s22, %s914
        %p916 = scmp.lt.s32.totalorder %s44, 1
        %s917 = scalar_select %p916, %s44, 1
        %s918 = scalar_lea.vmem %s1, %s917
        %p919 = scmp.lt.s32.totalorder %s44, 1
        %s920 = scalar_select %p919, %s44, 1
        %s921 = scalar_lea.vmem %s3, %s920
        %p922 = scmp.lt.s32.totalorder %s44, 1
        %s923 = scalar_select %p922, %s44, 1
        %s924 = smul.addr %s923, 2
        %s925 = scalar_lea.vmem %s22, %s924
        %v927 = vld [vmem:[%s786] sm:$0xff]
        %v928 = vld [vmem:[%s786 + $0x8] sm:$0xff]
        %v929 = vld [vmem:[#allocation6] sm:$0xff]
        %v930 = vld [vmem:[#allocation6 + $0x8] sm:$0xff]
        %v931 = vld [vmem:[#allocation6 + $0x10] sm:$0xff]
        %v932 = vld [vmem:[#allocation6 + $0x18] sm:$0xff]
        %v933 = vld [vmem:[#allocation6 + $0x20] sm:$0xff]
        %v934 = vld [vmem:[#allocation6 + $0x28] sm:$0xff]
        %v935 = vld [vmem:[#allocation6 + $0x30] sm:$0xff]
        %v936 = vld [vmem:[#allocation6 + $0x38] sm:$0xff]
        %v937 = vld [vmem:[#allocation6 + $0x40] sm:$0xff]
        %v938 = vld [vmem:[#allocation6 + $0x48] sm:$0xff]
        %v939 = vld [vmem:[#allocation6 + $0x50] sm:$0xff]
        %v940 = vld [vmem:[#allocation6 + $0x58] sm:$0xff]
        %v941 = vld [vmem:[#allocation6 + $0x60] sm:$0xff]
        %v942 = vld [vmem:[#allocation6 + $0x68] sm:$0xff]
        %v943 = vld [vmem:[#allocation6 + $0x70] sm:$0xff]
        %v944 = vld [vmem:[#allocation6 + $0x78] sm:$0xff]
        %v945 = vld [vmem:[#allocation6 + $0x80] sm:$0xff]
        %v946 = vld [vmem:[#allocation6 + $0x88] sm:$0xff]
        %v947 = vld [vmem:[#allocation6 + $0x90] sm:$0xff]
        %v948 = vld [vmem:[#allocation6 + $0x98] sm:$0xff]
        %v949 = vld [vmem:[#allocation6 + $0xa0] sm:$0xff]
        %v950 = vld [vmem:[#allocation6 + $0xa8] sm:$0xff]
        %v951 = vld [vmem:[#allocation6 + $0xb0] sm:$0xff]
        %v952 = vld [vmem:[#allocation6 + $0xb8] sm:$0xff]
        %v953 = vld [vmem:[#allocation6 + $0xc0] sm:$0xff]
        %v954 = vld [vmem:[#allocation6 + $0xc8] sm:$0xff]
        %v955 = vld [vmem:[#allocation6 + $0xd0] sm:$0xff]
        %v956 = vld [vmem:[#allocation6 + $0xd8] sm:$0xff]
        %v957 = vld [vmem:[#allocation6 + $0xe0] sm:$0xff]
        %v958 = vld [vmem:[#allocation6 + $0xe8] sm:$0xff]
        %v959 = vld [vmem:[#allocation6 + $0xf0] sm:$0xff]
        %v960 = vld [vmem:[#allocation6 + $0xf8] sm:$0xff]
        %v963 = vunpack.c.l.b16 %v927
        %v964 = vunpack.c.h.b16 %v927
        %v965 = vunpack.c.l.b16 %v928
        %v966 = vunpack.c.h.b16 %v928
        %v967 = vpack.c.b16 %v965, %v963
        %v968 = vpack.c.b16 %v966, %v964
        %v1003 = vunpack.c.l.b16 %v929
        %v1004 = vunpack.c.h.b16 %v929
        %v1005 = vunpack.c.l.b16 %v930
        %v1006 = vunpack.c.h.b16 %v930
        %v1007 = vunpack.c.l.b16 %v931
        %v1008 = vunpack.c.h.b16 %v931
        %v1009 = vunpack.c.l.b16 %v932
        %v1010 = vunpack.c.h.b16 %v932
        %v1011 = vunpack.c.l.b16 %v933
        %v1012 = vunpack.c.h.b16 %v933
        %v1013 = vunpack.c.l.b16 %v934
        %v1014 = vunpack.c.h.b16 %v934
        %v1015 = vunpack.c.l.b16 %v935
        %v1016 = vunpack.c.h.b16 %v935
        %v1017 = vunpack.c.l.b16 %v936
        %v1018 = vunpack.c.h.b16 %v936
        %v1019 = vunpack.c.l.b16 %v937
        %v1020 = vunpack.c.h.b16 %v937
        %v1021 = vunpack.c.l.b16 %v938
        %v1022 = vunpack.c.h.b16 %v938
        %v1023 = vunpack.c.l.b16 %v939
        %v1024 = vunpack.c.h.b16 %v939
        %v1025 = vunpack.c.l.b16 %v940
        %v1026 = vunpack.c.h.b16 %v940
        %v1027 = vunpack.c.l.b16 %v941
        %v1028 = vunpack.c.h.b16 %v941
        %v1029 = vunpack.c.l.b16 %v942
        %v1030 = vunpack.c.h.b16 %v942
        %v1031 = vunpack.c.l.b16 %v943
        %v1032 = vunpack.c.h.b16 %v943
        %v1033 = vunpack.c.l.b16 %v944
        %v1034 = vunpack.c.h.b16 %v944
        %v1035 = vunpack.c.l.b16 %v945
        %v1036 = vunpack.c.h.b16 %v945
        %v1037 = vunpack.c.l.b16 %v946
        %v1038 = vunpack.c.h.b16 %v946
        %v1039 = vunpack.c.l.b16 %v947
        %v1040 = vunpack.c.h.b16 %v947
        %v1041 = vunpack.c.l.b16 %v948
        %v1042 = vunpack.c.h.b16 %v948
        %v1043 = vunpack.c.l.b16 %v949
        %v1044 = vunpack.c.h.b16 %v949
        %v1045 = vunpack.c.l.b16 %v950
        %v1046 = vunpack.c.h.b16 %v950
        %v1047 = vunpack.c.l.b16 %v951
        %v1048 = vunpack.c.h.b16 %v951
        %v1049 = vunpack.c.l.b16 %v952
        %v1050 = vunpack.c.h.b16 %v952
        %v1051 = vunpack.c.l.b16 %v953
        %v1052 = vunpack.c.h.b16 %v953
        %v1053 = vunpack.c.l.b16 %v954
        %v1054 = vunpack.c.h.b16 %v954
        %v1055 = vunpack.c.l.b16 %v955
        %v1056 = vunpack.c.h.b16 %v955
        %v1057 = vunpack.c.l.b16 %v956
        %v1058 = vunpack.c.h.b16 %v956
        %v1059 = vunpack.c.l.b16 %v957
        %v1060 = vunpack.c.h.b16 %v957
        %v1061 = vunpack.c.l.b16 %v958
        %v1062 = vunpack.c.h.b16 %v958
        %v1063 = vunpack.c.l.b16 %v959
        %v1064 = vunpack.c.h.b16 %v959
        %v1065 = vunpack.c.l.b16 %v960
        %v1066 = vunpack.c.h.b16 %v960
        %v1067 = vpack.c.b16 %v1005, %v1003
        %v1068 = vpack.c.b16 %v1006, %v1004
        %v1069 = vpack.c.b16 %v1009, %v1007
        %v1070 = vpack.c.b16 %v1010, %v1008
        %v1071 = vpack.c.b16 %v1013, %v1011
        %v1072 = vpack.c.b16 %v1014, %v1012
        %v1073 = vpack.c.b16 %v1017, %v1015
        %v1074 = vpack.c.b16 %v1018, %v1016
        %v1075 = vpack.c.b16 %v1021, %v1019
        %v1076 = vpack.c.b16 %v1022, %v1020
        %v1077 = vpack.c.b16 %v1025, %v1023
        %v1078 = vpack.c.b16 %v1026, %v1024
        %v1079 = vpack.c.b16 %v1029, %v1027
        %v1080 = vpack.c.b16 %v1030, %v1028
        %v1081 = vpack.c.b16 %v1033, %v1031
        %v1082 = vpack.c.b16 %v1034, %v1032
        %v1083 = vpack.c.b16 %v1037, %v1035
        %v1084 = vpack.c.b16 %v1038, %v1036
        %v1085 = vpack.c.b16 %v1041, %v1039
        %v1086 = vpack.c.b16 %v1042, %v1040
        %v1087 = vpack.c.b16 %v1045, %v1043
        %v1088 = vpack.c.b16 %v1046, %v1044
        %v1089 = vpack.c.b16 %v1049, %v1047
        %v1090 = vpack.c.b16 %v1050, %v1048
        %v1091 = vpack.c.b16 %v1053, %v1051
        %v1092 = vpack.c.b16 %v1054, %v1052
        %v1093 = vpack.c.b16 %v1057, %v1055
        %v1094 = vpack.c.b16 %v1058, %v1056
        %v1095 = vpack.c.b16 %v1061, %v1059
        %v1096 = vpack.c.b16 %v1062, %v1060
        %v1097 = vpack.c.b16 %v1065, %v1063
        %v1098 = vpack.c.b16 %v1066, %v1064
        %1131 = vmatpush.bf16.msra.mxu0 %v1081
        %1132 = vmatpush.bf16.msra.mxu0 %v1079
        %1133 = vmatpush.bf16.msra.mxu0 %v1077
        %1134 = vmatpush.bf16.msra.mxu0 %v1075
        %1135 = vmatpush.bf16.msra.mxu0 %v1073
        %1136 = vmatpush.bf16.msra.mxu0 %v1071
        %1137 = vmatpush.bf16.msra.mxu0 %v1069
        %1138 = vmatpush.bf16.msra.mxu0 %v1067
        %1139 = vmatmul.bf16.gmra.mxu0 %v967
        %v1140 = vpop.f32.mrf.mxu0
        %v1141 = vadd.f32 0.0, %v1140
        %v1142 = vpop.f32.mrf.mxu0
        %v1143 = vadd.f32 0.0, %v1142
        %1144 = vdwg.mxu0
        %1145 = vmatpush.bf16.msra.mxu0 %v1097
        %1146 = vmatpush.bf16.msra.mxu0 %v1095
        %1147 = vmatpush.bf16.msra.mxu0 %v1093
        %1148 = vmatpush.bf16.msra.mxu0 %v1091
        %1149 = vmatpush.bf16.msra.mxu0 %v1089
        %1150 = vmatpush.bf16.msra.mxu0 %v1087
        %1151 = vmatpush.bf16.msra.mxu0 %v1085
        %1152 = vmatpush.bf16.msra.mxu0 %v1083
        %1153 = vmatmul.bf16.gmra.mxu0 %v968
        %v1154 = vpop.f32.mrf.mxu0
        %v1155 = vadd.f32 %v1141, %v1154
        %v1156 = vpop.f32.mrf.mxu0
        %v1157 = vadd.f32 %v1143, %v1156
        %1158 = vdwg.mxu0
        %1159 = vmatpush.bf16.msra.mxu0 %v1082
        %1160 = vmatpush.bf16.msra.mxu0 %v1080
        %1161 = vmatpush.bf16.msra.mxu0 %v1078
        %1162 = vmatpush.bf16.msra.mxu0 %v1076
        %1163 = vmatpush.bf16.msra.mxu0 %v1074
        %1164 = vmatpush.bf16.msra.mxu0 %v1072
        %1165 = vmatpush.bf16.msra.mxu0 %v1070
        %1166 = vmatpush.bf16.msra.mxu0 %v1068
        %1167 = vmatmul.bf16.gmra.mxu0 %v967
        %v1168 = vpop.f32.mrf.mxu0
        %v1169 = vadd.f32 0.0, %v1168
        %v1170 = vpop.f32.mrf.mxu0
        %v1171 = vadd.f32 0.0, %v1170
        %1172 = vdwg.mxu0
        %1173 = vmatpush.bf16.msra.mxu0 %v1098
        %1174 = vmatpush.bf16.msra.mxu0 %v1096
        %1175 = vmatpush.bf16.msra.mxu0 %v1094
        %1176 = vmatpush.bf16.msra.mxu0 %v1092
        %1177 = vmatpush.bf16.msra.mxu0 %v1090
        %1178 = vmatpush.bf16.msra.mxu0 %v1088
        %1179 = vmatpush.bf16.msra.mxu0 %v1086
        %1180 = vmatpush.bf16.msra.mxu0 %v1084
        %1181 = vmatmul.bf16.gmra.mxu0 %v968
        %v1182 = vpop.f32.mrf.mxu0
        %v1183 = vadd.f32 %v1169, %v1182
        %v1184 = vpop.f32.mrf.mxu0
        %v1185 = vadd.f32 %v1171, %v1184
        %1186 = vdwg.mxu0
        %v1187 = vld [vmem:[%s918] sm:$0x1]
        %vm1188 = vcmp.gt.f32.partialorder %v1187, 0.5
        %v1189 = vsel %vm1188, 0.0, -1e+09
        %v1190 = vpack.c.bf16 %v1157, %v1155
        %v1191 = vpack.c.bf16 %v1185, %v1183
        %v1192 = vld [vmem:[#allocation7] sm:$0xff]
        %v1193 = vld [vmem:[#allocation7 + $0x8] sm:$0xff]
        %v1194 = vld [vmem:[#allocation7 + $0x10] sm:$0xff]
        %v1195 = vld [vmem:[#allocation7 + $0x18] sm:$0xff]
        %v1196 = vld [vmem:[#allocation7 + $0x20] sm:$0xff]
        %v1197 = vld [vmem:[#allocation7 + $0x28] sm:$0xff]
        %v1198 = vld [vmem:[#allocation7 + $0x30] sm:$0xff]
        %v1199 = vld [vmem:[#allocation7 + $0x38] sm:$0xff]
        %v1200 = vld [vmem:[#allocation7 + $0x40] sm:$0xff]
        %v1201 = vld [vmem:[#allocation7 + $0x48] sm:$0xff]
        %v1202 = vld [vmem:[#allocation7 + $0x50] sm:$0xff]
        %v1203 = vld [vmem:[#allocation7 + $0x58] sm:$0xff]
        %v1204 = vld [vmem:[#allocation7 + $0x60] sm:$0xff]
        %v1205 = vld [vmem:[#allocation7 + $0x68] sm:$0xff]
        %v1206 = vld [vmem:[#allocation7 + $0x70] sm:$0xff]
        %v1207 = vld [vmem:[#allocation7 + $0x78] sm:$0xff]
        %v1208 = vld [vmem:[#allocation7 + $0x80] sm:$0xff]
        %v1209 = vld [vmem:[#allocation7 + $0x88] sm:$0xff]
        %v1210 = vld [vmem:[#allocation7 + $0x90] sm:$0xff]
        %v1211 = vld [vmem:[#allocation7 + $0x98] sm:$0xff]
        %v1212 = vld [vmem:[#allocation7 + $0xa0] sm:$0xff]
        %v1213 = vld [vmem:[#allocation7 + $0xa8] sm:$0xff]
        %v1214 = vld [vmem:[#allocation7 + $0xb0] sm:$0xff]
        %v1215 = vld [vmem:[#allocation7 + $0xb8] sm:$0xff]
        %v1216 = vld [vmem:[#allocation7 + $0xc0] sm:$0xff]
        %v1217 = vld [vmem:[#allocation7 + $0xc8] sm:$0xff]
        %v1218 = vld [vmem:[#allocation7 + $0xd0] sm:$0xff]
        %v1219 = vld [vmem:[#allocation7 + $0xd8] sm:$0xff]
        %v1220 = vld [vmem:[#allocation7 + $0xe0] sm:$0xff]
        %v1221 = vld [vmem:[#allocation7 + $0xe8] sm:$0xff]
        %v1222 = vld [vmem:[#allocation7 + $0xf0] sm:$0xff]
        %v1223 = vld [vmem:[#allocation7 + $0xf8] sm:$0xff]
        %v1224 = vld [vmem:[#allocation7 + $0x100] sm:$0xff]
        %v1225 = vld [vmem:[#allocation7 + $0x108] sm:$0xff]
        %v1226 = vld [vmem:[#allocation7 + $0x110] sm:$0xff]
        %v1227 = vld [vmem:[#allocation7 + $0x118] sm:$0xff]
        %v1228 = vld [vmem:[#allocation7 + $0x120] sm:$0xff]
        %v1229 = vld [vmem:[#allocation7 + $0x128] sm:$0xff]
        %v1230 = vld [vmem:[#allocation7 + $0x130] sm:$0xff]
        %v1231 = vld [vmem:[#allocation7 + $0x138] sm:$0xff]
        %v1232 = vld [vmem:[#allocation7 + $0x140] sm:$0xff]
        %v1233 = vld [vmem:[#allocation7 + $0x148] sm:$0xff]
        %v1234 = vld [vmem:[#allocation7 + $0x150] sm:$0xff]
        %v1235 = vld [vmem:[#allocation7 + $0x158] sm:$0xff]
        %v1236 = vld [vmem:[#allocation7 + $0x160] sm:$0xff]
        %v1237 = vld [vmem:[#allocation7 + $0x168] sm:$0xff]
        %v1238 = vld [vmem:[#allocation7 + $0x170] sm:$0xff]
        %v1239 = vld [vmem:[#allocation7 + $0x178] sm:$0xff]
        %v1240 = vld [vmem:[#allocation7 + $0x180] sm:$0xff]
        %v1241 = vld [vmem:[#allocation7 + $0x188] sm:$0xff]
        %v1242 = vld [vmem:[#allocation7 + $0x190] sm:$0xff]
        %v1243 = vld [vmem:[#allocation7 + $0x198] sm:$0xff]
        %v1244 = vld [vmem:[#allocation7 + $0x1a0] sm:$0xff]
        %v1245 = vld [vmem:[#allocation7 + $0x1a8] sm:$0xff]
        %v1246 = vld [vmem:[#allocation7 + $0x1b0] sm:$0xff]
        %v1247 = vld [vmem:[#allocation7 + $0x1b8] sm:$0xff]
        %v1248 = vld [vmem:[#allocation7 + $0x1c0] sm:$0xff]
        %v1249 = vld [vmem:[#allocation7 + $0x1c8] sm:$0xff]
        %v1250 = vld [vmem:[#allocation7 + $0x1d0] sm:$0xff]
        %v1251 = vld [vmem:[#allocation7 + $0x1d8] sm:$0xff]
        %v1252 = vld [vmem:[#allocation7 + $0x1e0] sm:$0xff]
        %v1253 = vld [vmem:[#allocation7 + $0x1e8] sm:$0xff]
        %v1254 = vld [vmem:[#allocation7 + $0x1f0] sm:$0xff]
        %v1255 = vld [vmem:[#allocation7 + $0x1f8] sm:$0xff]
        %v1256 = vld [vmem:[#allocation7 + $0x200] sm:$0xff]
        %v1257 = vld [vmem:[#allocation7 + $0x208] sm:$0xff]
        %v1258 = vld [vmem:[#allocation7 + $0x210] sm:$0xff]
        %v1259 = vld [vmem:[#allocation7 + $0x218] sm:$0xff]
        %v1260 = vld [vmem:[#allocation7 + $0x220] sm:$0xff]
        %v1261 = vld [vmem:[#allocation7 + $0x228] sm:$0xff]
        %v1262 = vld [vmem:[#allocation7 + $0x230] sm:$0xff]
        %v1263 = vld [vmem:[#allocation7 + $0x238] sm:$0xff]
        %v1264 = vld [vmem:[#allocation7 + $0x240] sm:$0xff]
        %v1265 = vld [vmem:[#allocation7 + $0x248] sm:$0xff]
        %v1266 = vld [vmem:[#allocation7 + $0x250] sm:$0xff]
        %v1267 = vld [vmem:[#allocation7 + $0x258] sm:$0xff]
        %v1268 = vld [vmem:[#allocation7 + $0x260] sm:$0xff]
        %v1269 = vld [vmem:[#allocation7 + $0x268] sm:$0xff]
        %v1270 = vld [vmem:[#allocation7 + $0x270] sm:$0xff]
        %v1271 = vld [vmem:[#allocation7 + $0x278] sm:$0xff]
        %v1272 = vld [vmem:[#allocation7 + $0x280] sm:$0xff]
        %v1273 = vld [vmem:[#allocation7 + $0x288] sm:$0xff]
        %v1274 = vld [vmem:[#allocation7 + $0x290] sm:$0xff]
        %v1275 = vld [vmem:[#allocation7 + $0x298] sm:$0xff]
        %v1276 = vld [vmem:[#allocation7 + $0x2a0] sm:$0xff]
        %v1277 = vld [vmem:[#allocation7 + $0x2a8] sm:$0xff]
        %v1278 = vld [vmem:[#allocation7 + $0x2b0] sm:$0xff]
        %v1279 = vld [vmem:[#allocation7 + $0x2b8] sm:$0xff]
        %v1280 = vld [vmem:[#allocation7 + $0x2c0] sm:$0xff]
        %v1281 = vld [vmem:[#allocation7 + $0x2c8] sm:$0xff]
        %v1282 = vld [vmem:[#allocation7 + $0x2d0] sm:$0xff]
        %v1283 = vld [vmem:[#allocation7 + $0x2d8] sm:$0xff]
        %v1284 = vld [vmem:[#allocation7 + $0x2e0] sm:$0xff]
        %v1285 = vld [vmem:[#allocation7 + $0x2e8] sm:$0xff]
        %v1286 = vld [vmem:[#allocation7 + $0x2f0] sm:$0xff]
        %v1287 = vld [vmem:[#allocation7 + $0x2f8] sm:$0xff]
        %v1288 = vld [vmem:[#allocation9] sm:$0x3f]
        %v1289 = vunpack.c.l.bf16 %v1288
        %v1290 = vunpack.c.h.bf16 %v1288
        %v1293 = vperm.slane %v1289, 0
        %v1294 = vperm.slane %v1289, 2
        %v1295 = vperm.slane %v1289, 4
        %v1296 = vperm.slane %v1289, 6
        %v1297 = vperm.slane %v1290, 0
        %v1298 = vperm.slane %v1290, 2
        %v1305 = vperm.slane %v1293, 0
        %v1306 = vperm.slane %v1294, 0
        %v1307 = vperm.slane %v1295, 0
        %v1308 = vperm.slane %v1296, 0
        %v1309 = vperm.slane %v1297, 0
        %v1310 = vperm.slane %v1298, 0
        %v1407 = vunpack.c.l.b16 %v1192
        %v1408 = vunpack.c.h.b16 %v1192
        %v1409 = vunpack.c.l.b16 %v1193
        %v1410 = vunpack.c.h.b16 %v1193
        %v1411 = vunpack.c.l.b16 %v1194
        %v1412 = vunpack.c.h.b16 %v1194
        %v1413 = vunpack.c.l.b16 %v1195
        %v1414 = vunpack.c.h.b16 %v1195
        %v1415 = vunpack.c.l.b16 %v1196
        %v1416 = vunpack.c.h.b16 %v1196
        %v1417 = vunpack.c.l.b16 %v1197
        %v1418 = vunpack.c.h.b16 %v1197
        %v1419 = vunpack.c.l.b16 %v1198
        %v1420 = vunpack.c.h.b16 %v1198
        %v1421 = vunpack.c.l.b16 %v1199
        %v1422 = vunpack.c.h.b16 %v1199
        %v1423 = vunpack.c.l.b16 %v1200
        %v1424 = vunpack.c.h.b16 %v1200
        %v1425 = vunpack.c.l.b16 %v1201
        %v1426 = vunpack.c.h.b16 %v1201
        %v1427 = vunpack.c.l.b16 %v1202
        %v1428 = vunpack.c.h.b16 %v1202
        %v1429 = vunpack.c.l.b16 %v1203
        %v1430 = vunpack.c.h.b16 %v1203
        %v1431 = vunpack.c.l.b16 %v1204
        %v1432 = vunpack.c.h.b16 %v1204
        %v1433 = vunpack.c.l.b16 %v1205
        %v1434 = vunpack.c.h.b16 %v1205
        %v1435 = vunpack.c.l.b16 %v1206
        %v1436 = vunpack.c.h.b16 %v1206
        %v1437 = vunpack.c.l.b16 %v1207
        %v1438 = vunpack.c.h.b16 %v1207
        %v1439 = vunpack.c.l.b16 %v1208
        %v1440 = vunpack.c.h.b16 %v1208
        %v1441 = vunpack.c.l.b16 %v1209
        %v1442 = vunpack.c.h.b16 %v1209
        %v1443 = vunpack.c.l.b16 %v1210
        %v1444 = vunpack.c.h.b16 %v1210
        %v1445 = vunpack.c.l.b16 %v1211
        %v1446 = vunpack.c.h.b16 %v1211
        %v1447 = vunpack.c.l.b16 %v1212
        %v1448 = vunpack.c.h.b16 %v1212
        %v1449 = vunpack.c.l.b16 %v1213
        %v1450 = vunpack.c.h.b16 %v1213
        %v1451 = vunpack.c.l.b16 %v1214
        %v1452 = vunpack.c.h.b16 %v1214
        %v1453 = vunpack.c.l.b16 %v1215
        %v1454 = vunpack.c.h.b16 %v1215
        %v1455 = vunpack.c.l.b16 %v1216
        %v1456 = vunpack.c.h.b16 %v1216
        %v1457 = vunpack.c.l.b16 %v1217
        %v1458 = vunpack.c.h.b16 %v1217
        %v1459 = vunpack.c.l.b16 %v1218
        %v1460 = vunpack.c.h.b16 %v1218
        %v1461 = vunpack.c.l.b16 %v1219
        %v1462 = vunpack.c.h.b16 %v1219
        %v1463 = vunpack.c.l.b16 %v1220
        %v1464 = vunpack.c.h.b16 %v1220
        %v1465 = vunpack.c.l.b16 %v1221
        %v1466 = vunpack.c.h.b16 %v1221
        %v1467 = vunpack.c.l.b16 %v1222
        %v1468 = vunpack.c.h.b16 %v1222
        %v1469 = vunpack.c.l.b16 %v1223
        %v1470 = vunpack.c.h.b16 %v1223
        %v1471 = vunpack.c.l.b16 %v1224
        %v1472 = vunpack.c.h.b16 %v1224
        %v1473 = vunpack.c.l.b16 %v1225
        %v1474 = vunpack.c.h.b16 %v1225
        %v1475 = vunpack.c.l.b16 %v1226
        %v1476 = vunpack.c.h.b16 %v1226
        %v1477 = vunpack.c.l.b16 %v1227
        %v1478 = vunpack.c.h.b16 %v1227
        %v1479 = vunpack.c.l.b16 %v1228
        %v1480 = vunpack.c.h.b16 %v1228
        %v1481 = vunpack.c.l.b16 %v1229
        %v1482 = vunpack.c.h.b16 %v1229
        %v1483 = vunpack.c.l.b16 %v1230
        %v1484 = vunpack.c.h.b16 %v1230
        %v1485 = vunpack.c.l.b16 %v1231
        %v1486 = vunpack.c.h.b16 %v1231
        %v1487 = vunpack.c.l.b16 %v1232
        %v1488 = vunpack.c.h.b16 %v1232
        %v1489 = vunpack.c.l.b16 %v1233
        %v1490 = vunpack.c.h.b16 %v1233
        %v1491 = vunpack.c.l.b16 %v1234
        %v1492 = vunpack.c.h.b16 %v1234
        %v1493 = vunpack.c.l.b16 %v1235
        %v1494 = vunpack.c.h.b16 %v1235
        %v1495 = vunpack.c.l.b16 %v1236
        %v1496 = vunpack.c.h.b16 %v1236
        %v1497 = vunpack.c.l.b16 %v1237
        %v1498 = vunpack.c.h.b16 %v1237
        %v1499 = vunpack.c.l.b16 %v1238
        %v1500 = vunpack.c.h.b16 %v1238
        %v1501 = vunpack.c.l.b16 %v1239
        %v1502 = vunpack.c.h.b16 %v1239
        %v1503 = vunpack.c.l.b16 %v1240
        %v1504 = vunpack.c.h.b16 %v1240
        %v1505 = vunpack.c.l.b16 %v1241
        %v1506 = vunpack.c.h.b16 %v1241
        %v1507 = vunpack.c.l.b16 %v1242
        %v1508 = vunpack.c.h.b16 %v1242
        %v1509 = vunpack.c.l.b16 %v1243
        %v1510 = vunpack.c.h.b16 %v1243
        %v1511 = vunpack.c.l.b16 %v1244
        %v1512 = vunpack.c.h.b16 %v1244
        %v1513 = vunpack.c.l.b16 %v1245
        %v1514 = vunpack.c.h.b16 %v1245
        %v1515 = vunpack.c.l.b16 %v1246
        %v1516 = vunpack.c.h.b16 %v1246
        %v1517 = vunpack.c.l.b16 %v1247
        %v1518 = vunpack.c.h.b16 %v1247
        %v1519 = vunpack.c.l.b16 %v1248
        %v1520 = vunpack.c.h.b16 %v1248
        %v1521 = vunpack.c.l.b16 %v1249
        %v1522 = vunpack.c.h.b16 %v1249
        %v1523 = vunpack.c.l.b16 %v1250
        %v1524 = vunpack.c.h.b16 %v1250
        %v1525 = vunpack.c.l.b16 %v1251
        %v1526 = vunpack.c.h.b16 %v1251
        %v1527 = vunpack.c.l.b16 %v1252
        %v1528 = vunpack.c.h.b16 %v1252
        %v1529 = vunpack.c.l.b16 %v1253
        %v1530 = vunpack.c.h.b16 %v1253
        %v1531 = vunpack.c.l.b16 %v1254
        %v1532 = vunpack.c.h.b16 %v1254
        %v1533 = vunpack.c.l.b16 %v1255
        %v1534 = vunpack.c.h.b16 %v1255
        %v1535 = vunpack.c.l.b16 %v1256
        %v1536 = vunpack.c.h.b16 %v1256
        %v1537 = vunpack.c.l.b16 %v1257
        %v1538 = vunpack.c.h.b16 %v1257
        %v1539 = vunpack.c.l.b16 %v1258
        %v1540 = vunpack.c.h.b16 %v1258
        %v1541 = vunpack.c.l.b16 %v1259
        %v1542 = vunpack.c.h.b16 %v1259
        %v1543 = vunpack.c.l.b16 %v1260
        %v1544 = vunpack.c.h.b16 %v1260
        %v1545 = vunpack.c.l.b16 %v1261
        %v1546 = vunpack.c.h.b16 %v1261
        %v1547 = vunpack.c.l.b16 %v1262
        %v1548 = vunpack.c.h.b16 %v1262
        %v1549 = vunpack.c.l.b16 %v1263
        %v1550 = vunpack.c.h.b16 %v1263
        %v1551 = vunpack.c.l.b16 %v1264
        %v1552 = vunpack.c.h.b16 %v1264
        %v1553 = vunpack.c.l.b16 %v1265
        %v1554 = vunpack.c.h.b16 %v1265
        %v1555 = vunpack.c.l.b16 %v1266
        %v1556 = vunpack.c.h.b16 %v1266
        %v1557 = vunpack.c.l.b16 %v1267
        %v1558 = vunpack.c.h.b16 %v1267
        %v1559 = vunpack.c.l.b16 %v1268
        %v1560 = vunpack.c.h.b16 %v1268
        %v1561 = vunpack.c.l.b16 %v1269
        %v1562 = vunpack.c.h.b16 %v1269
        %v1563 = vunpack.c.l.b16 %v1270
        %v1564 = vunpack.c.h.b16 %v1270
        %v1565 = vunpack.c.l.b16 %v1271
        %v1566 = vunpack.c.h.b16 %v1271
        %v1567 = vunpack.c.l.b16 %v1272
        %v1568 = vunpack.c.h.b16 %v1272
        %v1569 = vunpack.c.l.b16 %v1273
        %v1570 = vunpack.c.h.b16 %v1273
        %v1571 = vunpack.c.l.b16 %v1274
        %v1572 = vunpack.c.h.b16 %v1274
        %v1573 = vunpack.c.l.b16 %v1275
        %v1574 = vunpack.c.h.b16 %v1275
        %v1575 = vunpack.c.l.b16 %v1276
        %v1576 = vunpack.c.h.b16 %v1276
        %v1577 = vunpack.c.l.b16 %v1277
        %v1578 = vunpack.c.h.b16 %v1277
        %v1579 = vunpack.c.l.b16 %v1278
        %v1580 = vunpack.c.h.b16 %v1278
        %v1581 = vunpack.c.l.b16 %v1279
        %v1582 = vunpack.c.h.b16 %v1279
        %v1583 = vunpack.c.l.b16 %v1280
        %v1584 = vunpack.c.h.b16 %v1280
        %v1585 = vunpack.c.l.b16 %v1281
        %v1586 = vunpack.c.h.b16 %v1281
        %v1587 = vunpack.c.l.b16 %v1282
        %v1588 = vunpack.c.h.b16 %v1282
        %v1589 = vunpack.c.l.b16 %v1283
        %v1590 = vunpack.c.h.b16 %v1283
        %v1591 = vunpack.c.l.b16 %v1284
        %v1592 = vunpack.c.h.b16 %v1284
        %v1593 = vunpack.c.l.b16 %v1285
        %v1594 = vunpack.c.h.b16 %v1285
        %v1595 = vunpack.c.l.b16 %v1286
        %v1596 = vunpack.c.h.b16 %v1286
        %v1597 = vunpack.c.l.b16 %v1287
        %v1598 = vunpack.c.h.b16 %v1287
        %v1599 = vpack.c.b16 %v1413, %v1407
        %v1600 = vpack.c.b16 %v1414, %v1408
        %v1601 = vpack.c.b16 %v1415, %v1409
        %v1602 = vpack.c.b16 %v1416, %v1410
        %v1603 = vpack.c.b16 %v1417, %v1411
        %v1604 = vpack.c.b16 %v1418, %v1412
        %v1605 = vpack.c.b16 %v1425, %v1419
        %v1606 = vpack.c.b16 %v1426, %v1420
        %v1607 = vpack.c.b16 %v1427, %v1421
        %v1608 = vpack.c.b16 %v1428, %v1422
        %v1609 = vpack.c.b16 %v1429, %v1423
        %v1610 = vpack.c.b16 %v1430, %v1424
        %v1611 = vpack.c.b16 %v1437, %v1431
        %v1612 = vpack.c.b16 %v1438, %v1432
        %v1613 = vpack.c.b16 %v1439, %v1433
        %v1614 = vpack.c.b16 %v1440, %v1434
        %v1615 = vpack.c.b16 %v1441, %v1435
        %v1616 = vpack.c.b16 %v1442, %v1436
        %v1617 = vpack.c.b16 %v1449, %v1443
        %v1618 = vpack.c.b16 %v1450, %v1444
        %v1619 = vpack.c.b16 %v1451, %v1445
        %v1620 = vpack.c.b16 %v1452, %v1446
        %v1621 = vpack.c.b16 %v1453, %v1447
        %v1622 = vpack.c.b16 %v1454, %v1448
        %v1623 = vpack.c.b16 %v1461, %v1455
        %v1624 = vpack.c.b16 %v1462, %v1456
        %v1625 = vpack.c.b16 %v1463, %v1457
        %v1626 = vpack.c.b16 %v1464, %v1458
        %v1627 = vpack.c.b16 %v1465, %v1459
        %v1628 = vpack.c.b16 %v1466, %v1460
        %v1629 = vpack.c.b16 %v1473, %v1467
        %v1630 = vpack.c.b16 %v1474, %v1468
        %v1631 = vpack.c.b16 %v1475, %v1469
        %v1632 = vpack.c.b16 %v1476, %v1470
        %v1633 = vpack.c.b16 %v1477, %v1471
        %v1634 = vpack.c.b16 %v1478, %v1472
        %v1635 = vpack.c.b16 %v1485, %v1479
        %v1636 = vpack.c.b16 %v1486, %v1480
        %v1637 = vpack.c.b16 %v1487, %v1481
        %v1638 = vpack.c.b16 %v1488, %v1482
        %v1639 = vpack.c.b16 %v1489, %v1483
        %v1640 = vpack.c.b16 %v1490, %v1484
        %v1641 = vpack.c.b16 %v1497, %v1491
        %v1642 = vpack.c.b16 %v1498, %v1492
        %v1643 = vpack.c.b16 %v1499, %v1493
        %v1644 = vpack.c.b16 %v1500, %v1494
        %v1645 = vpack.c.b16 %v1501, %v1495
        %v1646 = vpack.c.b16 %v1502, %v1496
        %v1647 = vpack.c.b16 %v1509, %v1503
        %v1648 = vpack.c.b16 %v1510, %v1504
        %v1649 = vpack.c.b16 %v1511, %v1505
        %v1650 = vpack.c.b16 %v1512, %v1506
        %v1651 = vpack.c.b16 %v1513, %v1507
        %v1652 = vpack.c.b16 %v1514, %v1508
        %v1653 = vpack.c.b16 %v1521, %v1515
        %v1654 = vpack.c.b16 %v1522, %v1516
        %v1655 = vpack.c.b16 %v1523, %v1517
        %v1656 = vpack.c.b16 %v1524, %v1518
        %v1657 = vpack.c.b16 %v1525, %v1519
        %v1658 = vpack.c.b16 %v1526, %v1520
        %v1659 = vpack.c.b16 %v1533, %v1527
        %v1660 = vpack.c.b16 %v1534, %v1528
        %v1661 = vpack.c.b16 %v1535, %v1529
        %v1662 = vpack.c.b16 %v1536, %v1530
        %v1663 = vpack.c.b16 %v1537, %v1531
        %v1664 = vpack.c.b16 %v1538, %v1532
        %v1665 = vpack.c.b16 %v1545, %v1539
        %v1666 = vpack.c.b16 %v1546, %v1540
        %v1667 = vpack.c.b16 %v1547, %v1541
        %v1668 = vpack.c.b16 %v1548, %v1542
        %v1669 = vpack.c.b16 %v1549, %v1543
        %v1670 = vpack.c.b16 %v1550, %v1544
        %v1671 = vpack.c.b16 %v1557, %v1551
        %v1672 = vpack.c.b16 %v1558, %v1552
        %v1673 = vpack.c.b16 %v1559, %v1553
        %v1674 = vpack.c.b16 %v1560, %v1554
        %v1675 = vpack.c.b16 %v1561, %v1555
        %v1676 = vpack.c.b16 %v1562, %v1556
        %v1677 = vpack.c.b16 %v1569, %v1563
        %v1678 = vpack.c.b16 %v1570, %v1564
        %v1679 = vpack.c.b16 %v1571, %v1565
        %v1680 = vpack.c.b16 %v1572, %v1566
        %v1681 = vpack.c.b16 %v1573, %v1567
        %v1682 = vpack.c.b16 %v1574, %v1568
        %v1683 = vpack.c.b16 %v1581, %v1575
        %v1684 = vpack.c.b16 %v1582, %v1576
        %v1685 = vpack.c.b16 %v1583, %v1577
        %v1686 = vpack.c.b16 %v1584, %v1578
        %v1687 = vpack.c.b16 %v1585, %v1579
        %v1688 = vpack.c.b16 %v1586, %v1580
        %v1689 = vpack.c.b16 %v1593, %v1587
        %v1690 = vpack.c.b16 %v1594, %v1588
        %v1691 = vpack.c.b16 %v1595, %v1589
        %v1692 = vpack.c.b16 %v1596, %v1590
        %v1693 = vpack.c.b16 %v1597, %v1591
        %v1694 = vpack.c.b16 %v1598, %v1592
        %1791 = vmatpush.bf16.msra.mxu0 %v1641
        %1792 = vmatpush.bf16.msra.mxu0 %v1635
        %1793 = vmatpush.bf16.msra.mxu0 %v1629
        %1794 = vmatpush.bf16.msra.mxu0 %v1623
        %1795 = vmatpush.bf16.msra.mxu0 %v1617
        %1796 = vmatpush.bf16.msra.mxu0 %v1611
        %1797 = vmatpush.bf16.msra.mxu0 %v1605
        %1798 = vmatpush.bf16.msra.mxu0 %v1599
        %1799 = vmatmul.bf16.gmra.mxu0 %v1190
        %v1800 = vpop.f32.mrf.mxu0
        %v1801 = vadd.f32 %v1305, %v1800
        %v1802 = vpop.f32.mrf.mxu0
        %v1803 = vadd.f32 %v1305, %v1802
        %1804 = vdwg.mxu0
        %1805 = vmatpush.bf16.msra.mxu0 %v1689
        %1806 = vmatpush.bf16.msra.mxu0 %v1683
        %1807 = vmatpush.bf16.msra.mxu0 %v1677
        %1808 = vmatpush.bf16.msra.mxu0 %v1671
        %1809 = vmatpush.bf16.msra.mxu0 %v1665
        %1810 = vmatpush.bf16.msra.mxu0 %v1659
        %1811 = vmatpush.bf16.msra.mxu0 %v1653
        %1812 = vmatpush.bf16.msra.mxu0 %v1647
        %1813 = vmatmul.bf16.gmra.mxu0 %v1191
        %v1814 = vpop.f32.mrf.mxu0
        %v1815 = vadd.f32 %v1801, %v1814
        %v1816 = vpop.f32.mrf.mxu0
        %v1817 = vadd.f32 %v1803, %v1816
        %1818 = vdwg.mxu0
        %1819 = vmatpush.bf16.msra.mxu0 %v1642
        %1820 = vmatpush.bf16.msra.mxu0 %v1636
        %1821 = vmatpush.bf16.msra.mxu0 %v1630
        %1822 = vmatpush.bf16.msra.mxu0 %v1624
        %1823 = vmatpush.bf16.msra.mxu0 %v1618
        %1824 = vmatpush.bf16.msra.mxu0 %v1612
        %1825 = vmatpush.bf16.msra.mxu0 %v1606
        %1826 = vmatpush.bf16.msra.mxu0 %v1600
        %1827 = vmatmul.bf16.gmra.mxu0 %v1190
        %v1828 = vpop.f32.mrf.mxu0
        %v1829 = vadd.f32 %v1306, %v1828
        %v1830 = vpop.f32.mrf.mxu0
        %v1831 = vadd.f32 %v1306, %v1830
        %1832 = vdwg.mxu0
        %1833 = vmatpush.bf16.msra.mxu0 %v1690
        %1834 = vmatpush.bf16.msra.mxu0 %v1684
        %1835 = vmatpush.bf16.msra.mxu0 %v1678
        %1836 = vmatpush.bf16.msra.mxu0 %v1672
        %1837 = vmatpush.bf16.msra.mxu0 %v1666
        %1838 = vmatpush.bf16.msra.mxu0 %v1660
        %1839 = vmatpush.bf16.msra.mxu0 %v1654
        %1840 = vmatpush.bf16.msra.mxu0 %v1648
        %1841 = vmatmul.bf16.gmra.mxu0 %v1191
        %v1842 = vpop.f32.mrf.mxu0
        %v1843 = vadd.f32 %v1829, %v1842
        %v1844 = vpop.f32.mrf.mxu0
        %v1845 = vadd.f32 %v1831, %v1844
        %1846 = vdwg.mxu0
        %1847 = vmatpush.bf16.msra.mxu0 %v1643
        %1848 = vmatpush.bf16.msra.mxu0 %v1637
        %1849 = vmatpush.bf16.msra.mxu0 %v1631
        %1850 = vmatpush.bf16.msra.mxu0 %v1625
        %1851 = vmatpush.bf16.msra.mxu0 %v1619
        %1852 = vmatpush.bf16.msra.mxu0 %v1613
        %1853 = vmatpush.bf16.msra.mxu0 %v1607
        %1854 = vmatpush.bf16.msra.mxu0 %v1601
        %1855 = vmatmul.bf16.gmra.mxu0 %v1190
        %v1856 = vpop.f32.mrf.mxu0
        %v1857 = vadd.f32 %v1307, %v1856
        %v1858 = vpop.f32.mrf.mxu0
        %v1859 = vadd.f32 %v1307, %v1858
        %1860 = vdwg.mxu0
        %1861 = vmatpush.bf16.msra.mxu0 %v1691
        %1862 = vmatpush.bf16.msra.mxu0 %v1685
        %1863 = vmatpush.bf16.msra.mxu0 %v1679
        %1864 = vmatpush.bf16.msra.mxu0 %v1673
        %1865 = vmatpush.bf16.msra.mxu0 %v1667
        %1866 = vmatpush.bf16.msra.mxu0 %v1661
        %1867 = vmatpush.bf16.msra.mxu0 %v1655
        %1868 = vmatpush.bf16.msra.mxu0 %v1649
        %1869 = vmatmul.bf16.gmra.mxu0 %v1191
        %v1870 = vpop.f32.mrf.mxu0
        %v1871 = vadd.f32 %v1857, %v1870
        %v1872 = vpop.f32.mrf.mxu0
        %v1873 = vadd.f32 %v1859, %v1872
        %1874 = vdwg.mxu0
        %1875 = vmatpush.bf16.msra.mxu0 %v1644
        %1876 = vmatpush.bf16.msra.mxu0 %v1638
        %1877 = vmatpush.bf16.msra.mxu0 %v1632
        %1878 = vmatpush.bf16.msra.mxu0 %v1626
        %1879 = vmatpush.bf16.msra.mxu0 %v1620
        %1880 = vmatpush.bf16.msra.mxu0 %v1614
        %1881 = vmatpush.bf16.msra.mxu0 %v1608
        %1882 = vmatpush.bf16.msra.mxu0 %v1602
        %1883 = vmatmul.bf16.gmra.mxu0 %v1190
        %v1884 = vpop.f32.mrf.mxu0
        %v1885 = vadd.f32 %v1308, %v1884
        %v1886 = vpop.f32.mrf.mxu0
        %v1887 = vadd.f32 %v1308, %v1886
        %1888 = vdwg.mxu0
        %1889 = vmatpush.bf16.msra.mxu0 %v1692
        %1890 = vmatpush.bf16.msra.mxu0 %v1686
        %1891 = vmatpush.bf16.msra.mxu0 %v1680
        %1892 = vmatpush.bf16.msra.mxu0 %v1674
        %1893 = vmatpush.bf16.msra.mxu0 %v1668
        %1894 = vmatpush.bf16.msra.mxu0 %v1662
        %1895 = vmatpush.bf16.msra.mxu0 %v1656
        %1896 = vmatpush.bf16.msra.mxu0 %v1650
        %1897 = vmatmul.bf16.gmra.mxu0 %v1191
        %v1898 = vpop.f32.mrf.mxu0
        %v1899 = vadd.f32 %v1885, %v1898
        %v1900 = vpop.f32.mrf.mxu0
        %v1901 = vadd.f32 %v1887, %v1900
        %1902 = vdwg.mxu0
        %1903 = vmatpush.bf16.msra.mxu0 %v1645
        %1904 = vmatpush.bf16.msra.mxu0 %v1639
        %1905 = vmatpush.bf16.msra.mxu0 %v1633
        %1906 = vmatpush.bf16.msra.mxu0 %v1627
        %1907 = vmatpush.bf16.msra.mxu0 %v1621
        %1908 = vmatpush.bf16.msra.mxu0 %v1615
        %1909 = vmatpush.bf16.msra.mxu0 %v1609
        %1910 = vmatpush.bf16.msra.mxu0 %v1603
        %1911 = vmatmul.bf16.gmra.mxu0 %v1190
        %v1912 = vpop.f32.mrf.mxu0
        %v1913 = vadd.f32 %v1309, %v1912
        %v1914 = vpop.f32.mrf.mxu0
        %v1915 = vadd.f32 %v1309, %v1914
        %1916 = vdwg.mxu0
        %1917 = vmatpush.bf16.msra.mxu0 %v1693
        %1918 = vmatpush.bf16.msra.mxu0 %v1687
        %1919 = vmatpush.bf16.msra.mxu0 %v1681
        %1920 = vmatpush.bf16.msra.mxu0 %v1675
        %1921 = vmatpush.bf16.msra.mxu0 %v1669
        %1922 = vmatpush.bf16.msra.mxu0 %v1663
        %1923 = vmatpush.bf16.msra.mxu0 %v1657
        %1924 = vmatpush.bf16.msra.mxu0 %v1651
        %1925 = vmatmul.bf16.gmra.mxu0 %v1191
        %v1926 = vpop.f32.mrf.mxu0
        %v1927 = vadd.f32 %v1913, %v1926
        %v1928 = vpop.f32.mrf.mxu0
        %v1929 = vadd.f32 %v1915, %v1928
        %1930 = vdwg.mxu0
        %1931 = vmatpush.bf16.msra.mxu0 %v1646
        %1932 = vmatpush.bf16.msra.mxu0 %v1640
        %1933 = vmatpush.bf16.msra.mxu0 %v1634
        %1934 = vmatpush.bf16.msra.mxu0 %v1628
        %1935 = vmatpush.bf16.msra.mxu0 %v1622
        %1936 = vmatpush.bf16.msra.mxu0 %v1616
        %1937 = vmatpush.bf16.msra.mxu0 %v1610
        %1938 = vmatpush.bf16.msra.mxu0 %v1604
        %1939 = vmatmul.bf16.gmra.mxu0 %v1190
        %v1940 = vpop.f32.mrf.mxu0
        %v1941 = vadd.f32 %v1310, %v1940
        %v1942 = vpop.f32.mrf.mxu0
        %v1943 = vadd.f32 %v1310, %v1942
        %1944 = vdwg.mxu0
        %1945 = vmatpush.bf16.msra.mxu0 %v1694
        %1946 = vmatpush.bf16.msra.mxu0 %v1688
        %1947 = vmatpush.bf16.msra.mxu0 %v1682
        %1948 = vmatpush.bf16.msra.mxu0 %v1676
        %1949 = vmatpush.bf16.msra.mxu0 %v1670
        %1950 = vmatpush.bf16.msra.mxu0 %v1664
        %1951 = vmatpush.bf16.msra.mxu0 %v1658
        %1952 = vmatpush.bf16.msra.mxu0 %v1652
        %1953 = vmatmul.bf16.gmra.mxu0 %v1191
        %v1954 = vpop.f32.mrf.mxu0
        %v1955 = vadd.f32 %v1941, %v1954
        %v1956 = vpop.f32.mrf.mxu0
        %v1957 = vadd.f32 %v1943, %v1956
        %1958 = vdwg.mxu0
        %v1959 = vpack.c.bf16 %v1817, %v1815
        %v1960 = vpack.c.bf16 %v1873, %v1871
        %v1961 = vpack.c.bf16 %v1929, %v1927
        %1962 = vmatpush.bf16.xpose.msra.mxu0 0
        %1963 = vmatpush.bf16.xpose.msra.mxu0 0
        %1964 = vmatpush.bf16.xpose.msra.mxu0 0
        %1965 = vmatpush.bf16.xpose.msra.mxu0 0
        %1966 = vmatpush.bf16.xpose.msra.mxu0 0
        %1967 = vmatpush.bf16.xpose.msra.mxu0 0
        %1968 = vmatpush.bf16.xpose.msra.mxu0 0
        %1969 = vmatpush.bf16.xpose.msra.mxu0 %v1960
        %1970 = vmatmul.bf16.gmra.mxu0 %v1959
        %v1971 = vpop.f32.mrf.mxu0
        %v1972 = vadd.f32 0.0, %v1971
        %v1973 = vpop.f32.mrf.mxu0
        %v1974 = vadd.f32 0.0, %v1973
        %1975 = vdwg.mxu0
        %v1976 = vmul.f32 %v1972, 0.088388346
        %v1977 = vmul.f32 %v1974, 0.088388346
        %v1979 = vperm.slane %v1189, 0
        %v1981 = vadd.f32 %v1976, %v1979
        %v1982 = vadd.f32 %v1977, %v1979
        %vm1983 = vcmask 130048
        %v1984 = vsel %vm1983, %v1981, -inf
        %1985 = vmax.xlane.f32.xlu0 %v1984
        %v1986 = vpop.xlane.xlu0 %1985
        %v1987 = vsel %vm1983, %v1982, -inf
        %1988 = vmax.xlane.f32.xlu0 %v1987
        %v1989 = vpop.xlane.xlu0 %1988
        %v1990 = vsub.f32 %v1981, %v1986
        %v1991 = vsub.f32 %v1982, %v1989
        %v1992 = vmul.f32 %v1990, 1.442695
        %v1993 = vpow.pop %v1992
        %v1994 = vmul.f32 %v1991, 1.442695
        %v1995 = vpow.pop %v1994
        %v1996 = vsel %vm1983, %v1993, 0.0
        %1997 = vadd.xlane.f32.xlu0 %v1996
        %v1998 = vpop.xlane.xlu0 %1997
        %v1999 = vsel %vm1983, %v1995, 0.0
        %2000 = vadd.xlane.f32.xlu0 %v1999
        %v2001 = vpop.xlane.xlu0 %2000
        %v2002 = vrcp.pop %v1998
        %v2003 = vmul.f32 %v1998, %v2002
        %v2004 = vsub.f32 1.0, %v2003
        %v2005 = vmul.f32 %v2002, %v2004
        %v2006 = vadd.f32 %v2002, %v2005
        %vm2007 = vweird.f32 %v1998
        %vm2008 = vweird.f32 %v2002
        %vm2009 = vmor %vm2007, %vm2008
        %v2010 = vsel %vm2009, %v2002, %v2006
        %v2011 = vand.u32 2147483647, %v1998
        %vm2012 = vcmp.eq.f32.partialorder %v2011, 8.507059e+37
        %v2013 = vand.u32 %v1998, 2147483648
        %v2014 = vor.u32 1.1754944e-38, %v2013
        %v2015 = vsel %vm2012, %v2014, %v2010
        %v2016 = vmul.f32 %v1993, %v2015
        %v2017 = vrcp.pop %v2001
        %v2018 = vmul.f32 %v2001, %v2017
        %v2019 = vsub.f32 1.0, %v2018
        %v2020 = vmul.f32 %v2017, %v2019
        %v2021 = vadd.f32 %v2017, %v2020
        %vm2022 = vweird.f32 %v2001
        %vm2023 = vweird.f32 %v2017
        %vm2024 = vmor %vm2022, %vm2023
        %v2025 = vsel %vm2024, %v2017, %v2021
        %v2026 = vand.u32 2147483647, %v2001
        %vm2027 = vcmp.eq.f32.partialorder %v2026, 8.507059e+37
        %v2028 = vand.u32 %v2001, 2147483648
        %v2029 = vor.u32 1.1754944e-38, %v2028
        %v2030 = vsel %vm2027, %v2029, %v2025
        %v2031 = vmul.f32 %v1995, %v2030
        %v2032 = vpack.c.bf16 %v2031, %v2016
        %v2034 = vsel %vm1983, %v2032, 0
        %2036 = vmatpush.bf16.msra.mxu0 0
        %2037 = vmatpush.bf16.msra.mxu0 0
        %2038 = vmatpush.bf16.msra.mxu0 0
        %2039 = vmatpush.bf16.msra.mxu0 0
        %2040 = vmatpush.bf16.msra.mxu0 0
        %2041 = vmatpush.bf16.msra.mxu0 0
        %2042 = vmatpush.bf16.msra.mxu0 0
        %2043 = vmatpush.bf16.msra.mxu0 %v1961
        %2044 = vmatmul.bf16.gmra.mxu0 %v2034
        %v2045 = vpop.f32.mrf.mxu0
        %v2046 = vadd.f32 0.0, %v2045
        %v2047 = vpop.f32.mrf.mxu0
        %v2048 = vadd.f32 0.0, %v2047
        %2049 = vdwg.mxu0
        %v2050 = vpack.c.bf16 %v2046, %v2046
        %v2051 = vpack.c.bf16 %v2048, %v2048
        %v2052 = vpack.c.bf16 %v1845, %v1843
        %v2053 = vpack.c.bf16 %v1901, %v1899
        %v2054 = vpack.c.bf16 %v1957, %v1955
        %2055 = vmatpush.bf16.xpose.msra.mxu0 0
        %2056 = vmatpush.bf16.xpose.msra.mxu0 0
        %2057 = vmatpush.bf16.xpose.msra.mxu0 0
        %2058 = vmatpush.bf16.xpose.msra.mxu0 0
        %2059 = vmatpush.bf16.xpose.msra.mxu0 0
        %2060 = vmatpush.bf16.xpose.msra.mxu0 0
        %2061 = vmatpush.bf16.xpose.msra.mxu0 0
        %2062 = vmatpush.bf16.xpose.msra.mxu0 %v2053
        %2063 = vmatmul.bf16.gmra.mxu0 %v2052
        %v2064 = vpop.f32.mrf.mxu0
        %v2065 = vadd.f32 0.0, %v2064
        %v2066 = vpop.f32.mrf.mxu0
        %v2067 = vadd.f32 0.0, %v2066
        %2068 = vdwg.mxu0
        %v2069 = vmul.f32 %v2065, 0.088388346
        %v2070 = vmul.f32 %v2067, 0.088388346
        %v2071 = vadd.f32 %v2069, %v1979
        %v2072 = vadd.f32 %v2070, %v1979
        %v2073 = vsel %vm1983, %v2071, -inf
        %2074 = vmax.xlane.f32.xlu0 %v2073
        %v2075 = vpop.xlane.xlu0 %2074
        %v2076 = vsel %vm1983, %v2072, -inf
        %2077 = vmax.xlane.f32.xlu0 %v2076
        %v2078 = vpop.xlane.xlu0 %2077
        %v2079 = vsub.f32 %v2071, %v2075
        %v2080 = vsub.f32 %v2072, %v2078
        %v2081 = vmul.f32 %v2079, 1.442695
        %v2082 = vpow.pop %v2081
        %v2083 = vmul.f32 %v2080, 1.442695
        %v2084 = vpow.pop %v2083
        %v2085 = vsel %vm1983, %v2082, 0.0
        %2086 = vadd.xlane.f32.xlu0 %v2085
        %v2087 = vpop.xlane.xlu0 %2086
        %v2088 = vsel %vm1983, %v2084, 0.0
        %2089 = vadd.xlane.f32.xlu0 %v2088
        %v2090 = vpop.xlane.xlu0 %2089
        %v2091 = vrcp.pop %v2087
        %v2092 = vmul.f32 %v2087, %v2091
        %v2093 = vsub.f32 1.0, %v2092
        %v2094 = vmul.f32 %v2091, %v2093
        %v2095 = vadd.f32 %v2091, %v2094
        %vm2096 = vweird.f32 %v2087
        %vm2097 = vweird.f32 %v2091
        %vm2098 = vmor %vm2096, %vm2097
        %v2099 = vsel %vm2098, %v2091, %v2095
        %v2100 = vand.u32 2147483647, %v2087
        %vm2101 = vcmp.eq.f32.partialorder %v2100, 8.507059e+37
        %v2102 = vand.u32 %v2087, 2147483648
        %v2103 = vor.u32 1.1754944e-38, %v2102
        %v2104 = vsel %vm2101, %v2103, %v2099
        %v2105 = vmul.f32 %v2082, %v2104
        %v2106 = vrcp.pop %v2090
        %v2107 = vmul.f32 %v2090, %v2106
        %v2108 = vsub.f32 1.0, %v2107
        %v2109 = vmul.f32 %v2106, %v2108
        %v2110 = vadd.f32 %v2106, %v2109
        %vm2111 = vweird.f32 %v2090
        %vm2112 = vweird.f32 %v2106
        %vm2113 = vmor %vm2111, %vm2112
        %v2114 = vsel %vm2113, %v2106, %v2110
        %v2115 = vand.u32 2147483647, %v2090
        %vm2116 = vcmp.eq.f32.partialorder %v2115, 8.507059e+37
        %v2117 = vand.u32 %v2090, 2147483648
        %v2118 = vor.u32 1.1754944e-38, %v2117
        %v2119 = vsel %vm2116, %v2118, %v2114
        %v2120 = vmul.f32 %v2084, %v2119
        %v2121 = vpack.c.bf16 %v2120, %v2105
        %v2123 = vsel %vm1983, %v2121, 0
        %2125 = vmatpush.bf16.msra.mxu0 0
        %2126 = vmatpush.bf16.msra.mxu0 0
        %2127 = vmatpush.bf16.msra.mxu0 0
        %2128 = vmatpush.bf16.msra.mxu0 0
        %2129 = vmatpush.bf16.msra.mxu0 0
        %2130 = vmatpush.bf16.msra.mxu0 0
        %2131 = vmatpush.bf16.msra.mxu0 0
        %2132 = vmatpush.bf16.msra.mxu0 %v2054
        %2133 = vmatmul.bf16.gmra.mxu0 %v2123
        %v2134 = vpop.f32.mrf.mxu0
        %v2135 = vadd.f32 0.0, %v2134
        %v2136 = vpop.f32.mrf.mxu0
        %v2137 = vadd.f32 0.0, %v2136
        %2138 = vdwg.mxu0
        %v2139 = vpack.c.bf16 %v2135, %v2135
        %v2140 = vpack.c.bf16 %v2137, %v2137
        %v2143 = vunpack.c.l.b16 %v2050
        %v2144 = vunpack.c.l.b16 %v2051
        %v2145 = vpack.c.b16 %v2144, %v2143
        %v2149 = vunpack.c.l.b16 %v2139
        %v2150 = vunpack.c.l.b16 %v2140
        %v2151 = vpack.c.b16 %v2150, %v2149
        %v2153 = vld [vmem:[#allocation10] sm:$0xff]
        %v2154 = vld [vmem:[#allocation10 + $0x8] sm:$0xff]
        %v2155 = vld [vmem:[#allocation10 + $0x10] sm:$0xff]
        %v2156 = vld [vmem:[#allocation10 + $0x18] sm:$0xff]
        %v2157 = vld [vmem:[#allocation10 + $0x20] sm:$0xff]
        %v2158 = vld [vmem:[#allocation10 + $0x28] sm:$0xff]
        %v2159 = vld [vmem:[#allocation10 + $0x30] sm:$0xff]
        %v2160 = vld [vmem:[#allocation10 + $0x38] sm:$0xff]
        %v2161 = vld [vmem:[#allocation10 + $0x40] sm:$0xff]
        %v2162 = vld [vmem:[#allocation10 + $0x48] sm:$0xff]
        %v2163 = vld [vmem:[#allocation10 + $0x50] sm:$0xff]
        %v2164 = vld [vmem:[#allocation10 + $0x58] sm:$0xff]
        %v2165 = vld [vmem:[#allocation10 + $0x60] sm:$0xff]
        %v2166 = vld [vmem:[#allocation10 + $0x68] sm:$0xff]
        %v2167 = vld [vmem:[#allocation10 + $0x70] sm:$0xff]
        %v2168 = vld [vmem:[#allocation10 + $0x78] sm:$0xff]
        %v2169 = vld [vmem:[#allocation10 + $0x80] sm:$0xff]
        %v2170 = vld [vmem:[#allocation10 + $0x88] sm:$0xff]
        %v2171 = vld [vmem:[#allocation10 + $0x90] sm:$0xff]
        %v2172 = vld [vmem:[#allocation10 + $0x98] sm:$0xff]
        %v2173 = vld [vmem:[#allocation10 + $0xa0] sm:$0xff]
        %v2174 = vld [vmem:[#allocation10 + $0xa8] sm:$0xff]
        %v2175 = vld [vmem:[#allocation10 + $0xb0] sm:$0xff]
        %v2176 = vld [vmem:[#allocation10 + $0xb8] sm:$0xff]
        %v2177 = vld [vmem:[#allocation10 + $0xc0] sm:$0xff]
        %v2178 = vld [vmem:[#allocation10 + $0xc8] sm:$0xff]
        %v2179 = vld [vmem:[#allocation10 + $0xd0] sm:$0xff]
        %v2180 = vld [vmem:[#allocation10 + $0xd8] sm:$0xff]
        %v2181 = vld [vmem:[#allocation10 + $0xe0] sm:$0xff]
        %v2182 = vld [vmem:[#allocation10 + $0xe8] sm:$0xff]
        %v2183 = vld [vmem:[#allocation10 + $0xf0] sm:$0xff]
        %v2184 = vld [vmem:[#allocation10 + $0xf8] sm:$0xff]
        %v2185 = vld [vmem:[%s8] sm:$0x3]
        %v2186 = vunpack.c.l.bf16 %v2185
        %v2188 = vperm.slane %v2186, 0
        %v2189 = vperm.slane %v2186, 2
        %v2192 = vperm.slane %v2188, 0
        %v2193 = vperm.slane %v2189, 0
        %v2226 = vunpack.c.l.b16 %v2153
        %v2227 = vunpack.c.h.b16 %v2153
        %v2228 = vunpack.c.l.b16 %v2154
        %v2229 = vunpack.c.h.b16 %v2154
        %v2230 = vunpack.c.l.b16 %v2155
        %v2231 = vunpack.c.h.b16 %v2155
        %v2232 = vunpack.c.l.b16 %v2156
        %v2233 = vunpack.c.h.b16 %v2156
        %v2234 = vunpack.c.l.b16 %v2157
        %v2235 = vunpack.c.h.b16 %v2157
        %v2236 = vunpack.c.l.b16 %v2158
        %v2237 = vunpack.c.h.b16 %v2158
        %v2238 = vunpack.c.l.b16 %v2159
        %v2239 = vunpack.c.h.b16 %v2159
        %v2240 = vunpack.c.l.b16 %v2160
        %v2241 = vunpack.c.h.b16 %v2160
        %v2242 = vunpack.c.l.b16 %v2161
        %v2243 = vunpack.c.h.b16 %v2161
        %v2244 = vunpack.c.l.b16 %v2162
        %v2245 = vunpack.c.h.b16 %v2162
        %v2246 = vunpack.c.l.b16 %v2163
        %v2247 = vunpack.c.h.b16 %v2163
        %v2248 = vunpack.c.l.b16 %v2164
        %v2249 = vunpack.c.h.b16 %v2164
        %v2250 = vunpack.c.l.b16 %v2165
        %v2251 = vunpack.c.h.b16 %v2165
        %v2252 = vunpack.c.l.b16 %v2166
        %v2253 = vunpack.c.h.b16 %v2166
        %v2254 = vunpack.c.l.b16 %v2167
        %v2255 = vunpack.c.h.b16 %v2167
        %v2256 = vunpack.c.l.b16 %v2168
        %v2257 = vunpack.c.h.b16 %v2168
        %v2258 = vunpack.c.l.b16 %v2169
        %v2259 = vunpack.c.h.b16 %v2169
        %v2260 = vunpack.c.l.b16 %v2170
        %v2261 = vunpack.c.h.b16 %v2170
        %v2262 = vunpack.c.l.b16 %v2171
        %v2263 = vunpack.c.h.b16 %v2171
        %v2264 = vunpack.c.l.b16 %v2172
        %v2265 = vunpack.c.h.b16 %v2172
        %v2266 = vunpack.c.l.b16 %v2173
        %v2267 = vunpack.c.h.b16 %v2173
        %v2268 = vunpack.c.l.b16 %v2174
        %v2269 = vunpack.c.h.b16 %v2174
        %v2270 = vunpack.c.l.b16 %v2175
        %v2271 = vunpack.c.h.b16 %v2175
        %v2272 = vunpack.c.l.b16 %v2176
        %v2273 = vunpack.c.h.b16 %v2176
        %v2274 = vunpack.c.l.b16 %v2177
        %v2275 = vunpack.c.h.b16 %v2177
        %v2276 = vunpack.c.l.b16 %v2178
        %v2277 = vunpack.c.h.b16 %v2178
        %v2278 = vunpack.c.l.b16 %v2179
        %v2279 = vunpack.c.h.b16 %v2179
        %v2280 = vunpack.c.l.b16 %v2180
        %v2281 = vunpack.c.h.b16 %v2180
        %v2282 = vunpack.c.l.b16 %v2181
        %v2283 = vunpack.c.h.b16 %v2181
        %v2284 = vunpack.c.l.b16 %v2182
        %v2285 = vunpack.c.h.b16 %v2182
        %v2286 = vunpack.c.l.b16 %v2183
        %v2287 = vunpack.c.h.b16 %v2183
        %v2288 = vunpack.c.l.b16 %v2184
        %v2289 = vunpack.c.h.b16 %v2184
        %v2290 = vpack.c.b16 %v2228, %v2226
        %v2291 = vpack.c.b16 %v2229, %v2227
        %v2292 = vpack.c.b16 %v2232, %v2230
        %v2293 = vpack.c.b16 %v2233, %v2231
        %v2294 = vpack.c.b16 %v2236, %v2234
        %v2295 = vpack.c.b16 %v2237, %v2235
        %v2296 = vpack.c.b16 %v2240, %v2238
        %v2297 = vpack.c.b16 %v2241, %v2239
        %v2298 = vpack.c.b16 %v2244, %v2242
        %v2299 = vpack.c.b16 %v2245, %v2243
        %v2300 = vpack.c.b16 %v2248, %v2246
        %v2301 = vpack.c.b16 %v2249, %v2247
        %v2302 = vpack.c.b16 %v2252, %v2250
        %v2303 = vpack.c.b16 %v2253, %v2251
        %v2304 = vpack.c.b16 %v2256, %v2254
        %v2305 = vpack.c.b16 %v2257, %v2255
        %v2306 = vpack.c.b16 %v2260, %v2258
        %v2307 = vpack.c.b16 %v2261, %v2259
        %v2308 = vpack.c.b16 %v2264, %v2262
        %v2309 = vpack.c.b16 %v2265, %v2263
        %v2310 = vpack.c.b16 %v2268, %v2266
        %v2311 = vpack.c.b16 %v2269, %v2267
        %v2312 = vpack.c.b16 %v2272, %v2270
        %v2313 = vpack.c.b16 %v2273, %v2271
        %v2314 = vpack.c.b16 %v2276, %v2274
        %v2315 = vpack.c.b16 %v2277, %v2275
        %v2316 = vpack.c.b16 %v2280, %v2278
        %v2317 = vpack.c.b16 %v2281, %v2279
        %v2318 = vpack.c.b16 %v2284, %v2282
        %v2319 = vpack.c.b16 %v2285, %v2283
        %v2320 = vpack.c.b16 %v2288, %v2286
        %v2321 = vpack.c.b16 %v2289, %v2287
        %2354 = vmatpush.bf16.msra.mxu0 %v2304
        %2355 = vmatpush.bf16.msra.mxu0 %v2302
        %2356 = vmatpush.bf16.msra.mxu0 %v2300
        %2357 = vmatpush.bf16.msra.mxu0 %v2298
        %2358 = vmatpush.bf16.msra.mxu0 %v2296
        %2359 = vmatpush.bf16.msra.mxu0 %v2294
        %2360 = vmatpush.bf16.msra.mxu0 %v2292
        %2361 = vmatpush.bf16.msra.mxu0 %v2290
        %2362 = vmatmul.bf16.gmra.mxu0 %v2145
        %v2363 = vpop.f32.mrf.mxu0
        %v2364 = vadd.f32 %v2192, %v2363
        %v2365 = vpop.f32.mrf.mxu0
        %v2366 = vadd.f32 %v2192, %v2365
        %2367 = vdwg.mxu0
        %2368 = vmatpush.bf16.msra.mxu0 %v2320
        %2369 = vmatpush.bf16.msra.mxu0 %v2318
        %2370 = vmatpush.bf16.msra.mxu0 %v2316
        %2371 = vmatpush.bf16.msra.mxu0 %v2314
        %2372 = vmatpush.bf16.msra.mxu0 %v2312
        %2373 = vmatpush.bf16.msra.mxu0 %v2310
        %2374 = vmatpush.bf16.msra.mxu0 %v2308
        %2375 = vmatpush.bf16.msra.mxu0 %v2306
        %2376 = vmatmul.bf16.gmra.mxu0 %v2151
        %v2377 = vpop.f32.mrf.mxu0
        %v2378 = vadd.f32 %v2364, %v2377
        %v2379 = vpop.f32.mrf.mxu0
        %v2380 = vadd.f32 %v2366, %v2379
        %2381 = vdwg.mxu0
        %2382 = vmatpush.bf16.msra.mxu0 %v2305
        %2383 = vmatpush.bf16.msra.mxu0 %v2303
        %2384 = vmatpush.bf16.msra.mxu0 %v2301
        %2385 = vmatpush.bf16.msra.mxu0 %v2299
        %2386 = vmatpush.bf16.msra.mxu0 %v2297
        %2387 = vmatpush.bf16.msra.mxu0 %v2295
        %2388 = vmatpush.bf16.msra.mxu0 %v2293
        %2389 = vmatpush.bf16.msra.mxu0 %v2291
        %2390 = vmatmul.bf16.gmra.mxu0 %v2145
        %v2391 = vpop.f32.mrf.mxu0
        %v2392 = vadd.f32 %v2193, %v2391
        %v2393 = vpop.f32.mrf.mxu0
        %v2394 = vadd.f32 %v2193, %v2393
        %2395 = vdwg.mxu0
        %2396 = vmatpush.bf16.msra.mxu0 %v2321
        %2397 = vmatpush.bf16.msra.mxu0 %v2319
        %2398 = vmatpush.bf16.msra.mxu0 %v2317
        %2399 = vmatpush.bf16.msra.mxu0 %v2315
        %2400 = vmatpush.bf16.msra.mxu0 %v2313
        %2401 = vmatpush.bf16.msra.mxu0 %v2311
        %2402 = vmatpush.bf16.msra.mxu0 %v2309
        %2403 = vmatpush.bf16.msra.mxu0 %v2307
        %2404 = vmatmul.bf16.gmra.mxu0 %v2151
        %v2405 = vpop.f32.mrf.mxu0
        %v2406 = vadd.f32 %v2392, %v2405
        %v2407 = vpop.f32.mrf.mxu0
        %v2408 = vadd.f32 %v2394, %v2407
        %2409 = vdwg.mxu0
        %v2410 = vadd.f32 %v1155, %v2378
        %v2411 = vadd.f32 %v1183, %v2406
        %v2412 = vadd.f32 %v1157, %v2380
        %v2413 = vadd.f32 %v1185, %v2408
        %v2414 = vadd.f32 %v2410, %v2411
        %2415 = vadd.xlane.f32.xlu0 %v2414
        %v2416 = vpop.xlane.xlu0 %2415
        %v2417 = vadd.f32 %v2412, %v2413
        %2418 = vadd.xlane.f32.xlu0 %v2417
        %v2419 = vpop.xlane.xlu0 %2418
        %v2420 = vrcp.pop 256.0
        %v2421 = vmul.f32 256.0, %v2420
        %v2422 = vsub.f32 1.0, %v2421
        %v2423 = vmul.f32 %v2420, %v2422
        %v2424 = vadd.f32 %v2420, %v2423
        %vm2425 = vweird.f32 %v2420
        %v2426 = vsel %vm2425, %v2420, %v2424
        %v2427 = vmul.f32 %v2416, %v2426
        %v2428 = vmul.f32 %v2419, %v2426
        %v2429 = vsub.f32 %v2410, %v2427
        %v2430 = vsub.f32 %v2411, %v2427
        %v2431 = vsub.f32 %v2412, %v2428
        %v2432 = vsub.f32 %v2413, %v2428
        %v2433 = vmul.f32 %v2429, %v2429
        %v2434 = vmul.f32 %v2430, %v2430
        %v2435 = vmul.f32 %v2431, %v2431
        %v2436 = vmul.f32 %v2432, %v2432
        %v2437 = vadd.f32 %v2433, %v2434
        %2438 = vadd.xlane.f32.xlu0 %v2437
        %v2439 = vpop.xlane.xlu0 %2438
        %v2440 = vadd.f32 %v2435, %v2436
        %2441 = vadd.xlane.f32.xlu0 %v2440
        %v2442 = vpop.xlane.xlu0 %2441
        %v2443 = vmul.f32 %v2439, %v2426
        %v2444 = vmul.f32 %v2442, %v2426
        %v2445 = vadd.f32 %v2443, 1e-05
        %v2446 = vadd.f32 %v2444, 1e-05
        %v2447 = vrsqrt.pop %v2445
        %v2448 = vmul.f32 %v2447, %v2445
        %v2449 = vmul.f32 %v2448, %v2447
        %v2450 = vmul.f32 0.5, %v2449
        %v2451 = vsub.f32 1.5, %v2450
        %v2452 = vmul.f32 %v2447, %v2451
        %vm2453 = vweird.f32 %v2445
        %vm2454 = vweird.f32 %v2447
        %vm2455 = vmor %vm2453, %vm2454
        %v2456 = vsel %vm2455, %v2447, %v2452
        %v2457 = vrsqrt.pop %v2446
        %v2458 = vmul.f32 %v2457, %v2446
        %v2459 = vmul.f32 %v2458, %v2457
        %v2460 = vmul.f32 0.5, %v2459
        %v2461 = vsub.f32 1.5, %v2460
        %v2462 = vmul.f32 %v2457, %v2461
        %vm2463 = vweird.f32 %v2446
        %vm2464 = vweird.f32 %v2457
        %vm2465 = vmor %vm2463, %vm2464
        %v2466 = vsel %vm2465, %v2457, %v2462
        %v2467 = vmul.f32 %v2429, %v2456
        %v2468 = vmul.f32 %v2430, %v2456
        %v2469 = vmul.f32 %v2431, %v2466
        %v2470 = vmul.f32 %v2432, %v2466
        %v2471 = vld [vmem:[#allocation12] sm:$0x3]
        %v2472 = vunpack.c.l.bf16 %v2471
        %v2474 = vperm.slane %v2472, 0
        %v2475 = vperm.slane %v2472, 2
        %v2478 = vperm.slane %v2474, 0
        %v2479 = vperm.slane %v2475, 0
        %v2480 = vmul.f32 %v2467, %v2478
        %v2481 = vmul.f32 %v2468, %v2479
        %v2482 = vmul.f32 %v2469, %v2478
        %v2483 = vmul.f32 %v2470, %v2479
        %v2484 = vld [vmem:[%s10] sm:$0x3]
        %v2485 = vunpack.c.l.bf16 %v2484
        %v2487 = vperm.slane %v2485, 0
        %v2488 = vperm.slane %v2485, 2
        %v2491 = vperm.slane %v2487, 0
        %v2492 = vperm.slane %v2488, 0
        %v2493 = vadd.f32 %v2480, %v2491
        %v2494 = vadd.f32 %v2481, %v2492
        %v2495 = vadd.f32 %v2482, %v2491
        %v2496 = vadd.f32 %v2483, %v2492
        %v2497 = vpack.c.bf16 %v2495, %v2493
        %v2498 = vpack.c.bf16 %v2496, %v2494
        %v2499 = vld [vmem:[#allocation13] sm:$0xff]
        %v2500 = vld [vmem:[#allocation13 + $0x8] sm:$0xff]
        %v2501 = vld [vmem:[#allocation13 + $0x10] sm:$0xff]
        %v2502 = vld [vmem:[#allocation13 + $0x18] sm:$0xff]
        %v2503 = vld [vmem:[#allocation13 + $0x20] sm:$0xff]
        %v2504 = vld [vmem:[#allocation13 + $0x28] sm:$0xff]
        %v2505 = vld [vmem:[#allocation13 + $0x30] sm:$0xff]
        %v2506 = vld [vmem:[#allocation13 + $0x38] sm:$0xff]
        %v2507 = vld [vmem:[#allocation13 + $0x40] sm:$0xff]
        %v2508 = vld [vmem:[#allocation13 + $0x48] sm:$0xff]
        %v2509 = vld [vmem:[#allocation13 + $0x50] sm:$0xff]
        %v2510 = vld [vmem:[#allocation13 + $0x58] sm:$0xff]
        %v2511 = vld [vmem:[#allocation13 + $0x60] sm:$0xff]
        %v2512 = vld [vmem:[#allocation13 + $0x68] sm:$0xff]
        %v2513 = vld [vmem:[#allocation13 + $0x70] sm:$0xff]
        %v2514 = vld [vmem:[#allocation13 + $0x78] sm:$0xff]
        %v2515 = vld [vmem:[#allocation13 + $0x80] sm:$0xff]
        %v2516 = vld [vmem:[#allocation13 + $0x88] sm:$0xff]
        %v2517 = vld [vmem:[#allocation13 + $0x90] sm:$0xff]
        %v2518 = vld [vmem:[#allocation13 + $0x98] sm:$0xff]
        %v2519 = vld [vmem:[#allocation13 + $0xa0] sm:$0xff]
        %v2520 = vld [vmem:[#allocation13 + $0xa8] sm:$0xff]
        %v2521 = vld [vmem:[#allocation13 + $0xb0] sm:$0xff]
        %v2522 = vld [vmem:[#allocation13 + $0xb8] sm:$0xff]
        %v2523 = vld [vmem:[#allocation13 + $0xc0] sm:$0xff]
        %v2524 = vld [vmem:[#allocation13 + $0xc8] sm:$0xff]
        %v2525 = vld [vmem:[#allocation13 + $0xd0] sm:$0xff]
        %v2526 = vld [vmem:[#allocation13 + $0xd8] sm:$0xff]
        %v2527 = vld [vmem:[#allocation13 + $0xe0] sm:$0xff]
        %v2528 = vld [vmem:[#allocation13 + $0xe8] sm:$0xff]
        %v2529 = vld [vmem:[#allocation13 + $0xf0] sm:$0xff]
        %v2530 = vld [vmem:[#allocation13 + $0xf8] sm:$0xff]
        %v2531 = vld [vmem:[#allocation13 + $0x100] sm:$0xff]
        %v2532 = vld [vmem:[#allocation13 + $0x108] sm:$0xff]
        %v2533 = vld [vmem:[#allocation13 + $0x110] sm:$0xff]
        %v2534 = vld [vmem:[#allocation13 + $0x118] sm:$0xff]
        %v2535 = vld [vmem:[#allocation13 + $0x120] sm:$0xff]
        %v2536 = vld [vmem:[#allocation13 + $0x128] sm:$0xff]
        %v2537 = vld [vmem:[#allocation13 + $0x130] sm:$0xff]
        %v2538 = vld [vmem:[#allocation13 + $0x138] sm:$0xff]
        %v2539 = vld [vmem:[#allocation13 + $0x140] sm:$0xff]
        %v2540 = vld [vmem:[#allocation13 + $0x148] sm:$0xff]
        %v2541 = vld [vmem:[#allocation13 + $0x150] sm:$0xff]
        %v2542 = vld [vmem:[#allocation13 + $0x158] sm:$0xff]
        %v2543 = vld [vmem:[#allocation13 + $0x160] sm:$0xff]
        %v2544 = vld [vmem:[#allocation13 + $0x168] sm:$0xff]
        %v2545 = vld [vmem:[#allocation13 + $0x170] sm:$0xff]
        %v2546 = vld [vmem:[#allocation13 + $0x178] sm:$0xff]
        %v2547 = vld [vmem:[#allocation13 + $0x180] sm:$0xff]
        %v2548 = vld [vmem:[#allocation13 + $0x188] sm:$0xff]
        %v2549 = vld [vmem:[#allocation13 + $0x190] sm:$0xff]
        %v2550 = vld [vmem:[#allocation13 + $0x198] sm:$0xff]
        %v2551 = vld [vmem:[#allocation13 + $0x1a0] sm:$0xff]
        %v2552 = vld [vmem:[#allocation13 + $0x1a8] sm:$0xff]
        %v2553 = vld [vmem:[#allocation13 + $0x1b0] sm:$0xff]
        %v2554 = vld [vmem:[#allocation13 + $0x1b8] sm:$0xff]
        %v2555 = vld [vmem:[#allocation13 + $0x1c0] sm:$0xff]
        %v2556 = vld [vmem:[#allocation13 + $0x1c8] sm:$0xff]
        %v2557 = vld [vmem:[#allocation13 + $0x1d0] sm:$0xff]
        %v2558 = vld [vmem:[#allocation13 + $0x1d8] sm:$0xff]
        %v2559 = vld [vmem:[#allocation13 + $0x1e0] sm:$0xff]
        %v2560 = vld [vmem:[#allocation13 + $0x1e8] sm:$0xff]
        %v2561 = vld [vmem:[#allocation13 + $0x1f0] sm:$0xff]
        %v2562 = vld [vmem:[#allocation13 + $0x1f8] sm:$0xff]
        %v2563 = vld [vmem:[%s12] sm:$0xf]
        %v2564 = vunpack.c.l.bf16 %v2563
        %v2566 = vperm.slane %v2564, 0
        %v2567 = vperm.slane %v2564, 2
        %v2568 = vperm.slane %v2564, 4
        %v2569 = vperm.slane %v2564, 6
        %v2574 = vperm.slane %v2566, 0
        %v2575 = vperm.slane %v2567, 0
        %v2576 = vperm.slane %v2568, 0
        %v2577 = vperm.slane %v2569, 0
        %v2642 = vunpack.c.l.b16 %v2499
        %v2643 = vunpack.c.h.b16 %v2499
        %v2644 = vunpack.c.l.b16 %v2500
        %v2645 = vunpack.c.h.b16 %v2500
        %v2646 = vunpack.c.l.b16 %v2501
        %v2647 = vunpack.c.h.b16 %v2501
        %v2648 = vunpack.c.l.b16 %v2502
        %v2649 = vunpack.c.h.b16 %v2502
        %v2650 = vunpack.c.l.b16 %v2503
        %v2651 = vunpack.c.h.b16 %v2503
        %v2652 = vunpack.c.l.b16 %v2504
        %v2653 = vunpack.c.h.b16 %v2504
        %v2654 = vunpack.c.l.b16 %v2505
        %v2655 = vunpack.c.h.b16 %v2505
        %v2656 = vunpack.c.l.b16 %v2506
        %v2657 = vunpack.c.h.b16 %v2506
        %v2658 = vunpack.c.l.b16 %v2507
        %v2659 = vunpack.c.h.b16 %v2507
        %v2660 = vunpack.c.l.b16 %v2508
        %v2661 = vunpack.c.h.b16 %v2508
        %v2662 = vunpack.c.l.b16 %v2509
        %v2663 = vunpack.c.h.b16 %v2509
        %v2664 = vunpack.c.l.b16 %v2510
        %v2665 = vunpack.c.h.b16 %v2510
        %v2666 = vunpack.c.l.b16 %v2511
        %v2667 = vunpack.c.h.b16 %v2511
        %v2668 = vunpack.c.l.b16 %v2512
        %v2669 = vunpack.c.h.b16 %v2512
        %v2670 = vunpack.c.l.b16 %v2513
        %v2671 = vunpack.c.h.b16 %v2513
        %v2672 = vunpack.c.l.b16 %v2514
        %v2673 = vunpack.c.h.b16 %v2514
        %v2674 = vunpack.c.l.b16 %v2515
        %v2675 = vunpack.c.h.b16 %v2515
        %v2676 = vunpack.c.l.b16 %v2516
        %v2677 = vunpack.c.h.b16 %v2516
        %v2678 = vunpack.c.l.b16 %v2517
        %v2679 = vunpack.c.h.b16 %v2517
        %v2680 = vunpack.c.l.b16 %v2518
        %v2681 = vunpack.c.h.b16 %v2518
        %v2682 = vunpack.c.l.b16 %v2519
        %v2683 = vunpack.c.h.b16 %v2519
        %v2684 = vunpack.c.l.b16 %v2520
        %v2685 = vunpack.c.h.b16 %v2520
        %v2686 = vunpack.c.l.b16 %v2521
        %v2687 = vunpack.c.h.b16 %v2521
        %v2688 = vunpack.c.l.b16 %v2522
        %v2689 = vunpack.c.h.b16 %v2522
        %v2690 = vunpack.c.l.b16 %v2523
        %v2691 = vunpack.c.h.b16 %v2523
        %v2692 = vunpack.c.l.b16 %v2524
        %v2693 = vunpack.c.h.b16 %v2524
        %v2694 = vunpack.c.l.b16 %v2525
        %v2695 = vunpack.c.h.b16 %v2525
        %v2696 = vunpack.c.l.b16 %v2526
        %v2697 = vunpack.c.h.b16 %v2526
        %v2698 = vunpack.c.l.b16 %v2527
        %v2699 = vunpack.c.h.b16 %v2527
        %v2700 = vunpack.c.l.b16 %v2528
        %v2701 = vunpack.c.h.b16 %v2528
        %v2702 = vunpack.c.l.b16 %v2529
        %v2703 = vunpack.c.h.b16 %v2529
        %v2704 = vunpack.c.l.b16 %v2530
        %v2705 = vunpack.c.h.b16 %v2530
        %v2706 = vunpack.c.l.b16 %v2531
        %v2707 = vunpack.c.h.b16 %v2531
        %v2708 = vunpack.c.l.b16 %v2532
        %v2709 = vunpack.c.h.b16 %v2532
        %v2710 = vunpack.c.l.b16 %v2533
        %v2711 = vunpack.c.h.b16 %v2533
        %v2712 = vunpack.c.l.b16 %v2534
        %v2713 = vunpack.c.h.b16 %v2534
        %v2714 = vunpack.c.l.b16 %v2535
        %v2715 = vunpack.c.h.b16 %v2535
        %v2716 = vunpack.c.l.b16 %v2536
        %v2717 = vunpack.c.h.b16 %v2536
        %v2718 = vunpack.c.l.b16 %v2537
        %v2719 = vunpack.c.h.b16 %v2537
        %v2720 = vunpack.c.l.b16 %v2538
        %v2721 = vunpack.c.h.b16 %v2538
        %v2722 = vunpack.c.l.b16 %v2539
        %v2723 = vunpack.c.h.b16 %v2539
        %v2724 = vunpack.c.l.b16 %v2540
        %v2725 = vunpack.c.h.b16 %v2540
        %v2726 = vunpack.c.l.b16 %v2541
        %v2727 = vunpack.c.h.b16 %v2541
        %v2728 = vunpack.c.l.b16 %v2542
        %v2729 = vunpack.c.h.b16 %v2542
        %v2730 = vunpack.c.l.b16 %v2543
        %v2731 = vunpack.c.h.b16 %v2543
        %v2732 = vunpack.c.l.b16 %v2544
        %v2733 = vunpack.c.h.b16 %v2544
        %v2734 = vunpack.c.l.b16 %v2545
        %v2735 = vunpack.c.h.b16 %v2545
        %v2736 = vunpack.c.l.b16 %v2546
        %v2737 = vunpack.c.h.b16 %v2546
        %v2738 = vunpack.c.l.b16 %v2547
        %v2739 = vunpack.c.h.b16 %v2547
        %v2740 = vunpack.c.l.b16 %v2548
        %v2741 = vunpack.c.h.b16 %v2548
        %v2742 = vunpack.c.l.b16 %v2549
        %v2743 = vunpack.c.h.b16 %v2549
        %v2744 = vunpack.c.l.b16 %v2550
        %v2745 = vunpack.c.h.b16 %v2550
        %v2746 = vunpack.c.l.b16 %v2551
        %v2747 = vunpack.c.h.b16 %v2551
        %v2748 = vunpack.c.l.b16 %v2552
        %v2749 = vunpack.c.h.b16 %v2552
        %v2750 = vunpack.c.l.b16 %v2553
        %v2751 = vunpack.c.h.b16 %v2553
        %v2752 = vunpack.c.l.b16 %v2554
        %v2753 = vunpack.c.h.b16 %v2554
        %v2754 = vunpack.c.l.b16 %v2555
        %v2755 = vunpack.c.h.b16 %v2555
        %v2756 = vunpack.c.l.b16 %v2556
        %v2757 = vunpack.c.h.b16 %v2556
        %v2758 = vunpack.c.l.b16 %v2557
        %v2759 = vunpack.c.h.b16 %v2557
        %v2760 = vunpack.c.l.b16 %v2558
        %v2761 = vunpack.c.h.b16 %v2558
        %v2762 = vunpack.c.l.b16 %v2559
        %v2763 = vunpack.c.h.b16 %v2559
        %v2764 = vunpack.c.l.b16 %v2560
        %v2765 = vunpack.c.h.b16 %v2560
        %v2766 = vunpack.c.l.b16 %v2561
        %v2767 = vunpack.c.h.b16 %v2561
        %v2768 = vunpack.c.l.b16 %v2562
        %v2769 = vunpack.c.h.b16 %v2562
        %v2770 = vpack.c.b16 %v2646, %v2642
        %v2771 = vpack.c.b16 %v2647, %v2643
        %v2772 = vpack.c.b16 %v2648, %v2644
        %v2773 = vpack.c.b16 %v2649, %v2645
        %v2774 = vpack.c.b16 %v2654, %v2650
        %v2775 = vpack.c.b16 %v2655, %v2651
        %v2776 = vpack.c.b16 %v2656, %v2652
        %v2777 = vpack.c.b16 %v2657, %v2653
        %v2778 = vpack.c.b16 %v2662, %v2658
        %v2779 = vpack.c.b16 %v2663, %v2659
        %v2780 = vpack.c.b16 %v2664, %v2660
        %v2781 = vpack.c.b16 %v2665, %v2661
        %v2782 = vpack.c.b16 %v2670, %v2666
        %v2783 = vpack.c.b16 %v2671, %v2667
        %v2784 = vpack.c.b16 %v2672, %v2668
        %v2785 = vpack.c.b16 %v2673, %v2669
        %v2786 = vpack.c.b16 %v2678, %v2674
        %v2787 = vpack.c.b16 %v2679, %v2675
        %v2788 = vpack.c.b16 %v2680, %v2676
        %v2789 = vpack.c.b16 %v2681, %v2677
        %v2790 = vpack.c.b16 %v2686, %v2682
        %v2791 = vpack.c.b16 %v2687, %v2683
        %v2792 = vpack.c.b16 %v2688, %v2684
        %v2793 = vpack.c.b16 %v2689, %v2685
        %v2794 = vpack.c.b16 %v2694, %v2690
        %v2795 = vpack.c.b16 %v2695, %v2691
        %v2796 = vpack.c.b16 %v2696, %v2692
        %v2797 = vpack.c.b16 %v2697, %v2693
        %v2798 = vpack.c.b16 %v2702, %v2698
        %v2799 = vpack.c.b16 %v2703, %v2699
        %v2800 = vpack.c.b16 %v2704, %v2700
        %v2801 = vpack.c.b16 %v2705, %v2701
        %v2802 = vpack.c.b16 %v2710, %v2706
        %v2803 = vpack.c.b16 %v2711, %v2707
        %v2804 = vpack.c.b16 %v2712, %v2708
        %v2805 = vpack.c.b16 %v2713, %v2709
        %v2806 = vpack.c.b16 %v2718, %v2714
        %v2807 = vpack.c.b16 %v2719, %v2715
        %v2808 = vpack.c.b16 %v2720, %v2716
        %v2809 = vpack.c.b16 %v2721, %v2717
        %v2810 = vpack.c.b16 %v2726, %v2722
        %v2811 = vpack.c.b16 %v2727, %v2723
        %v2812 = vpack.c.b16 %v2728, %v2724
        %v2813 = vpack.c.b16 %v2729, %v2725
        %v2814 = vpack.c.b16 %v2734, %v2730
        %v2815 = vpack.c.b16 %v2735, %v2731
        %v2816 = vpack.c.b16 %v2736, %v2732
        %v2817 = vpack.c.b16 %v2737, %v2733
        %v2818 = vpack.c.b16 %v2742, %v2738
        %v2819 = vpack.c.b16 %v2743, %v2739
        %v2820 = vpack.c.b16 %v2744, %v2740
        %v2821 = vpack.c.b16 %v2745, %v2741
        %v2822 = vpack.c.b16 %v2750, %v2746
        %v2823 = vpack.c.b16 %v2751, %v2747
        %v2824 = vpack.c.b16 %v2752, %v2748
        %v2825 = vpack.c.b16 %v2753, %v2749
        %v2826 = vpack.c.b16 %v2758, %v2754
        %v2827 = vpack.c.b16 %v2759, %v2755
        %v2828 = vpack.c.b16 %v2760, %v2756
        %v2829 = vpack.c.b16 %v2761, %v2757
        %v2830 = vpack.c.b16 %v2766, %v2762
        %v2831 = vpack.c.b16 %v2767, %v2763
        %v2832 = vpack.c.b16 %v2768, %v2764
        %v2833 = vpack.c.b16 %v2769, %v2765
        %2898 = vmatpush.bf16.msra.mxu0 %v2798
        %2899 = vmatpush.bf16.msra.mxu0 %v2794
        %2900 = vmatpush.bf16.msra.mxu0 %v2790
        %2901 = vmatpush.bf16.msra.mxu0 %v2786
        %2902 = vmatpush.bf16.msra.mxu0 %v2782
        %2903 = vmatpush.bf16.msra.mxu0 %v2778
        %2904 = vmatpush.bf16.msra.mxu0 %v2774
        %2905 = vmatpush.bf16.msra.mxu0 %v2770
        %2906 = vmatmul.bf16.gmra.mxu0 %v2497
        %v2907 = vpop.f32.mrf.mxu0
        %v2908 = vadd.f32 %v2574, %v2907
        %v2909 = vpop.f32.mrf.mxu0
        %v2910 = vadd.f32 %v2574, %v2909
        %2911 = vdwg.mxu0
        %2912 = vmatpush.bf16.msra.mxu0 %v2830
        %2913 = vmatpush.bf16.msra.mxu0 %v2826
        %2914 = vmatpush.bf16.msra.mxu0 %v2822
        %2915 = vmatpush.bf16.msra.mxu0 %v2818
        %2916 = vmatpush.bf16.msra.mxu0 %v2814
        %2917 = vmatpush.bf16.msra.mxu0 %v2810
        %2918 = vmatpush.bf16.msra.mxu0 %v2806
        %2919 = vmatpush.bf16.msra.mxu0 %v2802
        %2920 = vmatmul.bf16.gmra.mxu0 %v2498
        %v2921 = vpop.f32.mrf.mxu0
        %v2922 = vadd.f32 %v2908, %v2921
        %v2923 = vpop.f32.mrf.mxu0
        %v2924 = vadd.f32 %v2910, %v2923
        %2925 = vdwg.mxu0
        %2926 = vmatpush.bf16.msra.mxu0 %v2799
        %2927 = vmatpush.bf16.msra.mxu0 %v2795
        %2928 = vmatpush.bf16.msra.mxu0 %v2791
        %2929 = vmatpush.bf16.msra.mxu0 %v2787
        %2930 = vmatpush.bf16.msra.mxu0 %v2783
        %2931 = vmatpush.bf16.msra.mxu0 %v2779
        %2932 = vmatpush.bf16.msra.mxu0 %v2775
        %2933 = vmatpush.bf16.msra.mxu0 %v2771
        %2934 = vmatmul.bf16.gmra.mxu0 %v2497
        %v2935 = vpop.f32.mrf.mxu0
        %v2936 = vadd.f32 %v2575, %v2935
        %v2937 = vpop.f32.mrf.mxu0
        %v2938 = vadd.f32 %v2575, %v2937
        %2939 = vdwg.mxu0
        %2940 = vmatpush.bf16.msra.mxu0 %v2831
        %2941 = vmatpush.bf16.msra.mxu0 %v2827
        %2942 = vmatpush.bf16.msra.mxu0 %v2823
        %2943 = vmatpush.bf16.msra.mxu0 %v2819
        %2944 = vmatpush.bf16.msra.mxu0 %v2815
        %2945 = vmatpush.bf16.msra.mxu0 %v2811
        %2946 = vmatpush.bf16.msra.mxu0 %v2807
        %2947 = vmatpush.bf16.msra.mxu0 %v2803
        %2948 = vmatmul.bf16.gmra.mxu0 %v2498
        %v2949 = vpop.f32.mrf.mxu0
        %v2950 = vadd.f32 %v2936, %v2949
        %v2951 = vpop.f32.mrf.mxu0
        %v2952 = vadd.f32 %v2938, %v2951
        %2953 = vdwg.mxu0
        %2954 = vmatpush.bf16.msra.mxu0 %v2800
        %2955 = vmatpush.bf16.msra.mxu0 %v2796
        %2956 = vmatpush.bf16.msra.mxu0 %v2792
        %2957 = vmatpush.bf16.msra.mxu0 %v2788
        %2958 = vmatpush.bf16.msra.mxu0 %v2784
        %2959 = vmatpush.bf16.msra.mxu0 %v2780
        %2960 = vmatpush.bf16.msra.mxu0 %v2776
        %2961 = vmatpush.bf16.msra.mxu0 %v2772
        %2962 = vmatmul.bf16.gmra.mxu0 %v2497
        %v2963 = vpop.f32.mrf.mxu0
        %v2964 = vadd.f32 %v2576, %v2963
        %v2965 = vpop.f32.mrf.mxu0
        %v2966 = vadd.f32 %v2576, %v2965
        %2967 = vdwg.mxu0
        %2968 = vmatpush.bf16.msra.mxu0 %v2832
        %2969 = vmatpush.bf16.msra.mxu0 %v2828
        %2970 = vmatpush.bf16.msra.mxu0 %v2824
        %2971 = vmatpush.bf16.msra.mxu0 %v2820
        %2972 = vmatpush.bf16.msra.mxu0 %v2816
        %2973 = vmatpush.bf16.msra.mxu0 %v2812
        %2974 = vmatpush.bf16.msra.mxu0 %v2808
        %2975 = vmatpush.bf16.msra.mxu0 %v2804
        %2976 = vmatmul.bf16.gmra.mxu0 %v2498
        %v2977 = vpop.f32.mrf.mxu0
        %v2978 = vadd.f32 %v2964, %v2977
        %v2979 = vpop.f32.mrf.mxu0
        %v2980 = vadd.f32 %v2966, %v2979
        %2981 = vdwg.mxu0
        %2982 = vmatpush.bf16.msra.mxu0 %v2801
        %2983 = vmatpush.bf16.msra.mxu0 %v2797
        %2984 = vmatpush.bf16.msra.mxu0 %v2793
        %2985 = vmatpush.bf16.msra.mxu0 %v2789
        %2986 = vmatpush.bf16.msra.mxu0 %v2785
        %2987 = vmatpush.bf16.msra.mxu0 %v2781
        %2988 = vmatpush.bf16.msra.mxu0 %v2777
        %2989 = vmatpush.bf16.msra.mxu0 %v2773
        %2990 = vmatmul.bf16.gmra.mxu0 %v2497
        %v2991 = vpop.f32.mrf.mxu0
        %v2992 = vadd.f32 %v2577, %v2991
        %v2993 = vpop.f32.mrf.mxu0
        %v2994 = vadd.f32 %v2577, %v2993
        %2995 = vdwg.mxu0
        %2996 = vmatpush.bf16.msra.mxu0 %v2833
        %2997 = vmatpush.bf16.msra.mxu0 %v2829
        %2998 = vmatpush.bf16.msra.mxu0 %v2825
        %2999 = vmatpush.bf16.msra.mxu0 %v2821
        %3000 = vmatpush.bf16.msra.mxu0 %v2817
        %3001 = vmatpush.bf16.msra.mxu0 %v2813
        %3002 = vmatpush.bf16.msra.mxu0 %v2809
        %3003 = vmatpush.bf16.msra.mxu0 %v2805
        %3004 = vmatmul.bf16.gmra.mxu0 %v2498
        %v3005 = vpop.f32.mrf.mxu0
        %v3006 = vadd.f32 %v2992, %v3005
        %v3007 = vpop.f32.mrf.mxu0
        %v3008 = vadd.f32 %v2994, %v3007
        %3009 = vdwg.mxu0
        %v3010 = vmul.f32 %v2922, %v2922
        %v3011 = vmul.f32 %v2950, %v2950
        %v3012 = vmul.f32 %v2978, %v2978
        %v3013 = vmul.f32 %v3006, %v3006
        %v3014 = vmul.f32 %v2924, %v2924
        %v3015 = vmul.f32 %v2952, %v2952
        %v3016 = vmul.f32 %v2980, %v2980
        %v3017 = vmul.f32 %v3008, %v3008
        %v3018 = vmul.f32 %v2922, %v3010
        %v3019 = vmul.f32 %v2950, %v3011
        %v3020 = vmul.f32 %v2978, %v3012
        %v3021 = vmul.f32 %v3006, %v3013
        %v3022 = vmul.f32 %v2924, %v3014
        %v3023 = vmul.f32 %v2952, %v3015
        %v3024 = vmul.f32 %v2980, %v3016
        %v3025 = vmul.f32 %v3008, %v3017
        %v3026 = vmul.f32 %v3018, 0.044715
        %v3027 = vmul.f32 %v3019, 0.044715
        %v3028 = vmul.f32 %v3020, 0.044715
        %v3029 = vmul.f32 %v3021, 0.044715
        %v3030 = vmul.f32 %v3022, 0.044715
        %v3031 = vmul.f32 %v3023, 0.044715
        %v3032 = vmul.f32 %v3024, 0.044715
        %v3033 = vmul.f32 %v3025, 0.044715
        %v3034 = vadd.f32 %v2922, %v3026
        %v3035 = vadd.f32 %v2950, %v3027
        %v3036 = vadd.f32 %v2978, %v3028
        %v3037 = vadd.f32 %v3006, %v3029
        %v3038 = vadd.f32 %v2924, %v3030
        %v3039 = vadd.f32 %v2952, %v3031
        %v3040 = vadd.f32 %v2980, %v3032
        %v3041 = vadd.f32 %v3008, %v3033
        %v3042 = vmul.f32 %v3034, 0.7978846
        %v3043 = vmul.f32 %v3035, 0.7978846
        %v3044 = vmul.f32 %v3036, 0.7978846
        %v3045 = vmul.f32 %v3037, 0.7978846
        %v3046 = vmul.f32 %v3038, 0.7978846
        %v3047 = vmul.f32 %v3039, 0.7978846
        %v3048 = vmul.f32 %v3040, 0.7978846
        %v3049 = vmul.f32 %v3041, 0.7978846
        %v3050 = vtanh.pop %v3042
        %v3051 = vtanh.pop %v3043
        %v3052 = vtanh.pop %v3044
        %v3053 = vtanh.pop %v3045
        %v3054 = vtanh.pop %v3046
        %v3055 = vtanh.pop %v3047
        %v3056 = vtanh.pop %v3048
        %v3057 = vtanh.pop %v3049
        %v3058 = vadd.f32 %v3050, 1.0
        %v3059 = vadd.f32 %v3051, 1.0
        %v3060 = vadd.f32 %v3052, 1.0
        %v3061 = vadd.f32 %v3053, 1.0
        %v3062 = vadd.f32 %v3054, 1.0
        %v3063 = vadd.f32 %v3055, 1.0
        %v3064 = vadd.f32 %v3056, 1.0
        %v3065 = vadd.f32 %v3057, 1.0
        %v3066 = vmul.f32 %v3058, 0.5
        %v3067 = vmul.f32 %v3059, 0.5
        %v3068 = vmul.f32 %v3060, 0.5
        %v3069 = vmul.f32 %v3061, 0.5
        %v3070 = vmul.f32 %v3062, 0.5
        %v3071 = vmul.f32 %v3063, 0.5
        %v3072 = vmul.f32 %v3064, 0.5
        %v3073 = vmul.f32 %v3065, 0.5
        %v3074 = vmul.f32 %v2922, %v3066
        %v3075 = vmul.f32 %v2950, %v3067
        %v3076 = vmul.f32 %v2978, %v3068
        %v3077 = vmul.f32 %v3006, %v3069
        %v3078 = vmul.f32 %v2924, %v3070
        %v3079 = vmul.f32 %v2952, %v3071
        %v3080 = vmul.f32 %v2980, %v3072
        %v3081 = vmul.f32 %v3008, %v3073
        %v3082 = vpack.c.bf16 %v3078, %v3074
        %v3083 = vpack.c.bf16 %v3079, %v3075
        %v3084 = vpack.c.bf16 %v3080, %v3076
        %v3085 = vpack.c.bf16 %v3081, %v3077
        %v3086 = vld [vmem:[#allocation15] sm:$0xff]
        %v3087 = vld [vmem:[#allocation15 + $0x8] sm:$0xff]
        %v3088 = vld [vmem:[#allocation15 + $0x10] sm:$0xff]
        %v3089 = vld [vmem:[#allocation15 + $0x18] sm:$0xff]
        %v3090 = vld [vmem:[#allocation15 + $0x20] sm:$0xff]
        %v3091 = vld [vmem:[#allocation15 + $0x28] sm:$0xff]
        %v3092 = vld [vmem:[#allocation15 + $0x30] sm:$0xff]
        %v3093 = vld [vmem:[#allocation15 + $0x38] sm:$0xff]
        %v3094 = vld [vmem:[#allocation15 + $0x40] sm:$0xff]
        %v3095 = vld [vmem:[#allocation15 + $0x48] sm:$0xff]
        %v3096 = vld [vmem:[#allocation15 + $0x50] sm:$0xff]
        %v3097 = vld [vmem:[#allocation15 + $0x58] sm:$0xff]
        %v3098 = vld [vmem:[#allocation15 + $0x60] sm:$0xff]
        %v3099 = vld [vmem:[#allocation15 + $0x68] sm:$0xff]
        %v3100 = vld [vmem:[#allocation15 + $0x70] sm:$0xff]
        %v3101 = vld [vmem:[#allocation15 + $0x78] sm:$0xff]
        %v3102 = vld [vmem:[#allocation15 + $0x80] sm:$0xff]
        %v3103 = vld [vmem:[#allocation15 + $0x88] sm:$0xff]
        %v3104 = vld [vmem:[#allocation15 + $0x90] sm:$0xff]
        %v3105 = vld [vmem:[#allocation15 + $0x98] sm:$0xff]
        %v3106 = vld [vmem:[#allocation15 + $0xa0] sm:$0xff]
        %v3107 = vld [vmem:[#allocation15 + $0xa8] sm:$0xff]
        %v3108 = vld [vmem:[#allocation15 + $0xb0] sm:$0xff]
        %v3109 = vld [vmem:[#allocation15 + $0xb8] sm:$0xff]
        %v3110 = vld [vmem:[#allocation15 + $0xc0] sm:$0xff]
        %v3111 = vld [vmem:[#allocation15 + $0xc8] sm:$0xff]
        %v3112 = vld [vmem:[#allocation15 + $0xd0] sm:$0xff]
        %v3113 = vld [vmem:[#allocation15 + $0xd8] sm:$0xff]
        %v3114 = vld [vmem:[#allocation15 + $0xe0] sm:$0xff]
        %v3115 = vld [vmem:[#allocation15 + $0xe8] sm:$0xff]
        %v3116 = vld [vmem:[#allocation15 + $0xf0] sm:$0xff]
        %v3117 = vld [vmem:[#allocation15 + $0xf8] sm:$0xff]
        %v3118 = vld [vmem:[#allocation15 + $0x100] sm:$0xff]
        %v3119 = vld [vmem:[#allocation15 + $0x108] sm:$0xff]
        %v3120 = vld [vmem:[#allocation15 + $0x110] sm:$0xff]
        %v3121 = vld [vmem:[#allocation15 + $0x118] sm:$0xff]
        %v3122 = vld [vmem:[#allocation15 + $0x120] sm:$0xff]
        %v3123 = vld [vmem:[#allocation15 + $0x128] sm:$0xff]
        %v3124 = vld [vmem:[#allocation15 + $0x130] sm:$0xff]
        %v3125 = vld [vmem:[#allocation15 + $0x138] sm:$0xff]
        %v3126 = vld [vmem:[#allocation15 + $0x140] sm:$0xff]
        %v3127 = vld [vmem:[#allocation15 + $0x148] sm:$0xff]
        %v3128 = vld [vmem:[#allocation15 + $0x150] sm:$0xff]
        %v3129 = vld [vmem:[#allocation15 + $0x158] sm:$0xff]
        %v3130 = vld [vmem:[#allocation15 + $0x160] sm:$0xff]
        %v3131 = vld [vmem:[#allocation15 + $0x168] sm:$0xff]
        %v3132 = vld [vmem:[#allocation15 + $0x170] sm:$0xff]
        %v3133 = vld [vmem:[#allocation15 + $0x178] sm:$0xff]
        %v3134 = vld [vmem:[#allocation15 + $0x180] sm:$0xff]
        %v3135 = vld [vmem:[#allocation15 + $0x188] sm:$0xff]
        %v3136 = vld [vmem:[#allocation15 + $0x190] sm:$0xff]
        %v3137 = vld [vmem:[#allocation15 + $0x198] sm:$0xff]
        %v3138 = vld [vmem:[#allocation15 + $0x1a0] sm:$0xff]
        %v3139 = vld [vmem:[#allocation15 + $0x1a8] sm:$0xff]
        %v3140 = vld [vmem:[#allocation15 + $0x1b0] sm:$0xff]
        %v3141 = vld [vmem:[#allocation15 + $0x1b8] sm:$0xff]
        %v3142 = vld [vmem:[#allocation15 + $0x1c0] sm:$0xff]
        %v3143 = vld [vmem:[#allocation15 + $0x1c8] sm:$0xff]
        %v3144 = vld [vmem:[#allocation15 + $0x1d0] sm:$0xff]
        %v3145 = vld [vmem:[#allocation15 + $0x1d8] sm:$0xff]
        %v3146 = vld [vmem:[#allocation15 + $0x1e0] sm:$0xff]
        %v3147 = vld [vmem:[#allocation15 + $0x1e8] sm:$0xff]
        %v3148 = vld [vmem:[#allocation15 + $0x1f0] sm:$0xff]
        %v3149 = vld [vmem:[#allocation15 + $0x1f8] sm:$0xff]
        %v3150 = vld [vmem:[%s14] sm:$0x3]
        %v3151 = vunpack.c.l.bf16 %v3150
        %v3153 = vperm.slane %v3151, 0
        %v3154 = vperm.slane %v3151, 2
        %v3157 = vperm.slane %v3153, 0
        %v3158 = vperm.slane %v3154, 0
        %v3223 = vunpack.c.l.b16 %v3086
        %v3224 = vunpack.c.h.b16 %v3086
        %v3225 = vunpack.c.l.b16 %v3087
        %v3226 = vunpack.c.h.b16 %v3087
        %v3227 = vunpack.c.l.b16 %v3088
        %v3228 = vunpack.c.h.b16 %v3088
        %v3229 = vunpack.c.l.b16 %v3089
        %v3230 = vunpack.c.h.b16 %v3089
        %v3231 = vunpack.c.l.b16 %v3090
        %v3232 = vunpack.c.h.b16 %v3090
        %v3233 = vunpack.c.l.b16 %v3091
        %v3234 = vunpack.c.h.b16 %v3091
        %v3235 = vunpack.c.l.b16 %v3092
        %v3236 = vunpack.c.h.b16 %v3092
        %v3237 = vunpack.c.l.b16 %v3093
        %v3238 = vunpack.c.h.b16 %v3093
        %v3239 = vunpack.c.l.b16 %v3094
        %v3240 = vunpack.c.h.b16 %v3094
        %v3241 = vunpack.c.l.b16 %v3095
        %v3242 = vunpack.c.h.b16 %v3095
        %v3243 = vunpack.c.l.b16 %v3096
        %v3244 = vunpack.c.h.b16 %v3096
        %v3245 = vunpack.c.l.b16 %v3097
        %v3246 = vunpack.c.h.b16 %v3097
        %v3247 = vunpack.c.l.b16 %v3098
        %v3248 = vunpack.c.h.b16 %v3098
        %v3249 = vunpack.c.l.b16 %v3099
        %v3250 = vunpack.c.h.b16 %v3099
        %v3251 = vunpack.c.l.b16 %v3100
        %v3252 = vunpack.c.h.b16 %v3100
        %v3253 = vunpack.c.l.b16 %v3101
        %v3254 = vunpack.c.h.b16 %v3101
        %v3255 = vunpack.c.l.b16 %v3102
        %v3256 = vunpack.c.h.b16 %v3102
        %v3257 = vunpack.c.l.b16 %v3103
        %v3258 = vunpack.c.h.b16 %v3103
        %v3259 = vunpack.c.l.b16 %v3104
        %v3260 = vunpack.c.h.b16 %v3104
        %v3261 = vunpack.c.l.b16 %v3105
        %v3262 = vunpack.c.h.b16 %v3105
        %v3263 = vunpack.c.l.b16 %v3106
        %v3264 = vunpack.c.h.b16 %v3106
        %v3265 = vunpack.c.l.b16 %v3107
        %v3266 = vunpack.c.h.b16 %v3107
        %v3267 = vunpack.c.l.b16 %v3108
        %v3268 = vunpack.c.h.b16 %v3108
        %v3269 = vunpack.c.l.b16 %v3109
        %v3270 = vunpack.c.h.b16 %v3109
        %v3271 = vunpack.c.l.b16 %v3110
        %v3272 = vunpack.c.h.b16 %v3110
        %v3273 = vunpack.c.l.b16 %v3111
        %v3274 = vunpack.c.h.b16 %v3111
        %v3275 = vunpack.c.l.b16 %v3112
        %v3276 = vunpack.c.h.b16 %v3112
        %v3277 = vunpack.c.l.b16 %v3113
        %v3278 = vunpack.c.h.b16 %v3113
        %v3279 = vunpack.c.l.b16 %v3114
        %v3280 = vunpack.c.h.b16 %v3114
        %v3281 = vunpack.c.l.b16 %v3115
        %v3282 = vunpack.c.h.b16 %v3115
        %v3283 = vunpack.c.l.b16 %v3116
        %v3284 = vunpack.c.h.b16 %v3116
        %v3285 = vunpack.c.l.b16 %v3117
        %v3286 = vunpack.c.h.b16 %v3117
        %v3287 = vunpack.c.l.b16 %v3118
        %v3288 = vunpack.c.h.b16 %v3118
        %v3289 = vunpack.c.l.b16 %v3119
        %v3290 = vunpack.c.h.b16 %v3119
        %v3291 = vunpack.c.l.b16 %v3120
        %v3292 = vunpack.c.h.b16 %v3120
        %v3293 = vunpack.c.l.b16 %v3121
        %v3294 = vunpack.c.h.b16 %v3121
        %v3295 = vunpack.c.l.b16 %v3122
        %v3296 = vunpack.c.h.b16 %v3122
        %v3297 = vunpack.c.l.b16 %v3123
        %v3298 = vunpack.c.h.b16 %v3123
        %v3299 = vunpack.c.l.b16 %v3124
        %v3300 = vunpack.c.h.b16 %v3124
        %v3301 = vunpack.c.l.b16 %v3125
        %v3302 = vunpack.c.h.b16 %v3125
        %v3303 = vunpack.c.l.b16 %v3126
        %v3304 = vunpack.c.h.b16 %v3126
        %v3305 = vunpack.c.l.b16 %v3127
        %v3306 = vunpack.c.h.b16 %v3127
        %v3307 = vunpack.c.l.b16 %v3128
        %v3308 = vunpack.c.h.b16 %v3128
        %v3309 = vunpack.c.l.b16 %v3129
        %v3310 = vunpack.c.h.b16 %v3129
        %v3311 = vunpack.c.l.b16 %v3130
        %v3312 = vunpack.c.h.b16 %v3130
        %v3313 = vunpack.c.l.b16 %v3131
        %v3314 = vunpack.c.h.b16 %v3131
        %v3315 = vunpack.c.l.b16 %v3132
        %v3316 = vunpack.c.h.b16 %v3132
        %v3317 = vunpack.c.l.b16 %v3133
        %v3318 = vunpack.c.h.b16 %v3133
        %v3319 = vunpack.c.l.b16 %v3134
        %v3320 = vunpack.c.h.b16 %v3134
        %v3321 = vunpack.c.l.b16 %v3135
        %v3322 = vunpack.c.h.b16 %v3135
        %v3323 = vunpack.c.l.b16 %v3136
        %v3324 = vunpack.c.h.b16 %v3136
        %v3325 = vunpack.c.l.b16 %v3137
        %v3326 = vunpack.c.h.b16 %v3137
        %v3327 = vunpack.c.l.b16 %v3138
        %v3328 = vunpack.c.h.b16 %v3138
        %v3329 = vunpack.c.l.b16 %v3139
        %v3330 = vunpack.c.h.b16 %v3139
        %v3331 = vunpack.c.l.b16 %v3140
        %v3332 = vunpack.c.h.b16 %v3140
        %v3333 = vunpack.c.l.b16 %v3141
        %v3334 = vunpack.c.h.b16 %v3141
        %v3335 = vunpack.c.l.b16 %v3142
        %v3336 = vunpack.c.h.b16 %v3142
        %v3337 = vunpack.c.l.b16 %v3143
        %v3338 = vunpack.c.h.b16 %v3143
        %v3339 = vunpack.c.l.b16 %v3144
        %v3340 = vunpack.c.h.b16 %v3144
        %v3341 = vunpack.c.l.b16 %v3145
        %v3342 = vunpack.c.h.b16 %v3145
        %v3343 = vunpack.c.l.b16 %v3146
        %v3344 = vunpack.c.h.b16 %v3146
        %v3345 = vunpack.c.l.b16 %v3147
        %v3346 = vunpack.c.h.b16 %v3147
        %v3347 = vunpack.c.l.b16 %v3148
        %v3348 = vunpack.c.h.b16 %v3148
        %v3349 = vunpack.c.l.b16 %v3149
        %v3350 = vunpack.c.h.b16 %v3149
        %v3351 = vpack.c.b16 %v3225, %v3223
        %v3352 = vpack.c.b16 %v3226, %v3224
        %v3353 = vpack.c.b16 %v3229, %v3227
        %v3354 = vpack.c.b16 %v3230, %v3228
        %v3355 = vpack.c.b16 %v3233, %v3231
        %v3356 = vpack.c.b16 %v3234, %v3232
        %v3357 = vpack.c.b16 %v3237, %v3235
        %v3358 = vpack.c.b16 %v3238, %v3236
        %v3359 = vpack.c.b16 %v3241, %v3239
        %v3360 = vpack.c.b16 %v3242, %v3240
        %v3361 = vpack.c.b16 %v3245, %v3243
        %v3362 = vpack.c.b16 %v3246, %v3244
        %v3363 = vpack.c.b16 %v3249, %v3247
        %v3364 = vpack.c.b16 %v3250, %v3248
        %v3365 = vpack.c.b16 %v3253, %v3251
        %v3366 = vpack.c.b16 %v3254, %v3252
        %v3367 = vpack.c.b16 %v3257, %v3255
        %v3368 = vpack.c.b16 %v3258, %v3256
        %v3369 = vpack.c.b16 %v3261, %v3259
        %v3370 = vpack.c.b16 %v3262, %v3260
        %v3371 = vpack.c.b16 %v3265, %v3263
        %v3372 = vpack.c.b16 %v3266, %v3264
        %v3373 = vpack.c.b16 %v3269, %v3267
        %v3374 = vpack.c.b16 %v3270, %v3268
        %v3375 = vpack.c.b16 %v3273, %v3271
        %v3376 = vpack.c.b16 %v3274, %v3272
        %v3377 = vpack.c.b16 %v3277, %v3275
        %v3378 = vpack.c.b16 %v3278, %v3276
        %v3379 = vpack.c.b16 %v3281, %v3279
        %v3380 = vpack.c.b16 %v3282, %v3280
        %v3381 = vpack.c.b16 %v3285, %v3283
        %v3382 = vpack.c.b16 %v3286, %v3284
        %v3383 = vpack.c.b16 %v3289, %v3287
        %v3384 = vpack.c.b16 %v3290, %v3288
        %v3385 = vpack.c.b16 %v3293, %v3291
        %v3386 = vpack.c.b16 %v3294, %v3292
        %v3387 = vpack.c.b16 %v3297, %v3295
        %v3388 = vpack.c.b16 %v3298, %v3296
        %v3389 = vpack.c.b16 %v3301, %v3299
        %v3390 = vpack.c.b16 %v3302, %v3300
        %v3391 = vpack.c.b16 %v3305, %v3303
        %v3392 = vpack.c.b16 %v3306, %v3304
        %v3393 = vpack.c.b16 %v3309, %v3307
        %v3394 = vpack.c.b16 %v3310, %v3308
        %v3395 = vpack.c.b16 %v3313, %v3311
        %v3396 = vpack.c.b16 %v3314, %v3312
        %v3397 = vpack.c.b16 %v3317, %v3315
        %v3398 = vpack.c.b16 %v3318, %v3316
        %v3399 = vpack.c.b16 %v3321, %v3319
        %v3400 = vpack.c.b16 %v3322, %v3320
        %v3401 = vpack.c.b16 %v3325, %v3323
        %v3402 = vpack.c.b16 %v3326, %v3324
        %v3403 = vpack.c.b16 %v3329, %v3327
        %v3404 = vpack.c.b16 %v3330, %v3328
        %v3405 = vpack.c.b16 %v3333, %v3331
        %v3406 = vpack.c.b16 %v3334, %v3332
        %v3407 = vpack.c.b16 %v3337, %v3335
        %v3408 = vpack.c.b16 %v3338, %v3336
        %v3409 = vpack.c.b16 %v3341, %v3339
        %v3410 = vpack.c.b16 %v3342, %v3340
        %v3411 = vpack.c.b16 %v3345, %v3343
        %v3412 = vpack.c.b16 %v3346, %v3344
        %v3413 = vpack.c.b16 %v3349, %v3347
        %v3414 = vpack.c.b16 %v3350, %v3348
        %3479 = vmatpush.bf16.msra.mxu0 %v3365
        %3480 = vmatpush.bf16.msra.mxu0 %v3363
        %3481 = vmatpush.bf16.msra.mxu0 %v3361
        %3482 = vmatpush.bf16.msra.mxu0 %v3359
        %3483 = vmatpush.bf16.msra.mxu0 %v3357
        %3484 = vmatpush.bf16.msra.mxu0 %v3355
        %3485 = vmatpush.bf16.msra.mxu0 %v3353
        %3486 = vmatpush.bf16.msra.mxu0 %v3351
        %3487 = vmatmul.bf16.gmra.mxu0 %v3082
        %v3488 = vpop.f32.mrf.mxu0
        %v3489 = vadd.f32 %v3157, %v3488
        %v3490 = vpop.f32.mrf.mxu0
        %v3491 = vadd.f32 %v3157, %v3490
        %3492 = vdwg.mxu0
        %3493 = vmatpush.bf16.msra.mxu0 %v3381
        %3494 = vmatpush.bf16.msra.mxu0 %v3379
        %3495 = vmatpush.bf16.msra.mxu0 %v3377
        %3496 = vmatpush.bf16.msra.mxu0 %v3375
        %3497 = vmatpush.bf16.msra.mxu0 %v3373
        %3498 = vmatpush.bf16.msra.mxu0 %v3371
        %3499 = vmatpush.bf16.msra.mxu0 %v3369
        %3500 = vmatpush.bf16.msra.mxu0 %v3367
        %3501 = vmatmul.bf16.gmra.mxu0 %v3083
        %v3502 = vpop.f32.mrf.mxu0
        %v3503 = vadd.f32 %v3489, %v3502
        %v3504 = vpop.f32.mrf.mxu0
        %v3505 = vadd.f32 %v3491, %v3504
        %3506 = vdwg.mxu0
        %3507 = vmatpush.bf16.msra.mxu0 %v3397
        %3508 = vmatpush.bf16.msra.mxu0 %v3395
        %3509 = vmatpush.bf16.msra.mxu0 %v3393
        %3510 = vmatpush.bf16.msra.mxu0 %v3391
        %3511 = vmatpush.bf16.msra.mxu0 %v3389
        %3512 = vmatpush.bf16.msra.mxu0 %v3387
        %3513 = vmatpush.bf16.msra.mxu0 %v3385
        %3514 = vmatpush.bf16.msra.mxu0 %v3383
        %3515 = vmatmul.bf16.gmra.mxu0 %v3084
        %v3516 = vpop.f32.mrf.mxu0
        %v3517 = vadd.f32 %v3503, %v3516
        %v3518 = vpop.f32.mrf.mxu0
        %v3519 = vadd.f32 %v3505, %v3518
        %3520 = vdwg.mxu0
        %3521 = vmatpush.bf16.msra.mxu0 %v3413
        %3522 = vmatpush.bf16.msra.mxu0 %v3411
        %3523 = vmatpush.bf16.msra.mxu0 %v3409
        %3524 = vmatpush.bf16.msra.mxu0 %v3407
        %3525 = vmatpush.bf16.msra.mxu0 %v3405
        %3526 = vmatpush.bf16.msra.mxu0 %v3403
        %3527 = vmatpush.bf16.msra.mxu0 %v3401
        %3528 = vmatpush.bf16.msra.mxu0 %v3399
        %3529 = vmatmul.bf16.gmra.mxu0 %v3085
        %v3530 = vpop.f32.mrf.mxu0
        %v3531 = vadd.f32 %v3517, %v3530
        %v3532 = vpop.f32.mrf.mxu0
        %v3533 = vadd.f32 %v3519, %v3532
        %3534 = vdwg.mxu0
        %3535 = vmatpush.bf16.msra.mxu0 %v3366
        %3536 = vmatpush.bf16.msra.mxu0 %v3364
        %3537 = vmatpush.bf16.msra.mxu0 %v3362
        %3538 = vmatpush.bf16.msra.mxu0 %v3360
        %3539 = vmatpush.bf16.msra.mxu0 %v3358
        %3540 = vmatpush.bf16.msra.mxu0 %v3356
        %3541 = vmatpush.bf16.msra.mxu0 %v3354
        %3542 = vmatpush.bf16.msra.mxu0 %v3352
        %3543 = vmatmul.bf16.gmra.mxu0 %v3082
        %v3544 = vpop.f32.mrf.mxu0
        %v3545 = vadd.f32 %v3158, %v3544
        %v3546 = vpop.f32.mrf.mxu0
        %v3547 = vadd.f32 %v3158, %v3546
        %3548 = vdwg.mxu0
        %3549 = vmatpush.bf16.msra.mxu0 %v3382
        %3550 = vmatpush.bf16.msra.mxu0 %v3380
        %3551 = vmatpush.bf16.msra.mxu0 %v3378
        %3552 = vmatpush.bf16.msra.mxu0 %v3376
        %3553 = vmatpush.bf16.msra.mxu0 %v3374
        %3554 = vmatpush.bf16.msra.mxu0 %v3372
        %3555 = vmatpush.bf16.msra.mxu0 %v3370
        %3556 = vmatpush.bf16.msra.mxu0 %v3368
        %3557 = vmatmul.bf16.gmra.mxu0 %v3083
        %v3558 = vpop.f32.mrf.mxu0
        %v3559 = vadd.f32 %v3545, %v3558
        %v3560 = vpop.f32.mrf.mxu0
        %v3561 = vadd.f32 %v3547, %v3560
        %3562 = vdwg.mxu0
        %3563 = vmatpush.bf16.msra.mxu0 %v3398
        %3564 = vmatpush.bf16.msra.mxu0 %v3396
        %3565 = vmatpush.bf16.msra.mxu0 %v3394
        %3566 = vmatpush.bf16.msra.mxu0 %v3392
        %3567 = vmatpush.bf16.msra.mxu0 %v3390
        %3568 = vmatpush.bf16.msra.mxu0 %v3388
        %3569 = vmatpush.bf16.msra.mxu0 %v3386
        %3570 = vmatpush.bf16.msra.mxu0 %v3384
        %3571 = vmatmul.bf16.gmra.mxu0 %v3084
        %v3572 = vpop.f32.mrf.mxu0
        %v3573 = vadd.f32 %v3559, %v3572
        %v3574 = vpop.f32.mrf.mxu0
        %v3575 = vadd.f32 %v3561, %v3574
        %3576 = vdwg.mxu0
        %3577 = vmatpush.bf16.msra.mxu0 %v3414
        %3578 = vmatpush.bf16.msra.mxu0 %v3412
        %3579 = vmatpush.bf16.msra.mxu0 %v3410
        %3580 = vmatpush.bf16.msra.mxu0 %v3408
        %3581 = vmatpush.bf16.msra.mxu0 %v3406
        %3582 = vmatpush.bf16.msra.mxu0 %v3404
        %3583 = vmatpush.bf16.msra.mxu0 %v3402
        %3584 = vmatpush.bf16.msra.mxu0 %v3400
        %3585 = vmatmul.bf16.gmra.mxu0 %v3085
        %v3586 = vpop.f32.mrf.mxu0
        %v3587 = vadd.f32 %v3573, %v3586
        %v3588 = vpop.f32.mrf.mxu0
        %v3589 = vadd.f32 %v3575, %v3588
        %3590 = vdwg.mxu0
        %v3591 = vadd.f32 %v2493, %v3531
        %v3592 = vadd.f32 %v2494, %v3587
        %v3593 = vadd.f32 %v2495, %v3533
        %v3594 = vadd.f32 %v2496, %v3589
        %v3595 = vadd.f32 %v3591, %v3592
        %3596 = vadd.xlane.f32.xlu0 %v3595
        %v3597 = vpop.xlane.xlu0 %3596
        %v3598 = vadd.f32 %v3593, %v3594
        %3599 = vadd.xlane.f32.xlu0 %v3598
        %v3600 = vpop.xlane.xlu0 %3599
        %v3601 = vmul.f32 %v3597, %v2426
        %v3602 = vmul.f32 %v3600, %v2426
        %v3603 = vsub.f32 %v3591, %v3601
        %v3604 = vsub.f32 %v3592, %v3601
        %v3605 = vsub.f32 %v3593, %v3602
        %v3606 = vsub.f32 %v3594, %v3602
        %v3607 = vmul.f32 %v3603, %v3603
        %v3608 = vmul.f32 %v3604, %v3604
        %v3609 = vmul.f32 %v3605, %v3605
        %v3610 = vmul.f32 %v3606, %v3606
        %v3611 = vadd.f32 %v3607, %v3608
        %3612 = vadd.xlane.f32.xlu0 %v3611
        %v3613 = vpop.xlane.xlu0 %3612
        %v3614 = vadd.f32 %v3609, %v3610
        %3615 = vadd.xlane.f32.xlu0 %v3614
        %v3616 = vpop.xlane.xlu0 %3615
        %v3617 = vmul.f32 %v3613, %v2426
        %v3618 = vmul.f32 %v3616, %v2426
        %v3619 = vadd.f32 %v3617, 1e-05
        %v3620 = vadd.f32 %v3618, 1e-05
        %v3621 = vrsqrt.pop %v3619
        %v3622 = vmul.f32 %v3621, %v3619
        %v3623 = vmul.f32 %v3622, %v3621
        %v3624 = vmul.f32 0.5, %v3623
        %v3625 = vsub.f32 1.5, %v3624
        %v3626 = vmul.f32 %v3621, %v3625
        %vm3627 = vweird.f32 %v3619
        %vm3628 = vweird.f32 %v3621
        %vm3629 = vmor %vm3627, %vm3628
        %v3630 = vsel %vm3629, %v3621, %v3626
        %v3631 = vrsqrt.pop %v3620
        %v3632 = vmul.f32 %v3631, %v3620
        %v3633 = vmul.f32 %v3632, %v3631
        %v3634 = vmul.f32 0.5, %v3633
        %v3635 = vsub.f32 1.5, %v3634
        %v3636 = vmul.f32 %v3631, %v3635
        %vm3637 = vweird.f32 %v3620
        %vm3638 = vweird.f32 %v3631
        %vm3639 = vmor %vm3637, %vm3638
        %v3640 = vsel %vm3639, %v3631, %v3636
        %v3641 = vmul.f32 %v3603, %v3630
        %v3642 = vmul.f32 %v3604, %v3630
        %v3643 = vmul.f32 %v3605, %v3640
        %v3644 = vmul.f32 %v3606, %v3640
        %v3645 = vld [vmem:[%s15] sm:$0x3]
        %v3646 = vunpack.c.l.bf16 %v3645
        %v3648 = vperm.slane %v3646, 0
        %v3649 = vperm.slane %v3646, 2
        %v3652 = vperm.slane %v3648, 0
        %v3653 = vperm.slane %v3649, 0
        %v3654 = vmul.f32 %v3641, %v3652
        %v3655 = vmul.f32 %v3642, %v3653
        %v3656 = vmul.f32 %v3643, %v3652
        %v3657 = vmul.f32 %v3644, %v3653
        %v3658 = vld [vmem:[%s16] sm:$0x3]
        %v3659 = vunpack.c.l.bf16 %v3658
        %v3661 = vperm.slane %v3659, 0
        %v3662 = vperm.slane %v3659, 2
        %v3665 = vperm.slane %v3661, 0
        %v3666 = vperm.slane %v3662, 0
        %v3667 = vadd.f32 %v3654, %v3665
        %v3668 = vadd.f32 %v3655, %v3666
        %v3669 = vadd.f32 %v3656, %v3665
        %v3670 = vadd.f32 %v3657, %v3666
        %v3671 = vadd.f32 %v3667, %v3668
        %3672 = vadd.xlane.f32.xlu0 %v3671
        %v3673 = vpop.xlane.xlu0 %3672
        %v3674 = vadd.f32 %v3669, %v3670
        %3675 = vadd.xlane.f32.xlu0 %v3674
        %v3676 = vpop.xlane.xlu0 %3675
        %v3677 = vmul.f32 %v3673, %v2426
        %v3678 = vmul.f32 %v3676, %v2426
        %v3679 = vsub.f32 %v3667, %v3677
        %v3680 = vsub.f32 %v3668, %v3677
        %v3681 = vsub.f32 %v3669, %v3678
        %v3682 = vsub.f32 %v3670, %v3678
        %v3683 = vmul.f32 %v3679, %v3679
        %v3684 = vmul.f32 %v3680, %v3680
        %v3685 = vmul.f32 %v3681, %v3681
        %v3686 = vmul.f32 %v3682, %v3682
        %v3687 = vadd.f32 %v3683, %v3684
        %3688 = vadd.xlane.f32.xlu0 %v3687
        %v3689 = vpop.xlane.xlu0 %3688
        %v3690 = vadd.f32 %v3685, %v3686
        %3691 = vadd.xlane.f32.xlu0 %v3690
        %v3692 = vpop.xlane.xlu0 %3691
        %v3693 = vmul.f32 %v3689, %v2426
        %v3694 = vmul.f32 %v3692, %v2426
        %v3695 = vadd.f32 %v3693, 1e-05
        %v3696 = vadd.f32 %v3694, 1e-05
        %v3697 = vrsqrt.pop %v3695
        %v3698 = vmul.f32 %v3697, %v3695
        %v3699 = vmul.f32 %v3698, %v3697
        %v3700 = vmul.f32 0.5, %v3699
        %v3701 = vsub.f32 1.5, %v3700
        %v3702 = vmul.f32 %v3697, %v3701
        %vm3703 = vweird.f32 %v3695
        %vm3704 = vweird.f32 %v3697
        %vm3705 = vmor %vm3703, %vm3704
        %v3706 = vsel %vm3705, %v3697, %v3702
        %v3707 = vrsqrt.pop %v3696
        %v3708 = vmul.f32 %v3707, %v3696
        %v3709 = vmul.f32 %v3708, %v3707
        %v3710 = vmul.f32 0.5, %v3709
        %v3711 = vsub.f32 1.5, %v3710
        %v3712 = vmul.f32 %v3707, %v3711
        %vm3713 = vweird.f32 %v3696
        %vm3714 = vweird.f32 %v3707
        %vm3715 = vmor %vm3713, %vm3714
        %v3716 = vsel %vm3715, %v3707, %v3712
        %v3717 = vmul.f32 %v3679, %v3706
        %v3718 = vmul.f32 %v3680, %v3706
        %v3719 = vmul.f32 %v3681, %v3716
        %v3720 = vmul.f32 %v3682, %v3716
        %v3721 = vld [vmem:[#allocation16] sm:$0x3]
        %v3722 = vunpack.c.l.bf16 %v3721
        %v3724 = vperm.slane %v3722, 0
        %v3725 = vperm.slane %v3722, 2
        %v3728 = vperm.slane %v3724, 0
        %v3729 = vperm.slane %v3725, 0
        %v3730 = vmul.f32 %v3717, %v3728
        %v3731 = vmul.f32 %v3718, %v3729
        %v3732 = vmul.f32 %v3719, %v3728
        %v3733 = vmul.f32 %v3720, %v3729
        %v3734 = vld [vmem:[%s18] sm:$0x3]
        %v3735 = vunpack.c.l.bf16 %v3734
        %v3737 = vperm.slane %v3735, 0
        %v3738 = vperm.slane %v3735, 2
        %v3741 = vperm.slane %v3737, 0
        %v3742 = vperm.slane %v3738, 0
        %v3743 = vadd.f32 %v3730, %v3741
        %v3744 = vadd.f32 %v3731, %v3742
        %v3745 = vadd.f32 %v3732, %v3741
        %v3746 = vadd.f32 %v3733, %v3742
        %v3747 = vpack.c.bf16 %v3744, %v3743
        %v3748 = vpack.c.bf16 %v3746, %v3745
        %v3750 = vunpack.c.l.b16 %v3747
        %v3751 = vunpack.c.h.b16 %v3747
        %v3752 = vpack.c.b16 %v3750, %v3750
        %v3753 = vpack.c.b16 %v3751, %v3751
        %v3756 = vrot.slane %v3752, 2
        %v3757 = vrot.slane %v3753, 2
        %v3761 = vunpack.c.l.b16 %v3748
        %v3762 = vunpack.c.h.b16 %v3748
        %v3763 = vpack.c.b16 %v3761, %v3761
        %v3764 = vpack.c.b16 %v3762, %v3762
        %v3767 = vrot.slane %v3763, 2
        %v3768 = vrot.slane %v3764, 2
        %v3771 = vld [vmem:[#allocation18] sm:$0xff]
        %v3772 = vld [vmem:[#allocation18 + $0x8] sm:$0xff]
        %v3773 = vld [vmem:[#allocation18 + $0x10] sm:$0xff]
        %v3774 = vld [vmem:[#allocation18 + $0x18] sm:$0xff]
        %v3775 = vld [vmem:[#allocation18 + $0x20] sm:$0xff]
        %v3776 = vld [vmem:[#allocation18 + $0x28] sm:$0xff]
        %v3777 = vld [vmem:[#allocation18 + $0x30] sm:$0xff]
        %v3778 = vld [vmem:[#allocation18 + $0x38] sm:$0xff]
        %v3779 = vld [vmem:[#allocation18 + $0x40] sm:$0xff]
        %v3780 = vld [vmem:[#allocation18 + $0x48] sm:$0xff]
        %v3781 = vld [vmem:[#allocation18 + $0x50] sm:$0xff]
        %v3782 = vld [vmem:[#allocation18 + $0x58] sm:$0xff]
        %v3783 = vld [vmem:[#allocation18 + $0x60] sm:$0xff]
        %v3784 = vld [vmem:[#allocation18 + $0x68] sm:$0xff]
        %v3785 = vld [vmem:[#allocation18 + $0x70] sm:$0xff]
        %v3786 = vld [vmem:[#allocation18 + $0x78] sm:$0xff]
        %v3787 = vld [vmem:[#allocation18 + $0x80] sm:$0xff]
        %v3788 = vld [vmem:[#allocation18 + $0x88] sm:$0xff]
        %v3789 = vld [vmem:[#allocation18 + $0x90] sm:$0xff]
        %v3790 = vld [vmem:[#allocation18 + $0x98] sm:$0xff]
        %v3791 = vld [vmem:[#allocation18 + $0xa0] sm:$0xff]
        %v3792 = vld [vmem:[#allocation18 + $0xa8] sm:$0xff]
        %v3793 = vld [vmem:[#allocation18 + $0xb0] sm:$0xff]
        %v3794 = vld [vmem:[#allocation18 + $0xb8] sm:$0xff]
        %v3795 = vld [vmem:[#allocation18 + $0xc0] sm:$0xff]
        %v3796 = vld [vmem:[#allocation18 + $0xc8] sm:$0xff]
        %v3797 = vld [vmem:[#allocation18 + $0xd0] sm:$0xff]
        %v3798 = vld [vmem:[#allocation18 + $0xd8] sm:$0xff]
        %v3799 = vld [vmem:[#allocation18 + $0xe0] sm:$0xff]
        %v3800 = vld [vmem:[#allocation18 + $0xe8] sm:$0xff]
        %v3801 = vld [vmem:[#allocation18 + $0xf0] sm:$0xff]
        %v3802 = vld [vmem:[#allocation18 + $0xf8] sm:$0xff]
        %v3803 = vld [vmem:[#allocation18 + $0x100] sm:$0xff]
        %v3804 = vld [vmem:[#allocation18 + $0x108] sm:$0xff]
        %v3805 = vld [vmem:[#allocation18 + $0x110] sm:$0xff]
        %v3806 = vld [vmem:[#allocation18 + $0x118] sm:$0xff]
        %v3807 = vld [vmem:[#allocation18 + $0x120] sm:$0xff]
        %v3808 = vld [vmem:[#allocation18 + $0x128] sm:$0xff]
        %v3809 = vld [vmem:[#allocation18 + $0x130] sm:$0xff]
        %v3810 = vld [vmem:[#allocation18 + $0x138] sm:$0xff]
        %v3811 = vld [vmem:[#allocation18 + $0x140] sm:$0xff]
        %v3812 = vld [vmem:[#allocation18 + $0x148] sm:$0xff]
        %v3813 = vld [vmem:[#allocation18 + $0x150] sm:$0xff]
        %v3814 = vld [vmem:[#allocation18 + $0x158] sm:$0xff]
        %v3815 = vld [vmem:[#allocation18 + $0x160] sm:$0xff]
        %v3816 = vld [vmem:[#allocation18 + $0x168] sm:$0xff]
        %v3817 = vld [vmem:[#allocation18 + $0x170] sm:$0xff]
        %v3818 = vld [vmem:[#allocation18 + $0x178] sm:$0xff]
        %v3819 = vld [vmem:[#allocation18 + $0x180] sm:$0xff]
        %v3820 = vld [vmem:[#allocation18 + $0x188] sm:$0xff]
        %v3821 = vld [vmem:[#allocation18 + $0x190] sm:$0xff]
        %v3822 = vld [vmem:[#allocation18 + $0x198] sm:$0xff]
        %v3823 = vld [vmem:[#allocation18 + $0x1a0] sm:$0xff]
        %v3824 = vld [vmem:[#allocation18 + $0x1a8] sm:$0xff]
        %v3825 = vld [vmem:[#allocation18 + $0x1b0] sm:$0xff]
        %v3826 = vld [vmem:[#allocation18 + $0x1b8] sm:$0xff]
        %v3827 = vld [vmem:[#allocation18 + $0x1c0] sm:$0xff]
        %v3828 = vld [vmem:[#allocation18 + $0x1c8] sm:$0xff]
        %v3829 = vld [vmem:[#allocation18 + $0x1d0] sm:$0xff]
        %v3830 = vld [vmem:[#allocation18 + $0x1d8] sm:$0xff]
        %v3831 = vld [vmem:[#allocation18 + $0x1e0] sm:$0xff]
        %v3832 = vld [vmem:[#allocation18 + $0x1e8] sm:$0xff]
        %v3833 = vld [vmem:[#allocation18 + $0x1f0] sm:$0xff]
        %v3834 = vld [vmem:[#allocation18 + $0x1f8] sm:$0xff]
        %v3835 = vld [vmem:[#allocation18 + $0x200] sm:$0xff]
        %v3836 = vld [vmem:[#allocation18 + $0x208] sm:$0xff]
        %v3837 = vld [vmem:[#allocation18 + $0x210] sm:$0xff]
        %v3838 = vld [vmem:[#allocation18 + $0x218] sm:$0xff]
        %v3839 = vld [vmem:[#allocation18 + $0x220] sm:$0xff]
        %v3840 = vld [vmem:[#allocation18 + $0x228] sm:$0xff]
        %v3841 = vld [vmem:[#allocation18 + $0x230] sm:$0xff]
        %v3842 = vld [vmem:[#allocation18 + $0x238] sm:$0xff]
        %v3843 = vld [vmem:[#allocation18 + $0x240] sm:$0xff]
        %v3844 = vld [vmem:[#allocation18 + $0x248] sm:$0xff]
        %v3845 = vld [vmem:[#allocation18 + $0x250] sm:$0xff]
        %v3846 = vld [vmem:[#allocation18 + $0x258] sm:$0xff]
        %v3847 = vld [vmem:[#allocation18 + $0x260] sm:$0xff]
        %v3848 = vld [vmem:[#allocation18 + $0x268] sm:$0xff]
        %v3849 = vld [vmem:[#allocation18 + $0x270] sm:$0xff]
        %v3850 = vld [vmem:[#allocation18 + $0x278] sm:$0xff]
        %v3851 = vld [vmem:[#allocation18 + $0x280] sm:$0xff]
        %v3852 = vld [vmem:[#allocation18 + $0x288] sm:$0xff]
        %v3853 = vld [vmem:[#allocation18 + $0x290] sm:$0xff]
        %v3854 = vld [vmem:[#allocation18 + $0x298] sm:$0xff]
        %v3855 = vld [vmem:[#allocation18 + $0x2a0] sm:$0xff]
        %v3856 = vld [vmem:[#allocation18 + $0x2a8] sm:$0xff]
        %v3857 = vld [vmem:[#allocation18 + $0x2b0] sm:$0xff]
        %v3858 = vld [vmem:[#allocation18 + $0x2b8] sm:$0xff]
        %v3859 = vld [vmem:[#allocation18 + $0x2c0] sm:$0xff]
        %v3860 = vld [vmem:[#allocation18 + $0x2c8] sm:$0xff]
        %v3861 = vld [vmem:[#allocation18 + $0x2d0] sm:$0xff]
        %v3862 = vld [vmem:[#allocation18 + $0x2d8] sm:$0xff]
        %v3863 = vld [vmem:[#allocation18 + $0x2e0] sm:$0xff]
        %v3864 = vld [vmem:[#allocation18 + $0x2e8] sm:$0xff]
        %v3865 = vld [vmem:[#allocation18 + $0x2f0] sm:$0xff]
        %v3866 = vld [vmem:[#allocation18 + $0x2f8] sm:$0xff]
        %v3867 = vld [vmem:[#allocation18 + $0x300] sm:$0xff]
        %v3868 = vld [vmem:[#allocation18 + $0x308] sm:$0xff]
        %v3869 = vld [vmem:[#allocation18 + $0x310] sm:$0xff]
        %v3870 = vld [vmem:[#allocation18 + $0x318] sm:$0xff]
        %v3871 = vld [vmem:[#allocation18 + $0x320] sm:$0xff]
        %v3872 = vld [vmem:[#allocation18 + $0x328] sm:$0xff]
        %v3873 = vld [vmem:[#allocation18 + $0x330] sm:$0xff]
        %v3874 = vld [vmem:[#allocation18 + $0x338] sm:$0xff]
        %v3875 = vld [vmem:[#allocation18 + $0x340] sm:$0xff]
        %v3876 = vld [vmem:[#allocation18 + $0x348] sm:$0xff]
        %v3877 = vld [vmem:[#allocation18 + $0x350] sm:$0xff]
        %v3878 = vld [vmem:[#allocation18 + $0x358] sm:$0xff]
        %v3879 = vld [vmem:[#allocation18 + $0x360] sm:$0xff]
        %v3880 = vld [vmem:[#allocation18 + $0x368] sm:$0xff]
        %v3881 = vld [vmem:[#allocation18 + $0x370] sm:$0xff]
        %v3882 = vld [vmem:[#allocation18 + $0x378] sm:$0xff]
        %v3883 = vld [vmem:[#allocation18 + $0x380] sm:$0xff]
        %v3884 = vld [vmem:[#allocation18 + $0x388] sm:$0xff]
        %v3885 = vld [vmem:[#allocation18 + $0x390] sm:$0xff]
        %v3886 = vld [vmem:[#allocation18 + $0x398] sm:$0xff]
        %v3887 = vld [vmem:[#allocation18 + $0x3a0] sm:$0xff]
        %v3888 = vld [vmem:[#allocation18 + $0x3a8] sm:$0xff]
        %v3889 = vld [vmem:[#allocation18 + $0x3b0] sm:$0xff]
        %v3890 = vld [vmem:[#allocation18 + $0x3b8] sm:$0xff]
        %v3891 = vld [vmem:[#allocation18 + $0x3c0] sm:$0xff]
        %v3892 = vld [vmem:[#allocation18 + $0x3c8] sm:$0xff]
        %v3893 = vld [vmem:[#allocation18 + $0x3d0] sm:$0xff]
        %v3894 = vld [vmem:[#allocation18 + $0x3d8] sm:$0xff]
        %v3895 = vld [vmem:[#allocation18 + $0x3e0] sm:$0xff]
        %v3896 = vld [vmem:[#allocation18 + $0x3e8] sm:$0xff]
        %v3897 = vld [vmem:[#allocation18 + $0x3f0] sm:$0xff]
        %v3898 = vld [vmem:[#allocation18 + $0x3f8] sm:$0xff]
        %v3899 = vld [vmem:[%s20] sm:$0x3]
        %v3900 = vunpack.c.l.bf16 %v3899
        %v3902 = vperm.slane %v3900, 0
        %v3903 = vperm.slane %v3900, 2
        %v3906 = vperm.slane %v3902, 0
        %v3907 = vperm.slane %v3903, 0
        %v4036 = vunpack.c.l.b16 %v3771
        %v4037 = vunpack.c.h.b16 %v3771
        %v4038 = vunpack.c.l.b16 %v3772
        %v4039 = vunpack.c.h.b16 %v3772
        %v4040 = vunpack.c.l.b16 %v3773
        %v4041 = vunpack.c.h.b16 %v3773
        %v4042 = vunpack.c.l.b16 %v3774
        %v4043 = vunpack.c.h.b16 %v3774
        %v4044 = vunpack.c.l.b16 %v3775
        %v4045 = vunpack.c.h.b16 %v3775
        %v4046 = vunpack.c.l.b16 %v3776
        %v4047 = vunpack.c.h.b16 %v3776
        %v4048 = vunpack.c.l.b16 %v3777
        %v4049 = vunpack.c.h.b16 %v3777
        %v4050 = vunpack.c.l.b16 %v3778
        %v4051 = vunpack.c.h.b16 %v3778
        %v4052 = vunpack.c.l.b16 %v3779
        %v4053 = vunpack.c.h.b16 %v3779
        %v4054 = vunpack.c.l.b16 %v3780
        %v4055 = vunpack.c.h.b16 %v3780
        %v4056 = vunpack.c.l.b16 %v3781
        %v4057 = vunpack.c.h.b16 %v3781
        %v4058 = vunpack.c.l.b16 %v3782
        %v4059 = vunpack.c.h.b16 %v3782
        %v4060 = vunpack.c.l.b16 %v3783
        %v4061 = vunpack.c.h.b16 %v3783
        %v4062 = vunpack.c.l.b16 %v3784
        %v4063 = vunpack.c.h.b16 %v3784
        %v4064 = vunpack.c.l.b16 %v3785
        %v4065 = vunpack.c.h.b16 %v3785
        %v4066 = vunpack.c.l.b16 %v3786
        %v4067 = vunpack.c.h.b16 %v3786
        %v4068 = vunpack.c.l.b16 %v3787
        %v4069 = vunpack.c.h.b16 %v3787
        %v4070 = vunpack.c.l.b16 %v3788
        %v4071 = vunpack.c.h.b16 %v3788
        %v4072 = vunpack.c.l.b16 %v3789
        %v4073 = vunpack.c.h.b16 %v3789
        %v4074 = vunpack.c.l.b16 %v3790
        %v4075 = vunpack.c.h.b16 %v3790
        %v4076 = vunpack.c.l.b16 %v3791
        %v4077 = vunpack.c.h.b16 %v3791
        %v4078 = vunpack.c.l.b16 %v3792
        %v4079 = vunpack.c.h.b16 %v3792
        %v4080 = vunpack.c.l.b16 %v3793
        %v4081 = vunpack.c.h.b16 %v3793
        %v4082 = vunpack.c.l.b16 %v3794
        %v4083 = vunpack.c.h.b16 %v3794
        %v4084 = vunpack.c.l.b16 %v3795
        %v4085 = vunpack.c.h.b16 %v3795
        %v4086 = vunpack.c.l.b16 %v3796
        %v4087 = vunpack.c.h.b16 %v3796
        %v4088 = vunpack.c.l.b16 %v3797
        %v4089 = vunpack.c.h.b16 %v3797
        %v4090 = vunpack.c.l.b16 %v3798
        %v4091 = vunpack.c.h.b16 %v3798
        %v4092 = vunpack.c.l.b16 %v3799
        %v4093 = vunpack.c.h.b16 %v3799
        %v4094 = vunpack.c.l.b16 %v3800
        %v4095 = vunpack.c.h.b16 %v3800
        %v4096 = vunpack.c.l.b16 %v3801
        %v4097 = vunpack.c.h.b16 %v3801
        %v4098 = vunpack.c.l.b16 %v3802
        %v4099 = vunpack.c.h.b16 %v3802
        %v4100 = vunpack.c.l.b16 %v3803
        %v4101 = vunpack.c.h.b16 %v3803
        %v4102 = vunpack.c.l.b16 %v3804
        %v4103 = vunpack.c.h.b16 %v3804
        %v4104 = vunpack.c.l.b16 %v3805
        %v4105 = vunpack.c.h.b16 %v3805
        %v4106 = vunpack.c.l.b16 %v3806
        %v4107 = vunpack.c.h.b16 %v3806
        %v4108 = vunpack.c.l.b16 %v3807
        %v4109 = vunpack.c.h.b16 %v3807
        %v4110 = vunpack.c.l.b16 %v3808
        %v4111 = vunpack.c.h.b16 %v3808
        %v4112 = vunpack.c.l.b16 %v3809
        %v4113 = vunpack.c.h.b16 %v3809
        %v4114 = vunpack.c.l.b16 %v3810
        %v4115 = vunpack.c.h.b16 %v3810
        %v4116 = vunpack.c.l.b16 %v3811
        %v4117 = vunpack.c.h.b16 %v3811
        %v4118 = vunpack.c.l.b16 %v3812
        %v4119 = vunpack.c.h.b16 %v3812
        %v4120 = vunpack.c.l.b16 %v3813
        %v4121 = vunpack.c.h.b16 %v3813
        %v4122 = vunpack.c.l.b16 %v3814
        %v4123 = vunpack.c.h.b16 %v3814
        %v4124 = vunpack.c.l.b16 %v3815
        %v4125 = vunpack.c.h.b16 %v3815
        %v4126 = vunpack.c.l.b16 %v3816
        %v4127 = vunpack.c.h.b16 %v3816
        %v4128 = vunpack.c.l.b16 %v3817
        %v4129 = vunpack.c.h.b16 %v3817
        %v4130 = vunpack.c.l.b16 %v3818
        %v4131 = vunpack.c.h.b16 %v3818
        %v4132 = vunpack.c.l.b16 %v3819
        %v4133 = vunpack.c.h.b16 %v3819
        %v4134 = vunpack.c.l.b16 %v3820
        %v4135 = vunpack.c.h.b16 %v3820
        %v4136 = vunpack.c.l.b16 %v3821
        %v4137 = vunpack.c.h.b16 %v3821
        %v4138 = vunpack.c.l.b16 %v3822
        %v4139 = vunpack.c.h.b16 %v3822
        %v4140 = vunpack.c.l.b16 %v3823
        %v4141 = vunpack.c.h.b16 %v3823
        %v4142 = vunpack.c.l.b16 %v3824
        %v4143 = vunpack.c.h.b16 %v3824
        %v4144 = vunpack.c.l.b16 %v3825
        %v4145 = vunpack.c.h.b16 %v3825
        %v4146 = vunpack.c.l.b16 %v3826
        %v4147 = vunpack.c.h.b16 %v3826
        %v4148 = vunpack.c.l.b16 %v3827
        %v4149 = vunpack.c.h.b16 %v3827
        %v4150 = vunpack.c.l.b16 %v3828
        %v4151 = vunpack.c.h.b16 %v3828
        %v4152 = vunpack.c.l.b16 %v3829
        %v4153 = vunpack.c.h.b16 %v3829
        %v4154 = vunpack.c.l.b16 %v3830
        %v4155 = vunpack.c.h.b16 %v3830
        %v4156 = vunpack.c.l.b16 %v3831
        %v4157 = vunpack.c.h.b16 %v3831
        %v4158 = vunpack.c.l.b16 %v3832
        %v4159 = vunpack.c.h.b16 %v3832
        %v4160 = vunpack.c.l.b16 %v3833
        %v4161 = vunpack.c.h.b16 %v3833
        %v4162 = vunpack.c.l.b16 %v3834
        %v4163 = vunpack.c.h.b16 %v3834
        %v4164 = vunpack.c.l.b16 %v3835
        %v4165 = vunpack.c.h.b16 %v3835
        %v4166 = vunpack.c.l.b16 %v3836
        %v4167 = vunpack.c.h.b16 %v3836
        %v4168 = vunpack.c.l.b16 %v3837
        %v4169 = vunpack.c.h.b16 %v3837
        %v4170 = vunpack.c.l.b16 %v3838
        %v4171 = vunpack.c.h.b16 %v3838
        %v4172 = vunpack.c.l.b16 %v3839
        %v4173 = vunpack.c.h.b16 %v3839
        %v4174 = vunpack.c.l.b16 %v3840
        %v4175 = vunpack.c.h.b16 %v3840
        %v4176 = vunpack.c.l.b16 %v3841
        %v4177 = vunpack.c.h.b16 %v3841
        %v4178 = vunpack.c.l.b16 %v3842
        %v4179 = vunpack.c.h.b16 %v3842
        %v4180 = vunpack.c.l.b16 %v3843
        %v4181 = vunpack.c.h.b16 %v3843
        %v4182 = vunpack.c.l.b16 %v3844
        %v4183 = vunpack.c.h.b16 %v3844
        %v4184 = vunpack.c.l.b16 %v3845
        %v4185 = vunpack.c.h.b16 %v3845
        %v4186 = vunpack.c.l.b16 %v3846
        %v4187 = vunpack.c.h.b16 %v3846
        %v4188 = vunpack.c.l.b16 %v3847
        %v4189 = vunpack.c.h.b16 %v3847
        %v4190 = vunpack.c.l.b16 %v3848
        %v4191 = vunpack.c.h.b16 %v3848
        %v4192 = vunpack.c.l.b16 %v3849
        %v4193 = vunpack.c.h.b16 %v3849
        %v4194 = vunpack.c.l.b16 %v3850
        %v4195 = vunpack.c.h.b16 %v3850
        %v4196 = vunpack.c.l.b16 %v3851
        %v4197 = vunpack.c.h.b16 %v3851
        %v4198 = vunpack.c.l.b16 %v3852
        %v4199 = vunpack.c.h.b16 %v3852
        %v4200 = vunpack.c.l.b16 %v3853
        %v4201 = vunpack.c.h.b16 %v3853
        %v4202 = vunpack.c.l.b16 %v3854
        %v4203 = vunpack.c.h.b16 %v3854
        %v4204 = vunpack.c.l.b16 %v3855
        %v4205 = vunpack.c.h.b16 %v3855
        %v4206 = vunpack.c.l.b16 %v3856
        %v4207 = vunpack.c.h.b16 %v3856
        %v4208 = vunpack.c.l.b16 %v3857
        %v4209 = vunpack.c.h.b16 %v3857
        %v4210 = vunpack.c.l.b16 %v3858
        %v4211 = vunpack.c.h.b16 %v3858
        %v4212 = vunpack.c.l.b16 %v3859
        %v4213 = vunpack.c.h.b16 %v3859
        %v4214 = vunpack.c.l.b16 %v3860
        %v4215 = vunpack.c.h.b16 %v3860
        %v4216 = vunpack.c.l.b16 %v3861
        %v4217 = vunpack.c.h.b16 %v3861
        %v4218 = vunpack.c.l.b16 %v3862
        %v4219 = vunpack.c.h.b16 %v3862
        %v4220 = vunpack.c.l.b16 %v3863
        %v4221 = vunpack.c.h.b16 %v3863
        %v4222 = vunpack.c.l.b16 %v3864
        %v4223 = vunpack.c.h.b16 %v3864
        %v4224 = vunpack.c.l.b16 %v3865
        %v4225 = vunpack.c.h.b16 %v3865
        %v4226 = vunpack.c.l.b16 %v3866
        %v4227 = vunpack.c.h.b16 %v3866
        %v4228 = vunpack.c.l.b16 %v3867
        %v4229 = vunpack.c.h.b16 %v3867
        %v4230 = vunpack.c.l.b16 %v3868
        %v4231 = vunpack.c.h.b16 %v3868
        %v4232 = vunpack.c.l.b16 %v3869
        %v4233 = vunpack.c.h.b16 %v3869
        %v4234 = vunpack.c.l.b16 %v3870
        %v4235 = vunpack.c.h.b16 %v3870
        %v4236 = vunpack.c.l.b16 %v3871
        %v4237 = vunpack.c.h.b16 %v3871
        %v4238 = vunpack.c.l.b16 %v3872
        %v4239 = vunpack.c.h.b16 %v3872
        %v4240 = vunpack.c.l.b16 %v3873
        %v4241 = vunpack.c.h.b16 %v3873
        %v4242 = vunpack.c.l.b16 %v3874
        %v4243 = vunpack.c.h.b16 %v3874
        %v4244 = vunpack.c.l.b16 %v3875
        %v4245 = vunpack.c.h.b16 %v3875
        %v4246 = vunpack.c.l.b16 %v3876
        %v4247 = vunpack.c.h.b16 %v3876
        %v4248 = vunpack.c.l.b16 %v3877
        %v4249 = vunpack.c.h.b16 %v3877
        %v4250 = vunpack.c.l.b16 %v3878
        %v4251 = vunpack.c.h.b16 %v3878
        %v4252 = vunpack.c.l.b16 %v3879
        %v4253 = vunpack.c.h.b16 %v3879
        %v4254 = vunpack.c.l.b16 %v3880
        %v4255 = vunpack.c.h.b16 %v3880
        %v4256 = vunpack.c.l.b16 %v3881
        %v4257 = vunpack.c.h.b16 %v3881
        %v4258 = vunpack.c.l.b16 %v3882
        %v4259 = vunpack.c.h.b16 %v3882
        %v4260 = vunpack.c.l.b16 %v3883
        %v4261 = vunpack.c.h.b16 %v3883
        %v4262 = vunpack.c.l.b16 %v3884
        %v4263 = vunpack.c.h.b16 %v3884
        %v4264 = vunpack.c.l.b16 %v3885
        %v4265 = vunpack.c.h.b16 %v3885
        %v4266 = vunpack.c.l.b16 %v3886
        %v4267 = vunpack.c.h.b16 %v3886
        %v4268 = vunpack.c.l.b16 %v3887
        %v4269 = vunpack.c.h.b16 %v3887
        %v4270 = vunpack.c.l.b16 %v3888
        %v4271 = vunpack.c.h.b16 %v3888
        %v4272 = vunpack.c.l.b16 %v3889
        %v4273 = vunpack.c.h.b16 %v3889
        %v4274 = vunpack.c.l.b16 %v3890
        %v4275 = vunpack.c.h.b16 %v3890
        %v4276 = vunpack.c.l.b16 %v3891
        %v4277 = vunpack.c.h.b16 %v3891
        %v4278 = vunpack.c.l.b16 %v3892
        %v4279 = vunpack.c.h.b16 %v3892
        %v4280 = vunpack.c.l.b16 %v3893
        %v4281 = vunpack.c.h.b16 %v3893
        %v4282 = vunpack.c.l.b16 %v3894
        %v4283 = vunpack.c.h.b16 %v3894
        %v4284 = vunpack.c.l.b16 %v3895
        %v4285 = vunpack.c.h.b16 %v3895
        %v4286 = vunpack.c.l.b16 %v3896
        %v4287 = vunpack.c.h.b16 %v3896
        %v4288 = vunpack.c.l.b16 %v3897
        %v4289 = vunpack.c.h.b16 %v3897
        %v4290 = vunpack.c.l.b16 %v3898
        %v4291 = vunpack.c.h.b16 %v3898
        %v4292 = vpack.c.b16 %v4038, %v4036
        %v4293 = vpack.c.b16 %v4039, %v4037
        %v4294 = vpack.c.b16 %v4042, %v4040
        %v4295 = vpack.c.b16 %v4043, %v4041
        %v4296 = vpack.c.b16 %v4046, %v4044
        %v4297 = vpack.c.b16 %v4047, %v4045
        %v4298 = vpack.c.b16 %v4050, %v4048
        %v4299 = vpack.c.b16 %v4051, %v4049
        %v4300 = vpack.c.b16 %v4054, %v4052
        %v4301 = vpack.c.b16 %v4055, %v4053
        %v4302 = vpack.c.b16 %v4058, %v4056
        %v4303 = vpack.c.b16 %v4059, %v4057
        %v4304 = vpack.c.b16 %v4062, %v4060
        %v4305 = vpack.c.b16 %v4063, %v4061
        %v4306 = vpack.c.b16 %v4066, %v4064
        %v4307 = vpack.c.b16 %v4067, %v4065
        %v4308 = vpack.c.b16 %v4070, %v4068
        %v4309 = vpack.c.b16 %v4071, %v4069
        %v4310 = vpack.c.b16 %v4074, %v4072
        %v4311 = vpack.c.b16 %v4075, %v4073
        %v4312 = vpack.c.b16 %v4078, %v4076
        %v4313 = vpack.c.b16 %v4079, %v4077
        %v4314 = vpack.c.b16 %v4082, %v4080
        %v4315 = vpack.c.b16 %v4083, %v4081
        %v4316 = vpack.c.b16 %v4086, %v4084
        %v4317 = vpack.c.b16 %v4087, %v4085
        %v4318 = vpack.c.b16 %v4090, %v4088
        %v4319 = vpack.c.b16 %v4091, %v4089
        %v4320 = vpack.c.b16 %v4094, %v4092
        %v4321 = vpack.c.b16 %v4095, %v4093
        %v4322 = vpack.c.b16 %v4098, %v4096
        %v4323 = vpack.c.b16 %v4099, %v4097
        %v4324 = vpack.c.b16 %v4102, %v4100
        %v4325 = vpack.c.b16 %v4103, %v4101
        %v4326 = vpack.c.b16 %v4106, %v4104
        %v4327 = vpack.c.b16 %v4107, %v4105
        %v4328 = vpack.c.b16 %v4110, %v4108
        %v4329 = vpack.c.b16 %v4111, %v4109
        %v4330 = vpack.c.b16 %v4114, %v4112
        %v4331 = vpack.c.b16 %v4115, %v4113
        %v4332 = vpack.c.b16 %v4118, %v4116
        %v4333 = vpack.c.b16 %v4119, %v4117
        %v4334 = vpack.c.b16 %v4122, %v4120
        %v4335 = vpack.c.b16 %v4123, %v4121
        %v4336 = vpack.c.b16 %v4126, %v4124
        %v4337 = vpack.c.b16 %v4127, %v4125
        %v4338 = vpack.c.b16 %v4130, %v4128
        %v4339 = vpack.c.b16 %v4131, %v4129
        %v4340 = vpack.c.b16 %v4134, %v4132
        %v4341 = vpack.c.b16 %v4135, %v4133
        %v4342 = vpack.c.b16 %v4138, %v4136
        %v4343 = vpack.c.b16 %v4139, %v4137
        %v4344 = vpack.c.b16 %v4142, %v4140
        %v4345 = vpack.c.b16 %v4143, %v4141
        %v4346 = vpack.c.b16 %v4146, %v4144
        %v4347 = vpack.c.b16 %v4147, %v4145
        %v4348 = vpack.c.b16 %v4150, %v4148
        %v4349 = vpack.c.b16 %v4151, %v4149
        %v4350 = vpack.c.b16 %v4154, %v4152
        %v4351 = vpack.c.b16 %v4155, %v4153
        %v4352 = vpack.c.b16 %v4158, %v4156
        %v4353 = vpack.c.b16 %v4159, %v4157
        %v4354 = vpack.c.b16 %v4162, %v4160
        %v4355 = vpack.c.b16 %v4163, %v4161
        %v4356 = vpack.c.b16 %v4166, %v4164
        %v4357 = vpack.c.b16 %v4167, %v4165
        %v4358 = vpack.c.b16 %v4170, %v4168
        %v4359 = vpack.c.b16 %v4171, %v4169
        %v4360 = vpack.c.b16 %v4174, %v4172
        %v4361 = vpack.c.b16 %v4175, %v4173
        %v4362 = vpack.c.b16 %v4178, %v4176
        %v4363 = vpack.c.b16 %v4179, %v4177
        %v4364 = vpack.c.b16 %v4182, %v4180
        %v4365 = vpack.c.b16 %v4183, %v4181
        %v4366 = vpack.c.b16 %v4186, %v4184
        %v4367 = vpack.c.b16 %v4187, %v4185
        %v4368 = vpack.c.b16 %v4190, %v4188
        %v4369 = vpack.c.b16 %v4191, %v4189
        %v4370 = vpack.c.b16 %v4194, %v4192
        %v4371 = vpack.c.b16 %v4195, %v4193
        %v4372 = vpack.c.b16 %v4198, %v4196
        %v4373 = vpack.c.b16 %v4199, %v4197
        %v4374 = vpack.c.b16 %v4202, %v4200
        %v4375 = vpack.c.b16 %v4203, %v4201
        %v4376 = vpack.c.b16 %v4206, %v4204
        %v4377 = vpack.c.b16 %v4207, %v4205
        %v4378 = vpack.c.b16 %v4210, %v4208
        %v4379 = vpack.c.b16 %v4211, %v4209
        %v4380 = vpack.c.b16 %v4214, %v4212
        %v4381 = vpack.c.b16 %v4215, %v4213
        %v4382 = vpack.c.b16 %v4218, %v4216
        %v4383 = vpack.c.b16 %v4219, %v4217
        %v4384 = vpack.c.b16 %v4222, %v4220
        %v4385 = vpack.c.b16 %v4223, %v4221
        %v4386 = vpack.c.b16 %v4226, %v4224
        %v4387 = vpack.c.b16 %v4227, %v4225
        %v4388 = vpack.c.b16 %v4230, %v4228
        %v4389 = vpack.c.b16 %v4231, %v4229
        %v4390 = vpack.c.b16 %v4234, %v4232
        %v4391 = vpack.c.b16 %v4235, %v4233
        %v4392 = vpack.c.b16 %v4238, %v4236
        %v4393 = vpack.c.b16 %v4239, %v4237
        %v4394 = vpack.c.b16 %v4242, %v4240
        %v4395 = vpack.c.b16 %v4243, %v4241
        %v4396 = vpack.c.b16 %v4246, %v4244
        %v4397 = vpack.c.b16 %v4247, %v4245
        %v4398 = vpack.c.b16 %v4250, %v4248
        %v4399 = vpack.c.b16 %v4251, %v4249
        %v4400 = vpack.c.b16 %v4254, %v4252
        %v4401 = vpack.c.b16 %v4255, %v4253
        %v4402 = vpack.c.b16 %v4258, %v4256
        %v4403 = vpack.c.b16 %v4259, %v4257
        %v4404 = vpack.c.b16 %v4262, %v4260
        %v4405 = vpack.c.b16 %v4263, %v4261
        %v4406 = vpack.c.b16 %v4266, %v4264
        %v4407 = vpack.c.b16 %v4267, %v4265
        %v4408 = vpack.c.b16 %v4270, %v4268
        %v4409 = vpack.c.b16 %v4271, %v4269
        %v4410 = vpack.c.b16 %v4274, %v4272
        %v4411 = vpack.c.b16 %v4275, %v4273
        %v4412 = vpack.c.b16 %v4278, %v4276
        %v4413 = vpack.c.b16 %v4279, %v4277
        %v4414 = vpack.c.b16 %v4282, %v4280
        %v4415 = vpack.c.b16 %v4283, %v4281
        %v4416 = vpack.c.b16 %v4286, %v4284
        %v4417 = vpack.c.b16 %v4287, %v4285
        %v4418 = vpack.c.b16 %v4290, %v4288
        %v4419 = vpack.c.b16 %v4291, %v4289
        %4548 = vmatpush.bf16.msra.mxu0 %v4306
        %4549 = vmatpush.bf16.msra.mxu0 %v4304
        %4550 = vmatpush.bf16.msra.mxu0 %v4302
        %4551 = vmatpush.bf16.msra.mxu0 %v4300
        %4552 = vmatpush.bf16.msra.mxu0 %v4298
        %4553 = vmatpush.bf16.msra.mxu0 %v4296
        %4554 = vmatpush.bf16.msra.mxu0 %v4294
        %4555 = vmatpush.bf16.msra.mxu0 %v4292
        %4556 = vmatmul.bf16.gmra.mxu0 %v3752
        %v4557 = vpop.f32.mrf.mxu0
        %v4558 = vadd.f32 %v3906, %v4557
        %v4559 = vpop.f32.mrf.mxu0
        %4560 = vdwg.mxu0
        %4561 = vmatpush.bf16.msra.mxu0 %v4322
        %4562 = vmatpush.bf16.msra.mxu0 %v4320
        %4563 = vmatpush.bf16.msra.mxu0 %v4318
        %4564 = vmatpush.bf16.msra.mxu0 %v4316
        %4565 = vmatpush.bf16.msra.mxu0 %v4314
        %4566 = vmatpush.bf16.msra.mxu0 %v4312
        %4567 = vmatpush.bf16.msra.mxu0 %v4310
        %4568 = vmatpush.bf16.msra.mxu0 %v4308
        %4569 = vmatmul.bf16.gmra.mxu0 %v3753
        %v4570 = vpop.f32.mrf.mxu0
        %v4571 = vadd.f32 %v4558, %v4570
        %v4572 = vpop.f32.mrf.mxu0
        %4573 = vdwg.mxu0
        %4574 = vmatpush.bf16.msra.mxu0 %v4338
        %4575 = vmatpush.bf16.msra.mxu0 %v4336
        %4576 = vmatpush.bf16.msra.mxu0 %v4334
        %4577 = vmatpush.bf16.msra.mxu0 %v4332
        %4578 = vmatpush.bf16.msra.mxu0 %v4330
        %4579 = vmatpush.bf16.msra.mxu0 %v4328
        %4580 = vmatpush.bf16.msra.mxu0 %v4326
        %4581 = vmatpush.bf16.msra.mxu0 %v4324
        %4582 = vmatmul.bf16.gmra.mxu0 %v3756
        %v4583 = vpop.f32.mrf.mxu0
        %v4584 = vadd.f32 %v4571, %v4583
        %v4585 = vpop.f32.mrf.mxu0
        %4586 = vdwg.mxu0
        %4587 = vmatpush.bf16.msra.mxu0 %v4354
        %4588 = vmatpush.bf16.msra.mxu0 %v4352
        %4589 = vmatpush.bf16.msra.mxu0 %v4350
        %4590 = vmatpush.bf16.msra.mxu0 %v4348
        %4591 = vmatpush.bf16.msra.mxu0 %v4346
        %4592 = vmatpush.bf16.msra.mxu0 %v4344
        %4593 = vmatpush.bf16.msra.mxu0 %v4342
        %4594 = vmatpush.bf16.msra.mxu0 %v4340
        %4595 = vmatmul.bf16.gmra.mxu0 %v3757
        %v4596 = vpop.f32.mrf.mxu0
        %v4597 = vadd.f32 %v4584, %v4596
        %v4598 = vpop.f32.mrf.mxu0
        %4599 = vdwg.mxu0
        %4600 = vmatpush.bf16.msra.mxu0 %v4370
        %4601 = vmatpush.bf16.msra.mxu0 %v4368
        %4602 = vmatpush.bf16.msra.mxu0 %v4366
        %4603 = vmatpush.bf16.msra.mxu0 %v4364
        %4604 = vmatpush.bf16.msra.mxu0 %v4362
        %4605 = vmatpush.bf16.msra.mxu0 %v4360
        %4606 = vmatpush.bf16.msra.mxu0 %v4358
        %4607 = vmatpush.bf16.msra.mxu0 %v4356
        %4608 = vmatmul.bf16.gmra.mxu0 %v3763
        %v4609 = vpop.f32.mrf.mxu0
        %v4610 = vadd.f32 %v4597, %v4609
        %v4611 = vpop.f32.mrf.mxu0
        %4612 = vdwg.mxu0
        %4613 = vmatpush.bf16.msra.mxu0 %v4386
        %4614 = vmatpush.bf16.msra.mxu0 %v4384
        %4615 = vmatpush.bf16.msra.mxu0 %v4382
        %4616 = vmatpush.bf16.msra.mxu0 %v4380
        %4617 = vmatpush.bf16.msra.mxu0 %v4378
        %4618 = vmatpush.bf16.msra.mxu0 %v4376
        %4619 = vmatpush.bf16.msra.mxu0 %v4374
        %4620 = vmatpush.bf16.msra.mxu0 %v4372
        %4621 = vmatmul.bf16.gmra.mxu0 %v3764
        %v4622 = vpop.f32.mrf.mxu0
        %v4623 = vadd.f32 %v4610, %v4622
        %v4624 = vpop.f32.mrf.mxu0
        %4625 = vdwg.mxu0
        %4626 = vmatpush.bf16.msra.mxu0 %v4402
        %4627 = vmatpush.bf16.msra.mxu0 %v4400
        %4628 = vmatpush.bf16.msra.mxu0 %v4398
        %4629 = vmatpush.bf16.msra.mxu0 %v4396
        %4630 = vmatpush.bf16.msra.mxu0 %v4394
        %4631 = vmatpush.bf16.msra.mxu0 %v4392
        %4632 = vmatpush.bf16.msra.mxu0 %v4390
        %4633 = vmatpush.bf16.msra.mxu0 %v4388
        %4634 = vmatmul.bf16.gmra.mxu0 %v3767
        %v4635 = vpop.f32.mrf.mxu0
        %v4636 = vadd.f32 %v4623, %v4635
        %v4637 = vpop.f32.mrf.mxu0
        %4638 = vdwg.mxu0
        %4639 = vmatpush.bf16.msra.mxu0 %v4418
        %4640 = vmatpush.bf16.msra.mxu0 %v4416
        %4641 = vmatpush.bf16.msra.mxu0 %v4414
        %4642 = vmatpush.bf16.msra.mxu0 %v4412
        %4643 = vmatpush.bf16.msra.mxu0 %v4410
        %4644 = vmatpush.bf16.msra.mxu0 %v4408
        %4645 = vmatpush.bf16.msra.mxu0 %v4406
        %4646 = vmatpush.bf16.msra.mxu0 %v4404
        %4647 = vmatmul.bf16.gmra.mxu0 %v3768
        %v4648 = vpop.f32.mrf.mxu0
        %v4649 = vadd.f32 %v4636, %v4648
        %v4650 = vpop.f32.mrf.mxu0
        %4651 = vdwg.mxu0
        %4652 = vmatpush.bf16.msra.mxu0 %v4307
        %4653 = vmatpush.bf16.msra.mxu0 %v4305
        %4654 = vmatpush.bf16.msra.mxu0 %v4303
        %4655 = vmatpush.bf16.msra.mxu0 %v4301
        %4656 = vmatpush.bf16.msra.mxu0 %v4299
        %4657 = vmatpush.bf16.msra.mxu0 %v4297
        %4658 = vmatpush.bf16.msra.mxu0 %v4295
        %4659 = vmatpush.bf16.msra.mxu0 %v4293
        %4660 = vmatmul.bf16.gmra.mxu0 %v3752
        %v4661 = vpop.f32.mrf.mxu0
        %v4662 = vadd.f32 %v3907, %v4661
        %v4663 = vpop.f32.mrf.mxu0
        %4664 = vdwg.mxu0
        %4665 = vmatpush.bf16.msra.mxu0 %v4323
        %4666 = vmatpush.bf16.msra.mxu0 %v4321
        %4667 = vmatpush.bf16.msra.mxu0 %v4319
        %4668 = vmatpush.bf16.msra.mxu0 %v4317
        %4669 = vmatpush.bf16.msra.mxu0 %v4315
        %4670 = vmatpush.bf16.msra.mxu0 %v4313
        %4671 = vmatpush.bf16.msra.mxu0 %v4311
        %4672 = vmatpush.bf16.msra.mxu0 %v4309
        %4673 = vmatmul.bf16.gmra.mxu0 %v3753
        %v4674 = vpop.f32.mrf.mxu0
        %v4675 = vadd.f32 %v4662, %v4674
        %v4676 = vpop.f32.mrf.mxu0
        %4677 = vdwg.mxu0
        %4678 = vmatpush.bf16.msra.mxu0 %v4339
        %4679 = vmatpush.bf16.msra.mxu0 %v4337
        %4680 = vmatpush.bf16.msra.mxu0 %v4335
        %4681 = vmatpush.bf16.msra.mxu0 %v4333
        %4682 = vmatpush.bf16.msra.mxu0 %v4331
        %4683 = vmatpush.bf16.msra.mxu0 %v4329
        %4684 = vmatpush.bf16.msra.mxu0 %v4327
        %4685 = vmatpush.bf16.msra.mxu0 %v4325
        %4686 = vmatmul.bf16.gmra.mxu0 %v3756
        %v4687 = vpop.f32.mrf.mxu0
        %v4688 = vadd.f32 %v4675, %v4687
        %v4689 = vpop.f32.mrf.mxu0
        %4690 = vdwg.mxu0
        %4691 = vmatpush.bf16.msra.mxu0 %v4355
        %4692 = vmatpush.bf16.msra.mxu0 %v4353
        %4693 = vmatpush.bf16.msra.mxu0 %v4351
        %4694 = vmatpush.bf16.msra.mxu0 %v4349
        %4695 = vmatpush.bf16.msra.mxu0 %v4347
        %4696 = vmatpush.bf16.msra.mxu0 %v4345
        %4697 = vmatpush.bf16.msra.mxu0 %v4343
        %4698 = vmatpush.bf16.msra.mxu0 %v4341
        %4699 = vmatmul.bf16.gmra.mxu0 %v3757
        %v4700 = vpop.f32.mrf.mxu0
        %v4701 = vadd.f32 %v4688, %v4700
        %v4702 = vpop.f32.mrf.mxu0
        %4703 = vdwg.mxu0
        %4704 = vmatpush.bf16.msra.mxu0 %v4371
        %4705 = vmatpush.bf16.msra.mxu0 %v4369
        %4706 = vmatpush.bf16.msra.mxu0 %v4367
        %4707 = vmatpush.bf16.msra.mxu0 %v4365
        %4708 = vmatpush.bf16.msra.mxu0 %v4363
        %4709 = vmatpush.bf16.msra.mxu0 %v4361
        %4710 = vmatpush.bf16.msra.mxu0 %v4359
        %4711 = vmatpush.bf16.msra.mxu0 %v4357
        %4712 = vmatmul.bf16.gmra.mxu0 %v3763
        %v4713 = vpop.f32.mrf.mxu0
        %v4714 = vadd.f32 %v4701, %v4713
        %v4715 = vpop.f32.mrf.mxu0
        %4716 = vdwg.mxu0
        %4717 = vmatpush.bf16.msra.mxu0 %v4387
        %4718 = vmatpush.bf16.msra.mxu0 %v4385
        %4719 = vmatpush.bf16.msra.mxu0 %v4383
        %4720 = vmatpush.bf16.msra.mxu0 %v4381
        %4721 = vmatpush.bf16.msra.mxu0 %v4379
        %4722 = vmatpush.bf16.msra.mxu0 %v4377
        %4723 = vmatpush.bf16.msra.mxu0 %v4375
        %4724 = vmatpush.bf16.msra.mxu0 %v4373
        %4725 = vmatmul.bf16.gmra.mxu0 %v3764
        %v4726 = vpop.f32.mrf.mxu0
        %v4727 = vadd.f32 %v4714, %v4726
        %v4728 = vpop.f32.mrf.mxu0
        %4729 = vdwg.mxu0
        %4730 = vmatpush.bf16.msra.mxu0 %v4403
        %4731 = vmatpush.bf16.msra.mxu0 %v4401
        %4732 = vmatpush.bf16.msra.mxu0 %v4399
        %4733 = vmatpush.bf16.msra.mxu0 %v4397
        %4734 = vmatpush.bf16.msra.mxu0 %v4395
        %4735 = vmatpush.bf16.msra.mxu0 %v4393
        %4736 = vmatpush.bf16.msra.mxu0 %v4391
        %4737 = vmatpush.bf16.msra.mxu0 %v4389
        %4738 = vmatmul.bf16.gmra.mxu0 %v3767
        %v4739 = vpop.f32.mrf.mxu0
        %v4740 = vadd.f32 %v4727, %v4739
        %v4741 = vpop.f32.mrf.mxu0
        %4742 = vdwg.mxu0
        %4743 = vmatpush.bf16.msra.mxu0 %v4419
        %4744 = vmatpush.bf16.msra.mxu0 %v4417
        %4745 = vmatpush.bf16.msra.mxu0 %v4415
        %4746 = vmatpush.bf16.msra.mxu0 %v4413
        %4747 = vmatpush.bf16.msra.mxu0 %v4411
        %4748 = vmatpush.bf16.msra.mxu0 %v4409
        %4749 = vmatpush.bf16.msra.mxu0 %v4407
        %4750 = vmatpush.bf16.msra.mxu0 %v4405
        %4751 = vmatmul.bf16.gmra.mxu0 %v3768
        %v4752 = vpop.f32.mrf.mxu0
        %v4753 = vadd.f32 %v4740, %v4752
        %v4754 = vpop.f32.mrf.mxu0
        %4755 = vdwg.mxu0
        %v4756 = vld [vmem:[%s795] sm:$0x1]
        %vm4757 = vcmask 31744
        %v4759 = vsel %vm4757, %v4756, 0
        %vm4761 = vcmask 1043456
        %v4763 = vsel %vm4761, %v4649, 0
        %v4766 = vsel %vm4761, %v4753, 0
        %4768 = vmatpush.msra.mxu0 0.0
        %4769 = vmatpush.msra.mxu0 0.0
        %4770 = vmatpush.msra.mxu0 0.0
        %4771 = vmatpush.msra.mxu0 0.0
        %4772 = vmatpush.msra.mxu0 0.0
        %4773 = vmatpush.msra.mxu0 0.0
        %4774 = vmatpush.msra.mxu0 0.0
        %4775 = vmatpush.msra.mxu0 0.0
        %4776 = vmatpush.msra.mxu0 0.0
        %4777 = vmatpush.msra.mxu0 0.0
        %4778 = vmatpush.msra.mxu0 0.0
        %4779 = vmatpush.msra.mxu0 0.0
        %4780 = vmatpush.msra.mxu0 0.0
        %4781 = vmatpush.msra.mxu0 0.0
        %4782 = vmatpush.msra.mxu0 0.0
        %4783 = vmatpush.msra.mxu0 %v4763
        %4784 = vmatmul.f32.gmra.mxu0 %v4759
        %v4785 = vpop.f32.mrf.mxu0
        %v4786 = vadd.f32 0.0, %v4785
        %4787 = vdwg.mxu0
        %4788 = vmatpush.msra.mxu0 0.0
        %4789 = vmatpush.msra.mxu0 0.0
        %4790 = vmatpush.msra.mxu0 0.0
        %4791 = vmatpush.msra.mxu0 0.0
        %4792 = vmatpush.msra.mxu0 0.0
        %4793 = vmatpush.msra.mxu0 0.0
        %4794 = vmatpush.msra.mxu0 0.0
        %4795 = vmatpush.msra.mxu0 0.0
        %4796 = vmatpush.msra.mxu0 0.0
        %4797 = vmatpush.msra.mxu0 0.0
        %4798 = vmatpush.msra.mxu0 0.0
        %4799 = vmatpush.msra.mxu0 0.0
        %4800 = vmatpush.msra.mxu0 0.0
        %4801 = vmatpush.msra.mxu0 0.0
        %4802 = vmatpush.msra.mxu0 0.0
        %4803 = vmatpush.msra.mxu0 %v4766
        %4804 = vmatmul.f32.gmra.mxu0 %v4759
        %v4805 = vpop.f32.mrf.mxu0
        %v4806 = vadd.f32 0.0, %v4805
        %4807 = vdwg.mxu0
        %v4808 = vld [vmem:[%s921] sm:$0x1]
        %4810 = vset.pattern.permute.xlu0 0
        %4811 = vperm.xlu0 %4810, %v4808
        %v4812 = vpop.permute.xlu0 %4811
        %v4814 = vperm.slane %v4812, 0
        %v4815 = vrcp.pop %v4814
        %v4816 = vmul.f32 %v4814, %v4815
        %v4817 = vsub.f32 1.0, %v4816
        %v4818 = vmul.f32 %v4815, %v4817
        %v4819 = vadd.f32 %v4815, %v4818
        %vm4820 = vweird.f32 %v4814
        %vm4821 = vweird.f32 %v4815
        %vm4822 = vmor %vm4820, %vm4821
        %v4823 = vsel %vm4822, %v4815, %v4819
        %v4824 = vand.u32 2147483647, %v4814
        %vm4825 = vcmp.eq.f32.partialorder %v4824, 8.507059e+37
        %v4826 = vand.u32 %v4814, 2147483648
        %v4827 = vor.u32 1.1754944e-38, %v4826
        %v4828 = vsel %vm4825, %v4827, %v4823
        %v4829 = vmul.f32 %v4786, %v4828
        %v4830 = vmul.f32 %v4806, %v4828
        %v4831 = vpack.c.bf16 %v4829, %v4829
        %v4832 = vpack.c.bf16 %v4830, %v4830
        %v4833 = vld [vmem:[#allocation19] sm:$0xff]
        %v4834 = vld [vmem:[#allocation19 + $0x8] sm:$0xff]
        %v4835 = vld [vmem:[#allocation19 + $0x10] sm:$0xff]
        %v4836 = vld [vmem:[#allocation19 + $0x18] sm:$0xff]
        %v4837 = vld [vmem:[#allocation19 + $0x20] sm:$0xff]
        %v4838 = vld [vmem:[#allocation19 + $0x28] sm:$0xff]
        %v4839 = vld [vmem:[#allocation19 + $0x30] sm:$0xff]
        %v4840 = vld [vmem:[#allocation19 + $0x38] sm:$0xff]
        %v4841 = vld [vmem:[#allocation19 + $0x40] sm:$0xff]
        %v4842 = vld [vmem:[#allocation19 + $0x48] sm:$0xff]
        %v4843 = vld [vmem:[#allocation19 + $0x50] sm:$0xff]
        %v4844 = vld [vmem:[#allocation19 + $0x58] sm:$0xff]
        %v4845 = vld [vmem:[#allocation19 + $0x60] sm:$0xff]
        %v4846 = vld [vmem:[#allocation19 + $0x68] sm:$0xff]
        %v4847 = vld [vmem:[#allocation19 + $0x70] sm:$0xff]
        %v4848 = vld [vmem:[#allocation19 + $0x78] sm:$0xff]
        %v4849 = vld [vmem:[#allocation19 + $0x80] sm:$0xff]
        %v4850 = vld [vmem:[#allocation19 + $0x88] sm:$0xff]
        %v4851 = vld [vmem:[#allocation19 + $0x90] sm:$0xff]
        %v4852 = vld [vmem:[#allocation19 + $0x98] sm:$0xff]
        %v4853 = vld [vmem:[#allocation19 + $0xa0] sm:$0xff]
        %v4854 = vld [vmem:[#allocation19 + $0xa8] sm:$0xff]
        %v4855 = vld [vmem:[#allocation19 + $0xb0] sm:$0xff]
        %v4856 = vld [vmem:[#allocation19 + $0xb8] sm:$0xff]
        %v4857 = vld [vmem:[#allocation19 + $0xc0] sm:$0xff]
        %v4858 = vld [vmem:[#allocation19 + $0xc8] sm:$0xff]
        %v4859 = vld [vmem:[#allocation19 + $0xd0] sm:$0xff]
        %v4860 = vld [vmem:[#allocation19 + $0xd8] sm:$0xff]
        %v4861 = vld [vmem:[#allocation19 + $0xe0] sm:$0xff]
        %v4862 = vld [vmem:[#allocation19 + $0xe8] sm:$0xff]
        %v4863 = vld [vmem:[#allocation19 + $0xf0] sm:$0xff]
        %v4864 = vld [vmem:[#allocation19 + $0xf8] sm:$0xff]
        %v4897 = vunpack.c.l.b16 %v4833
        %v4898 = vunpack.c.h.b16 %v4833
        %v4899 = vunpack.c.l.b16 %v4834
        %v4900 = vunpack.c.h.b16 %v4834
        %v4901 = vunpack.c.l.b16 %v4835
        %v4902 = vunpack.c.h.b16 %v4835
        %v4903 = vunpack.c.l.b16 %v4836
        %v4904 = vunpack.c.h.b16 %v4836
        %v4905 = vunpack.c.l.b16 %v4837
        %v4906 = vunpack.c.h.b16 %v4837
        %v4907 = vunpack.c.l.b16 %v4838
        %v4908 = vunpack.c.h.b16 %v4838
        %v4909 = vunpack.c.l.b16 %v4839
        %v4910 = vunpack.c.h.b16 %v4839
        %v4911 = vunpack.c.l.b16 %v4840
        %v4912 = vunpack.c.h.b16 %v4840
        %v4913 = vunpack.c.l.b16 %v4841
        %v4914 = vunpack.c.h.b16 %v4841
        %v4915 = vunpack.c.l.b16 %v4842
        %v4916 = vunpack.c.h.b16 %v4842
        %v4917 = vunpack.c.l.b16 %v4843
        %v4918 = vunpack.c.h.b16 %v4843
        %v4919 = vunpack.c.l.b16 %v4844
        %v4920 = vunpack.c.h.b16 %v4844
        %v4921 = vunpack.c.l.b16 %v4845
        %v4922 = vunpack.c.h.b16 %v4845
        %v4923 = vunpack.c.l.b16 %v4846
        %v4924 = vunpack.c.h.b16 %v4846
        %v4925 = vunpack.c.l.b16 %v4847
        %v4926 = vunpack.c.h.b16 %v4847
        %v4927 = vunpack.c.l.b16 %v4848
        %v4928 = vunpack.c.h.b16 %v4848
        %v4929 = vunpack.c.l.b16 %v4849
        %v4930 = vunpack.c.h.b16 %v4849
        %v4931 = vunpack.c.l.b16 %v4850
        %v4932 = vunpack.c.h.b16 %v4850
        %v4933 = vunpack.c.l.b16 %v4851
        %v4934 = vunpack.c.h.b16 %v4851
        %v4935 = vunpack.c.l.b16 %v4852
        %v4936 = vunpack.c.h.b16 %v4852
        %v4937 = vunpack.c.l.b16 %v4853
        %v4938 = vunpack.c.h.b16 %v4853
        %v4939 = vunpack.c.l.b16 %v4854
        %v4940 = vunpack.c.h.b16 %v4854
        %v4941 = vunpack.c.l.b16 %v4855
        %v4942 = vunpack.c.h.b16 %v4855
        %v4943 = vunpack.c.l.b16 %v4856
        %v4944 = vunpack.c.h.b16 %v4856
        %v4945 = vunpack.c.l.b16 %v4857
        %v4946 = vunpack.c.h.b16 %v4857
        %v4947 = vunpack.c.l.b16 %v4858
        %v4948 = vunpack.c.h.b16 %v4858
        %v4949 = vunpack.c.l.b16 %v4859
        %v4950 = vunpack.c.h.b16 %v4859
        %v4951 = vunpack.c.l.b16 %v4860
        %v4952 = vunpack.c.h.b16 %v4860
        %v4953 = vunpack.c.l.b16 %v4861
        %v4954 = vunpack.c.h.b16 %v4861
        %v4955 = vunpack.c.l.b16 %v4862
        %v4956 = vunpack.c.h.b16 %v4862
        %v4957 = vunpack.c.l.b16 %v4863
        %v4958 = vunpack.c.h.b16 %v4863
        %v4959 = vunpack.c.l.b16 %v4864
        %v4960 = vunpack.c.h.b16 %v4864
        %v4961 = vpack.c.b16 %v4899, %v4897
        %v4962 = vpack.c.b16 %v4900, %v4898
        %v4963 = vpack.c.b16 %v4903, %v4901
        %v4964 = vpack.c.b16 %v4904, %v4902
        %v4965 = vpack.c.b16 %v4907, %v4905
        %v4966 = vpack.c.b16 %v4908, %v4906
        %v4967 = vpack.c.b16 %v4911, %v4909
        %v4968 = vpack.c.b16 %v4912, %v4910
        %v4969 = vpack.c.b16 %v4915, %v4913
        %v4970 = vpack.c.b16 %v4916, %v4914
        %v4971 = vpack.c.b16 %v4919, %v4917
        %v4972 = vpack.c.b16 %v4920, %v4918
        %v4973 = vpack.c.b16 %v4923, %v4921
        %v4974 = vpack.c.b16 %v4924, %v4922
        %v4975 = vpack.c.b16 %v4927, %v4925
        %v4976 = vpack.c.b16 %v4928, %v4926
        %v4977 = vpack.c.b16 %v4931, %v4929
        %v4978 = vpack.c.b16 %v4932, %v4930
        %v4979 = vpack.c.b16 %v4935, %v4933
        %v4980 = vpack.c.b16 %v4936, %v4934
        %v4981 = vpack.c.b16 %v4939, %v4937
        %v4982 = vpack.c.b16 %v4940, %v4938
        %v4983 = vpack.c.b16 %v4943, %v4941
        %v4984 = vpack.c.b16 %v4944, %v4942
        %v4985 = vpack.c.b16 %v4947, %v4945
        %v4986 = vpack.c.b16 %v4948, %v4946
        %v4987 = vpack.c.b16 %v4951, %v4949
        %v4988 = vpack.c.b16 %v4952, %v4950
        %v4989 = vpack.c.b16 %v4955, %v4953
        %v4990 = vpack.c.b16 %v4956, %v4954
        %v4991 = vpack.c.b16 %v4959, %v4957
        %v4992 = vpack.c.b16 %v4960, %v4958
        %5025 = vmatpush.bf16.msra.mxu0 %v4975
        %5026 = vmatpush.bf16.msra.mxu0 %v4973
        %5027 = vmatpush.bf16.msra.mxu0 %v4971
        %5028 = vmatpush.bf16.msra.mxu0 %v4969
        %5029 = vmatpush.bf16.msra.mxu0 %v4967
        %5030 = vmatpush.bf16.msra.mxu0 %v4965
        %5031 = vmatpush.bf16.msra.mxu0 %v4963
        %5032 = vmatpush.bf16.msra.mxu0 %v4961
        %5033 = vmatmul.bf16.gmra.mxu0 %v4831
        %v5034 = vpop.f32.mrf.mxu0
        %v5035 = vadd.f32 0.0, %v5034
        %v5036 = vpop.f32.mrf.mxu0
        %5037 = vdwg.mxu0
        %5038 = vmatpush.bf16.msra.mxu0 %v4991
        %5039 = vmatpush.bf16.msra.mxu0 %v4989
        %5040 = vmatpush.bf16.msra.mxu0 %v4987
        %5041 = vmatpush.bf16.msra.mxu0 %v4985
        %5042 = vmatpush.bf16.msra.mxu0 %v4983
        %5043 = vmatpush.bf16.msra.mxu0 %v4981
        %5044 = vmatpush.bf16.msra.mxu0 %v4979
        %5045 = vmatpush.bf16.msra.mxu0 %v4977
        %5046 = vmatmul.bf16.gmra.mxu0 %v4832
        %v5047 = vpop.f32.mrf.mxu0
        %v5048 = vadd.f32 %v5035, %v5047
        %v5049 = vpop.f32.mrf.mxu0
        %5050 = vdwg.mxu0
        %5051 = vmatpush.bf16.msra.mxu0 %v4976
        %5052 = vmatpush.bf16.msra.mxu0 %v4974
        %5053 = vmatpush.bf16.msra.mxu0 %v4972
        %5054 = vmatpush.bf16.msra.mxu0 %v4970
        %5055 = vmatpush.bf16.msra.mxu0 %v4968
        %5056 = vmatpush.bf16.msra.mxu0 %v4966
        %5057 = vmatpush.bf16.msra.mxu0 %v4964
        %5058 = vmatpush.bf16.msra.mxu0 %v4962
        %5059 = vmatmul.bf16.gmra.mxu0 %v4831
        %v5060 = vpop.f32.mrf.mxu0
        %v5061 = vadd.f32 0.0, %v5060
        %v5062 = vpop.f32.mrf.mxu0
        %5063 = vdwg.mxu0
        %5064 = vmatpush.bf16.msra.mxu0 %v4992
        %5065 = vmatpush.bf16.msra.mxu0 %v4990
        %5066 = vmatpush.bf16.msra.mxu0 %v4988
        %5067 = vmatpush.bf16.msra.mxu0 %v4986
        %5068 = vmatpush.bf16.msra.mxu0 %v4984
        %5069 = vmatpush.bf16.msra.mxu0 %v4982
        %5070 = vmatpush.bf16.msra.mxu0 %v4980
        %5071 = vmatpush.bf16.msra.mxu0 %v4978
        %5072 = vmatmul.bf16.gmra.mxu0 %v4832
        %v5073 = vpop.f32.mrf.mxu0
        %v5074 = vadd.f32 %v5061, %v5073
        %v5075 = vpop.f32.mrf.mxu0
        %5076 = vdwg.mxu0
        %v5077 = vpack.c.bf16 %v5074, %v5048
        %v5079 = vrot.slane %v5077, 3
        %vm5080 = vcmask 1040384
        %v5083 = vsel %vm5080, %v5077, %v5079
        %vm5085 = vcmask 1040384
        %vm5086 = vsmask.f32 256
        %vm5087 = vmand %vm5085, %vm5086
        %vm5088 = vcmask 1041409
        %vm5089 = vsmask.f32 1280
        %vm5090 = vmand %vm5088, %vm5089
        %vm5091 = vmor %vm5090, %vm5087
        %v5092 = vld [vmem:[%s925] sm:$0x3]
        %v5093 = vsel %vm5091, %v5083, %v5092
        %5094 = vst [vmem:[%s925] sm:$0x3] %v5093
        %p5095 = scmp.lt.s32.totalorder %s44, 1
        %s5096 = scalar_select %p5095, %s44, 1
        %s5097 = smul.addr %s5096, 2
        %s5098 = scalar_lea.vmem %s22, %s5097
        // Predicated region
        $region157: #{tpu_custom_call.1} parent=107 // pred_check
          %p5099 = pneg %p544
        $region158: #{tpu_custom_call.1} parent=107 // pred_check_branch
          %5101 = sbr.rel (%p5099) target = $region160
        $region159: #{tpu_custom_call.1} parent=107 // pred_region
          _
        $region160: #{tpu_custom_call.1} parent=107 // pred_fallthru
          _
      $region108: #{tpu_custom_call.1} parent=5 // pred_fallthru
        _
      %p5102 = scmp.le.s32.totalorder 2, %s39
      // Predicated region
      $region161: #{tpu_custom_call.1} parent=5 // pred_check
        %p5103 = pneg %p5102
      $region162: #{tpu_custom_call.1} parent=5 // pred_check_branch
        %5105 = sbr.rel (%p5103) target = $region164
      $region163: #{tpu_custom_call.1} parent=5 // pred_region
        %s5106 = ssub.s32 %s39, 2
        // Predicated region
        $region165: #{tpu_custom_call.1} parent=163 // pred_check
          %p5107 = pneg %p550
        $region166: #{tpu_custom_call.1} parent=163 // pred_check_branch
          %5109 = sbr.rel (%p5107) target = $region168
        $region167: #{tpu_custom_call.1} parent=163 // pred_region
          %p5110 = scmp.lt.s32.totalorder %s45, 1
          %s5111 = scalar_select %p5110, %s45, 1
          %s5112 = smul.addr %s5111, 2
          %s5113 = scalar_lea.vmem %s22, %s5112
        $region168: #{tpu_custom_call.1} parent=163 // pred_fallthru
          _
      $region164: #{tpu_custom_call.1} parent=5 // pred_fallthru
        _
    $region6: #{tpu_custom_call.1} parent=1 // loop_footer
      %s43 = sadd.s32 1, %s39
    $region7: #{tpu_custom_call.1} parent=1 // loop_footer_branch
      %38 = sbr.rel target = $region3
    $region8: #{tpu_custom_call.1} parent=1 // loop_exit
      _
    %5114 = vsyncpa [#allocation3], 1
    %s5115 = scalar_lea.sflag [#allocation3], 1
    %5116 = vsyncpa %s5115, 1
    %5117 = vsyncpa [#allocation5], 1
    %s5118 = scalar_lea.sflag [#allocation5], 1
    %5119 = vsyncpa %s5118, 1
    %5120 = vsyncpa [#allocation8], 1
    %5121 = vsyncpa [#allocation11], 1
    %5122 = vsyncpa [#allocation14], 1
    %5123 = vsyncpa [#allocation17], 1
    %5124 = vsyncpa [#allocation20], 1

</llo_original>
